<compile_context>
chip_gen: v7x
topology: tpu7x:2x2x1
jax: 0.10.0
libtpu: 0.0.40
codegen_flags: <defaults>
</compile_context>

<pallas_src>
import jax
import jax.numpy as jnp
from jax.experimental import pallas as pl
from jax.experimental.pallas import tpu as pltpu


def _bmm(eq, a, b):
    return jnp.einsum(eq, a, b, preferred_element_type=jnp.float32)


def _layernorm(z, g, b):
    m = jnp.mean(z, axis=-1, keepdims=True)
    v = jnp.mean((z - m) ** 2, axis=-1, keepdims=True)
    return (z - m) * jax.lax.rsqrt(v + 1e-5) * g + b


# ----------------------------- Pallas kernel ---------------------------------

def _model_kernel(x_emb_ref, ln1g_ref, ln1b_ref,
                  hkp_ref, hqp_ref, w1k_ref, w1q_ref, ab1_ref, aw2_ref,
                  wv_ref, pw_ref, pb_ref,
                  ln2g_ref, ln2b_ref, fw1_ref, fb1_ref, fw2_ref, fb2_ref,
                  lnfg_ref, lnfb_ref, hw_ref, hb_ref,
                  o_ref, x_sc, ln_sc, acc_sc):
    # Whole model in one pallas_call.  Grid: (layer, head); both "arbitrary"
    # (state carried in VMEM scratch).  x_sc holds the running activation,
    # ln_sc the LN1 output for the current layer, acc_sc the attention-branch
    # accumulator (residual + per-head fused concat+proj contributions).
    l = pl.program_id(0)
    h = pl.program_id(1)
    n_l = pl.num_programs(0)
    n_h = pl.num_programs(1)
    B, T, C = x_emb_ref.shape
    HS = wv_ref.shape[-1]
    HID = fw1_ref.shape[-1]

    @pl.when(jnp.logical_and(l == 0, h == 0))
    def _():
        x_sc[...] = x_emb_ref[...]                       # token embeddings in

    @pl.when(h == 0)
    def _():
        x = x_sc[...]                                    # (B, T, C)
        ln_sc[...] = _layernorm(x, ln1g_ref[0], ln1b_ref[0])
        acc_sc[...] = x + pb_ref[0]                      # residual + proj bias

    x_ln = ln_sc[...]                                    # (B, T, C)

    # score-MLP hidden pre-activations; batch-independent pos contribution is
    # precomputed (hkp/hqp), so contraction is over C (not 2C).
    hk = hkp_ref[0, 0][None] + _bmm('btc,bcd->btd', x_ln,
                                    jnp.broadcast_to(w1k_ref[0, 0], (B, C, C)))
    hq = hqp_ref[0, 0][None] + _bmm('btc,bcd->btd', x_ln,
                                    jnp.broadcast_to(w1q_ref[0, 0], (B, C, C)))

    # relu cube + scalar-score reduction.  (att second-linear bias omitted:
    # constant per softmax row, cancels exactly.)
    cube = jnp.maximum(hq[:, :, None, :] + hk[:, None, :, :]
                       + ab1_ref[...], 0.0)              # (B, T, T, C)
    s = jnp.sum(cube * aw2_ref[...], axis=-1)            # (B, T, T)

    wei = s * (C ** -0.5)
    row = jax.lax.broadcasted_iota(jnp.int32, (T, T), 0)
    col = jax.lax.broadcasted_iota(jnp.int32, (T, T), 1)
    wei = jnp.where((col <= row)[None], wei, jnp.float32(-1e30))   # causal mask
    m = jnp.max(wei, axis=-1, keepdims=True)
    e = jnp.exp(wei - m)
    p = e * pl.reciprocal(jnp.sum(e, axis=-1, keepdims=True), approx=True)

    v = _bmm('btc,bch->bth', x_ln, jnp.broadcast_to(wv_ref[0, 0], (B, C, HS)))
    head_out = _bmm('bqk,bkh->bqh', p, v)                # (B, T, HS)
    # fused head-concat + output projection: accumulate this head's slice.
    acc_sc[...] += _bmm('bqh,bhc->bqc', head_out,
                        jnp.broadcast_to(pw_ref[0, 0], (B, HS, C)))

    @pl.when(h == n_h - 1)
    def _():
        y = acc_sc[...]                                  # x + sa(ln1(x))
        yn = _layernorm(y, ln2g_ref[0], ln2b_ref[0])
        hmid = jnp.maximum(
            _bmm('btc,bch->bth', yn, jnp.broadcast_to(fw1_ref[0], (B, C, HID)))
            + fb1_ref[0], 0.0)
        ff = _bmm('bth,bhc->btc', hmid,
                  jnp.broadcast_to(fw2_ref[0], (B, HID, C))) + fb2_ref[0]
        x_sc[...] = y + ff                               # residual 2 -> next layer

    @pl.when(jnp.logical_and(l == n_l - 1, h == n_h - 1))
    def _():
        # fused ln_f + lm_head; vocab padded to a multiple of 128 lanes.
        Vp = hw_ref.shape[-1]
        xn = _layernorm(x_sc[...], lnfg_ref[...], lnfb_ref[...])
        o_ref[...] = _bmm('btc,bcv->btv', xn,
                          jnp.broadcast_to(hw_ref[...], (B, C, Vp))) + hb_ref[...]


# ------------------------------ model forward --------------------------------

def transformer_forward(pp, idx, cfg):
    B, T = idx.shape
    V = cfg["vocab_size"]
    C = cfg["n_embed"]
    L, H = pp["w1k_x"].shape[:2]
    HS = pp["wv_t"].shape[-1]
    HID = pp["ff_w1t"].shape[-1]
    Vp = pp["head_wt"].shape[-1]

    x = pp["tok_emb"][idx]                 # (B, T, C) token gather (XLA glue)

    logits = pl.pallas_call(
        _model_kernel,
        out_shape=jax.ShapeDtypeStruct((B, T, Vp), jnp.float32),
        grid=(L, H),
        in_specs=[
            pl.BlockSpec((B, T, C), lambda l, h: (0, 0, 0)),        # x emb
            pl.BlockSpec((1, 1, C), lambda l, h: (l, 0, 0)),        # ln1_g
            pl.BlockSpec((1, 1, C), lambda l, h: (l, 0, 0)),        # ln1_b
            pl.BlockSpec((1, 1, T, C), lambda l, h: (l, h, 0, 0)),  # hk_pos
            pl.BlockSpec((1, 1, T, C), lambda l, h: (l, h, 0, 0)),  # hq_pos
            pl.BlockSpec((1, 1, C, C), lambda l, h: (l, h, 0, 0)),  # w1k_x
            pl.BlockSpec((1, 1, C, C), lambda l, h: (l, h, 0, 0)),  # w1q_x
            pl.BlockSpec((1, 1, 1, C), lambda l, h: (l, h, 0, 0)),  # att b1
            pl.BlockSpec((1, 1, 1, C), lambda l, h: (l, h, 0, 0)),  # att w2
            pl.BlockSpec((1, 1, C, HS), lambda l, h: (l, h, 0, 0)), # wv_t
            pl.BlockSpec((1, 1, HS, C), lambda l, h: (l, h, 0, 0)), # proj_w slice
            pl.BlockSpec((1, 1, C), lambda l, h: (l, 0, 0)),        # proj_b
            pl.BlockSpec((1, 1, C), lambda l, h: (l, 0, 0)),        # ln2_g
            pl.BlockSpec((1, 1, C), lambda l, h: (l, 0, 0)),        # ln2_b
            pl.BlockSpec((1, C, HID), lambda l, h: (l, 0, 0)),      # ff_w1t
            pl.BlockSpec((1, 1, HID), lambda l, h: (l, 0, 0)),      # ff_b1
            pl.BlockSpec((1, HID, C), lambda l, h: (l, 0, 0)),      # ff_w2t
            pl.BlockSpec((1, 1, C), lambda l, h: (l, 0, 0)),        # ff_b2
            pl.BlockSpec((1, C), lambda l, h: (0, 0)),              # lnf_g
            pl.BlockSpec((1, C), lambda l, h: (0, 0)),              # lnf_b
            pl.BlockSpec((C, Vp), lambda l, h: (0, 0)),             # head_wt
            pl.BlockSpec((1, Vp), lambda l, h: (0, 0)),             # head_b
        ],
        out_specs=pl.BlockSpec((B, T, Vp), lambda l, h: (0, 0, 0)),
        scratch_shapes=[pltpu.VMEM((B, T, C), jnp.float32),   # x (carried)
                        pltpu.VMEM((B, T, C), jnp.float32),   # ln1(x)
                        pltpu.VMEM((B, T, C), jnp.float32)],  # attn accumulator
        compiler_params=pltpu.CompilerParams(
            dimension_semantics=("arbitrary", "arbitrary")),
    )(x,
      pp["ln1_g"], pp["ln1_b"],
      pp["hk_pos"][:, :, :T], pp["hq_pos"][:, :, :T],
      pp["w1k_x"], pp["w1q_x"], pp["att_b1"], pp["att_w2"],
      pp["wv_t"], pp["proj_wh"], pp["proj_b"],
      pp["ln2_g"], pp["ln2_b"],
      pp["ff_w1t"], pp["ff_b1"], pp["ff_w2t"], pp["ff_b2"],
      pp["lnf_g"], pp["lnf_b"], pp["head_wt"], pp["head_b"])

    return logits[:, :, :V]


# ------------------------- parameter preprocessing ----------------------------

def preprocess_params(params, cfg):
    """One-time: transpose / split / stack weights (leading layer & head axes)
    so the forward has zero per-call weight prep.  hk_pos/hq_pos hoist the
    batch-independent pos_emb contribution of the score MLP."""
    C, V, H = cfg["n_embed"], cfg["vocab_size"], cfg["n_head"]
    Vp = ((V + 127) // 128) * 128
    layers = params["layers"]

    def per_layer(fn):
        return jnp.stack([fn(layer) for layer in layers])

    hk_pos, hq_pos, w1k, w1q, ab1, aw2, wvt, projwh = ([] for _ in range(8))
    for layer in layers:
        heads = layer["heads"]
        w1 = jnp.stack([hd["att_w1"] for hd in heads])          # (H, C, 4C)
        pos = jnp.stack([hd["pos_table"] for hd in heads])      # (H, BS, C)
        # score-MLP input is [pos_j, x_j, pos_i, x_i]; split W1 accordingly.
        hk_pos.append(jnp.einsum('htc,hdc->htd', pos, w1[:, :, 0:C]))          # pos_j
        hq_pos.append(jnp.einsum('htc,hdc->htd', pos, w1[:, :, 2 * C:3 * C]))  # pos_i
        w1k.append(jnp.transpose(w1[:, :, C:2 * C], (0, 2, 1)))                # (H,C,C)
        w1q.append(jnp.transpose(w1[:, :, 3 * C:4 * C], (0, 2, 1)))
        ab1.append(jnp.stack([hd["att_b1"] for hd in heads]).reshape(H, 1, C))
        aw2.append(jnp.stack([hd["att_w2"] for hd in heads]).reshape(H, 1, C))
        wvt.append(jnp.stack([hd["wv"].T for hd in heads]))                    # (H,C,HS)
        projwh.append(layer["proj_w"].T.reshape(H, C // H, C))                 # (H,HS,C)

    pp = {
        "tok_emb": params["tok_emb"],
        "ln1_g": per_layer(lambda l: l["ln1_g"].reshape(1, C)),    # (L,1,C)
        "ln1_b": per_layer(lambda l: l["ln1_b"].reshape(1, C)),
        "hk_pos": jnp.stack(hk_pos),                               # (L,H,BS,C)
        "hq_pos": jnp.stack(hq_pos),
        "w1k_x": jnp.stack(w1k),                                   # (L,H,C,C)
        "w1q_x": jnp.stack(w1q),
        "att_b1": jnp.stack(ab1),                                  # (L,H,1,C)
        "att_w2": jnp.stack(aw2),
        "wv_t": jnp.stack(wvt),                                    # (L,H,C,HS)
        "proj_wh": jnp.stack(projwh),                              # (L,H,HS,C)
        "proj_b": per_layer(lambda l: l["proj_b"].reshape(1, C)),
        "ln2_g": per_layer(lambda l: l["ln2_g"].reshape(1, C)),
        "ln2_b": per_layer(lambda l: l["ln2_b"].reshape(1, C)),
        "ff_w1t": per_layer(lambda l: l["ff_w1"].T),               # (L,C,HID)
        "ff_b1": per_layer(lambda l: l["ff_b1"].reshape(1, -1)),   # (L,1,HID)
        "ff_w2t": per_layer(lambda l: l["ff_w2"].T),               # (L,HID,C)
        "ff_b2": per_layer(lambda l: l["ff_b2"].reshape(1, C)),
        "lnf_g": params["lnf_g"].reshape(1, C),
        "lnf_b": params["lnf_b"].reshape(1, C),
        "head_wt": jnp.zeros((C, Vp), jnp.float32).at[:, :V].set(params["head_w"].T),
        "head_b": jnp.zeros((1, Vp), jnp.float32).at[0, :V].set(params["head_b"]),
    }
    return pp


# --------------------------- pure-JAX reference -------------------------------

def ref_forward(params, idx, cfg):
    B, T = idx.shape
    C = cfg["n_embed"]

    def ln(z, g, b):
        m = z.mean(-1, keepdims=True)
        v = ((z - m) ** 2).mean(-1, keepdims=True)
        return (z - m) / jnp.sqrt(v + 1e-5) * g + b

    x = params["tok_emb"][idx]
    for layer in params["layers"]:
        xl = ln(x, layer["ln1_g"], layer["ln1_b"])
        houts = []
        for head in layer["heads"]:
            pos = jnp.broadcast_to(head["pos_table"][:T][None], (B, T, C))
            x1 = jnp.concatenate([pos, xl], axis=-1)
            k = jnp.broadcast_to(x1[:, None, :, :], (B, T, T, 2 * C))
            q = jnp.broadcast_to(x1[:, :, None, :], (B, T, T, 2 * C))
            a2 = jnp.concatenate([k, q], axis=-1)
            h = jnp.maximum(a2 @ head["att_w1"].T + head["att_b1"], 0.0)
            s = (h @ head["att_w2"].T)[..., 0] + head["att_b2"][0]
            wei = s * (C ** -0.5)
            mask = jnp.tril(jnp.ones((T, T), bool))
            wei = jnp.where(mask, wei, -jnp.inf)
            wei = jax.nn.softmax(wei, axis=-1)
            v = xl @ head["wv"].T
            houts.append(wei @ v)
        sa = jnp.concatenate(houts, axis=-1)
        x = x + (sa @ layer["proj_w"].T + layer["proj_b"])
        xl2 = ln(x, layer["ln2_g"], layer["ln2_b"])
        ff = (jnp.maximum(xl2 @ layer["ff_w1"].T + layer["ff_b1"], 0.0)
              @ layer["ff_w2"].T + layer["ff_b2"])
        x = x + ff
    x = ln(x, params["lnf_g"], params["lnf_b"])
    return x @ params["head_w"].T + params["head_b"]


# ------------------------------ parameter init --------------------------------

def init_params(key, cfg):
    C, V = cfg["n_embed"], cfg["vocab_size"]
    BS, H, HS, HID = cfg["block_size"], cfg["n_head"], cfg["head_size"], cfg["hidden_size"]
    keys = iter(jax.random.split(key, 256))

    def nrm(shape, scale=0.02):
        return (scale * jax.random.normal(next(keys), shape)).astype(jnp.float32)

    params = {
        "tok_emb": nrm((V, C)),
        "lnf_g": jnp.ones((C,), jnp.float32),
        "lnf_b": jnp.zeros((C,), jnp.float32),
        "head_w": nrm((V, C)),
        "head_b": nrm((V,)),
        "layers": [],
    }
    for _ in range(cfg["n_layer"]):
        layer = {
            "ln1_g": jnp.ones((C,), jnp.float32), "ln1_b": jnp.zeros((C,), jnp.float32),
            "ln2_g": jnp.ones((C,), jnp.float32), "ln2_b": jnp.zeros((C,), jnp.float32),
            "proj_w": nrm((C, C)), "proj_b": nrm((C,)),
            "ff_w1": nrm((HID, C)), "ff_b1": nrm((HID,)),
            "ff_w2": nrm((C, HID)), "ff_b2": nrm((C,)),
            "heads": [],
        }
        for _ in range(H):
            layer["heads"].append({
                "pos_table": nrm((BS, C)),
                "att_w1": nrm((C, 4 * C)),   # FeedForward(n_embd*4, n_embd, 1) first linear
                "att_b1": nrm((C,)),
                "att_w2": nrm((1, C)),       # second linear -> scalar score
                "att_b2": nrm((1,)),         # cancels in softmax; kept for the reference
                "wv": nrm((HS, C)),          # value, bias=False
            })
        params["layers"].append(layer)
    return params


# ----------------------------------- main -------------------------------------

if __name__ == "__main__":
    cfg = dict(vocab_size=65, n_embed=32, block_size=8, n_head=4,
               head_size=8, hidden_size=64, n_layer=2, dropout=0.0)

    key = jax.random.PRNGKey(0)
    pkey, ikey = jax.random.split(key)
    params = init_params(pkey, cfg)
    pp = preprocess_params(params, cfg)     # one-time weight prep (hoisted)

    B, T = 2, cfg["block_size"]
    idx = jax.random.randint(ikey, (B, T), 0, cfg["vocab_size"], dtype=jnp.int32)

    fwd = jax.jit(lambda p, i: transformer_forward(p, i, cfg))
    logits = fwd(pp, idx)
    jax.block_until_ready(logits)

    assert logits.shape == (B, T, cfg["vocab_size"]), logits.shape
    ref = ref_forward(params, idx, cfg)
    assert jnp.all(jnp.isfinite(logits))
    assert jnp.allclose(logits, ref, atol=1e-2, rtol=1e-2), \
        float(jnp.max(jnp.abs(logits - ref)))
    # TODO(synk): dropout layers are identity (eval mode); token-embedding
    # gather stays in XLA glue; generate()'s torch.multinomial sampling loop is
    # host-side control flow, not kernelized.
    print("KERNEL_OK")
</pallas_src>

<mosaic_0001>
module attributes {stable_mosaic.version = 11 : i64} {
  func.func @_model_kernel(%arg0: i32, %arg1: i32, %arg2: memref<2x8x32xf32, #tpu.memory_space<vmem>>, %arg3: memref<1x1x32xf32, #tpu.memory_space<vmem>>, %arg4: memref<1x1x32xf32, #tpu.memory_space<vmem>>, %arg5: memref<1x1x8x32xf32, #tpu.memory_space<vmem>>, %arg6: memref<1x1x8x32xf32, #tpu.memory_space<vmem>>, %arg7: memref<1x1x32x32xf32, #tpu.memory_space<vmem>>, %arg8: memref<1x1x32x32xf32, #tpu.memory_space<vmem>>, %arg9: memref<1x1x1x32xf32, #tpu.memory_space<vmem>>, %arg10: memref<1x1x1x32xf32, #tpu.memory_space<vmem>>, %arg11: memref<1x1x32x8xf32, #tpu.memory_space<vmem>>, %arg12: memref<1x1x8x32xf32, #tpu.memory_space<vmem>>, %arg13: memref<1x1x32xf32, #tpu.memory_space<vmem>>, %arg14: memref<1x1x32xf32, #tpu.memory_space<vmem>>, %arg15: memref<1x1x32xf32, #tpu.memory_space<vmem>>, %arg16: memref<1x32x64xf32, #tpu.memory_space<vmem>>, %arg17: memref<1x1x64xf32, #tpu.memory_space<vmem>>, %arg18: memref<1x64x32xf32, #tpu.memory_space<vmem>>, %arg19: memref<1x1x32xf32, #tpu.memory_space<vmem>>, %arg20: memref<1x32xf32, #tpu.memory_space<vmem>>, %arg21: memref<1x32xf32, #tpu.memory_space<vmem>>, %arg22: memref<32x128xf32, #tpu.memory_space<vmem>>, %arg23: memref<1x128xf32, #tpu.memory_space<vmem>>, %arg24: memref<2x8x128xf32, #tpu.memory_space<vmem>>, %arg25: memref<2x8x32xf32, #tpu.memory_space<vmem>>, %arg26: memref<2x8x32xf32, #tpu.memory_space<vmem>>, %arg27: memref<2x8x32xf32, #tpu.memory_space<vmem>>) attributes {dimension_semantics = [#tpu.dimension_semantics<arbitrary>, #tpu.dimension_semantics<arbitrary>], iteration_bounds = array<i64: 2, 4>, scalar_prefetch = 0 : i64, scratch_operands = 3 : i64, tpu.core_type = #tpu.core_type<tc>, window_params = [{pipeline_mode = #tpu.pipeline_mode<synchronous>, transform_indices = @transform_0, window_bounds = array<i64: 2, 8, 32>}, {transform_indices = @transform_1, window_bounds = array<i64: 1, 1, 32>}, {transform_indices = @transform_2, window_bounds = array<i64: 1, 1, 32>}, {transform_indices = @transform_3, window_bounds = array<i64: 1, 1, 8, 32>}, {transform_indices = @transform_4, window_bounds = array<i64: 1, 1, 8, 32>}, {transform_indices = @transform_5, window_bounds = array<i64: 1, 1, 32, 32>}, {transform_indices = @transform_6, window_bounds = array<i64: 1, 1, 32, 32>}, {transform_indices = @transform_7, window_bounds = array<i64: 1, 1, 1, 32>}, {transform_indices = @transform_8, window_bounds = array<i64: 1, 1, 1, 32>}, {transform_indices = @transform_9, window_bounds = array<i64: 1, 1, 32, 8>}, {transform_indices = @transform_10, window_bounds = array<i64: 1, 1, 8, 32>}, {transform_indices = @transform_11, window_bounds = array<i64: 1, 1, 32>}, {transform_indices = @transform_12, window_bounds = array<i64: 1, 1, 32>}, {transform_indices = @transform_13, window_bounds = array<i64: 1, 1, 32>}, {transform_indices = @transform_14, window_bounds = array<i64: 1, 32, 64>}, {transform_indices = @transform_15, window_bounds = array<i64: 1, 1, 64>}, {transform_indices = @transform_16, window_bounds = array<i64: 1, 64, 32>}, {transform_indices = @transform_17, window_bounds = array<i64: 1, 1, 32>}, {pipeline_mode = #tpu.pipeline_mode<synchronous>, transform_indices = @transform_18, window_bounds = array<i64: 1, 32>}, {pipeline_mode = #tpu.pipeline_mode<synchronous>, transform_indices = @transform_19, window_bounds = array<i64: 1, 32>}, {pipeline_mode = #tpu.pipeline_mode<synchronous>, transform_indices = @transform_20, window_bounds = array<i64: 32, 128>}, {pipeline_mode = #tpu.pipeline_mode<synchronous>, transform_indices = @transform_21, window_bounds = array<i64: 1, 128>}, {pipeline_mode = #tpu.pipeline_mode<synchronous>, transform_indices = @transform_22, window_bounds = array<i64: 2, 8, 128>}]} {
    %c0_i32 = arith.constant 0 : i32
    %0 = arith.cmpi eq, %arg0, %c0_i32 : i32
    %c0_i32_0 = arith.constant 0 : i32
    %1 = arith.cmpi eq, %arg1, %c0_i32_0 : i32
    %2 = arith.andi %0, %1 : i1
    %3 = arith.extui %2 : i1 to i32
    %c0_i32_1 = arith.constant 0 : i32
    %4 = arith.cmpi ne, %3, %c0_i32_1 : i32
    scf.if %4 {
      %c0_57 = arith.constant 0 : index
      %c0_58 = arith.constant 0 : index
      %c0_59 = arith.constant 0 : index
      %85 = vector.load %arg2[%c0_57, %c0_58, %c0_59] : memref<2x8x32xf32, #tpu.memory_space<vmem>>, vector<2x8x32xf32>
      %c0_60 = arith.constant 0 : index
      %c0_61 = arith.constant 0 : index
      %c0_62 = arith.constant 0 : index
      %86 = vector.load %arg25[%c0_60, %c0_61, %c0_62] : memref<2x8x32xf32, #tpu.memory_space<vmem>>, vector<2x8x32xf32>
      tpu.vector_store %arg25[%c0_60, %c0_61, %c0_62], %85 {strides = array<i32>} : memref<2x8x32xf32, #tpu.memory_space<vmem>>, vector<2x8x32xf32>,
    } else {
    }
    %c0_i32_2 = arith.constant 0 : i32
    %5 = arith.cmpi eq, %arg1, %c0_i32_2 : i32
    %6 = arith.extui %5 : i1 to i32
    %c0_i32_3 = arith.constant 0 : i32
    %7 = arith.cmpi ne, %6, %c0_i32_3 : i32
    scf.if %7 {
      %c0_57 = arith.constant 0 : index
      %c0_58 = arith.constant 0 : index
      %c0_59 = arith.constant 0 : index
      %85 = vector.load %arg25[%c0_57, %c0_58, %c0_59] : memref<2x8x32xf32, #tpu.memory_space<vmem>>, vector<2x8x32xf32>
      %c0_60 = arith.constant 0 : index
      %c0_61 = arith.constant 0 : index
      %c0_62 = arith.constant 0 : index
      %86 = vector.load %arg3[%c0_60, %c0_61, %c0_62] : memref<1x1x32xf32, #tpu.memory_space<vmem>>, vector<1x1x32xf32>
      %87 = vector.shape_cast %86 : vector<1x1x32xf32> to vector<1x32xf32>
      %c0_63 = arith.constant 0 : index
      %c0_64 = arith.constant 0 : index
      %c0_65 = arith.constant 0 : index
      %88 = vector.load %arg4[%c0_63, %c0_64, %c0_65] : memref<1x1x32xf32, #tpu.memory_space<vmem>>, vector<1x1x32xf32>
      %89 = vector.shape_cast %88 : vector<1x1x32xf32> to vector<1x32xf32>
      %cst_66 = arith.constant dense<0.000000e+00> : vector<2x8xf32>
      %90 = vector.multi_reduction <add>, %85, %cst_66 [2] : vector<2x8x32xf32> to vector<2x8xf32>
      %91 = vector.shape_cast %90 : vector<2x8xf32> to vector<2x8x1xf32>
      %cst_67 = arith.constant 3.200000e+01 : f32
      %92 = vector.broadcast %cst_67 : f32 to vector<2x8x1xf32>
      %93 = arith.divf %91, %92 : vector<2x8x1xf32>
      %94 = vector.broadcast %93 : vector<2x8x1xf32> to vector<2x8x32xf32>
      %95 = arith.subf %85, %94 : vector<2x8x32xf32>
      %96 = arith.mulf %95, %95 : vector<2x8x32xf32>
      %cst_68 = arith.constant dense<0.000000e+00> : vector<2x8xf32>
      %97 = vector.multi_reduction <add>, %96, %cst_68 [2] : vector<2x8x32xf32> to vector<2x8xf32>
      %98 = vector.shape_cast %97 : vector<2x8xf32> to vector<2x8x1xf32>
      %cst_69 = arith.constant 3.200000e+01 : f32
      %99 = vector.broadcast %cst_69 : f32 to vector<2x8x1xf32>
      %100 = arith.divf %98, %99 : vector<2x8x1xf32>
      %101 = vector.broadcast %93 : vector<2x8x1xf32> to vector<2x8x32xf32>
      %102 = arith.subf %85, %101 : vector<2x8x32xf32>
      %cst_70 = arith.constant 9.99999974E-6 : f32
      %103 = vector.broadcast %cst_70 : f32 to vector<2x8x1xf32>
      %104 = arith.addf %100, %103 : vector<2x8x1xf32>
      %105 = math.rsqrt %104 : vector<2x8x1xf32>
      %106 = vector.broadcast %105 : vector<2x8x1xf32> to vector<2x8x32xf32>
      %107 = arith.mulf %102, %106 : vector<2x8x32xf32>
      %108 = vector.shape_cast %87 : vector<1x32xf32> to vector<1x1x32xf32>
      %109 = vector.broadcast %108 : vector<1x1x32xf32> to vector<2x8x32xf32>
      %110 = arith.mulf %107, %109 : vector<2x8x32xf32>
      %111 = vector.shape_cast %89 : vector<1x32xf32> to vector<1x1x32xf32>
      %112 = vector.broadcast %111 : vector<1x1x32xf32> to vector<2x8x32xf32>
      %113 = arith.addf %110, %112 : vector<2x8x32xf32>
      %c0_71 = arith.constant 0 : index
      %c0_72 = arith.constant 0 : index
      %c0_73 = arith.constant 0 : index
      %114 = vector.load %arg26[%c0_71, %c0_72, %c0_73] : memref<2x8x32xf32, #tpu.memory_space<vmem>>, vector<2x8x32xf32>
      tpu.vector_store %arg26[%c0_71, %c0_72, %c0_73], %113 {strides = array<i32>} : memref<2x8x32xf32, #tpu.memory_space<vmem>>, vector<2x8x32xf32>,
      %c0_74 = arith.constant 0 : index
      %c0_75 = arith.constant 0 : index
      %c0_76 = arith.constant 0 : index
      %115 = vector.load %arg13[%c0_74, %c0_75, %c0_76] : memref<1x1x32xf32, #tpu.memory_space<vmem>>, vector<1x1x32xf32>
      %116 = vector.shape_cast %115 : vector<1x1x32xf32> to vector<1x32xf32>
      %117 = vector.shape_cast %116 : vector<1x32xf32> to vector<1x1x32xf32>
      %118 = vector.broadcast %117 : vector<1x1x32xf32> to vector<2x8x32xf32>
      %119 = arith.addf %85, %118 : vector<2x8x32xf32>
      %c0_77 = arith.constant 0 : index
      %c0_78 = arith.constant 0 : index
      %c0_79 = arith.constant 0 : index
      %120 = vector.load %arg27[%c0_77, %c0_78, %c0_79] : memref<2x8x32xf32, #tpu.memory_space<vmem>>, vector<2x8x32xf32>
      tpu.vector_store %arg27[%c0_77, %c0_78, %c0_79], %119 {strides = array<i32>} : memref<2x8x32xf32, #tpu.memory_space<vmem>>, vector<2x8x32xf32>,
    } else {
    }
    %c0 = arith.constant 0 : index
    %c0_4 = arith.constant 0 : index
    %c0_5 = arith.constant 0 : index
    %8 = vector.load %arg26[%c0, %c0_4, %c0_5] : memref<2x8x32xf32, #tpu.memory_space<vmem>>, vector<2x8x32xf32>
    %c0_6 = arith.constant 0 : index
    %c0_7 = arith.constant 0 : index
    %c0_8 = arith.constant 0 : index
    %c0_9 = arith.constant 0 : index
    %9 = vector.load %arg5[%c0_6, %c0_7, %c0_8, %c0_9] : memref<1x1x8x32xf32, #tpu.memory_space<vmem>>, vector<1x1x8x32xf32>
    %10 = vector.shape_cast %9 : vector<1x1x8x32xf32> to vector<8x32xf32>
    %11 = vector.shape_cast %10 : vector<8x32xf32> to vector<1x8x32xf32>
    %c0_10 = arith.constant 0 : index
    %c0_11 = arith.constant 0 : index
    %c0_12 = arith.constant 0 : index
    %c0_13 = arith.constant 0 : index
    %12 = vector.load %arg7[%c0_10, %c0_11, %c0_12, %c0_13] : memref<1x1x32x32xf32, #tpu.memory_space<vmem>>, vector<1x1x32x32xf32>
    %13 = vector.shape_cast %12 : vector<1x1x32x32xf32> to vector<32x32xf32>
    %14 = vector.shape_cast %13 : vector<32x32xf32> to vector<1x32x32xf32>
    %15 = vector.broadcast %14 : vector<1x32x32xf32> to vector<2x32x32xf32>
    "tpu.trace_start"() <{level = 10 : i32, message = "btc,bcd->btd"}> : () -> ()
    %cst = arith.constant dense<0.000000e+00> : vector<2x8x32xf32>
    %16 = tpu.matmul %8, %15, %cst {dimension_numbers = #tpu.dot_dimension_numbers<[2], [1], [1], [2], [0, 0, 0, 1, 1, 2], [0], [0]>} : vector<2x8x32xf32>, vector<2x32x32xf32>, vector<2x8x32xf32> -> vector<2x8x32xf32>
    "tpu.trace_stop"() : () -> ()
    %17 = vector.broadcast %11 : vector<1x8x32xf32> to vector<2x8x32xf32>
    %18 = arith.addf %17, %16 : vector<2x8x32xf32>
    %c0_14 = arith.constant 0 : index
    %c0_15 = arith.constant 0 : index
    %c0_16 = arith.constant 0 : index
    %c0_17 = arith.constant 0 : index
    %19 = vector.load %arg6[%c0_14, %c0_15, %c0_16, %c0_17] : memref<1x1x8x32xf32, #tpu.memory_space<vmem>>, vector<1x1x8x32xf32>
    %20 = vector.shape_cast %19 : vector<1x1x8x32xf32> to vector<8x32xf32>
    %21 = vector.shape_cast %20 : vector<8x32xf32> to vector<1x8x32xf32>
    %c0_18 = arith.constant 0 : index
    %c0_19 = arith.constant 0 : index
    %c0_20 = arith.constant 0 : index
    %c0_21 = arith.constant 0 : index
    %22 = vector.load %arg8[%c0_18, %c0_19, %c0_20, %c0_21] : memref<1x1x32x32xf32, #tpu.memory_space<vmem>>, vector<1x1x32x32xf32>
    %23 = vector.shape_cast %22 : vector<1x1x32x32xf32> to vector<32x32xf32>
    %24 = vector.shape_cast %23 : vector<32x32xf32> to vector<1x32x32xf32>
    %25 = vector.broadcast %24 : vector<1x32x32xf32> to vector<2x32x32xf32>
    "tpu.trace_start"() <{level = 10 : i32, message = "btc,bcd->btd"}> : () -> ()
    %cst_22 = arith.constant dense<0.000000e+00> : vector<2x8x32xf32>
    %26 = tpu.matmul %8, %25, %cst_22 {dimension_numbers = #tpu.dot_dimension_numbers<[2], [1], [1], [2], [0, 0, 0, 1, 1, 2], [0], [0]>} : vector<2x8x32xf32>, vector<2x32x32xf32>, vector<2x8x32xf32> -> vector<2x8x32xf32>
    "tpu.trace_stop"() : () -> ()
    %27 = vector.broadcast %21 : vector<1x8x32xf32> to vector<2x8x32xf32>
    %28 = arith.addf %27, %26 : vector<2x8x32xf32>
    %29 = vector.shape_cast %28 : vector<2x8x32xf32> to vector<2x8x1x32xf32>
    %30 = vector.shape_cast %18 : vector<2x8x32xf32> to vector<2x1x8x32xf32>
    %31 = vector.broadcast %29 : vector<2x8x1x32xf32> to vector<2x8x8x32xf32>
    %32 = vector.broadcast %30 : vector<2x1x8x32xf32> to vector<2x8x8x32xf32>
    %33 = arith.addf %31, %32 : vector<2x8x8x32xf32>
    %c0_23 = arith.constant 0 : index
    %c0_24 = arith.constant 0 : index
    %c0_25 = arith.constant 0 : index
    %c0_26 = arith.constant 0 : index
    %34 = vector.load %arg9[%c0_23, %c0_24, %c0_25, %c0_26] : memref<1x1x1x32xf32, #tpu.memory_space<vmem>>, vector<1x1x1x32xf32>
    %35 = vector.broadcast %34 : vector<1x1x1x32xf32> to vector<2x8x8x32xf32>
    %36 = arith.addf %33, %35 : vector<2x8x8x32xf32>
    %cst_27 = arith.constant 0.000000e+00 : f32
    %37 = vector.broadcast %cst_27 : f32 to vector<2x8x8x32xf32>
    %38 = arith.maximumf %36, %37 : vector<2x8x8x32xf32>
    %c0_28 = arith.constant 0 : index
    %c0_29 = arith.constant 0 : index
    %c0_30 = arith.constant 0 : index
    %c0_31 = arith.constant 0 : index
    %39 = vector.load %arg10[%c0_28, %c0_29, %c0_30, %c0_31] : memref<1x1x1x32xf32, #tpu.memory_space<vmem>>, vector<1x1x1x32xf32>
    %40 = vector.broadcast %39 : vector<1x1x1x32xf32> to vector<2x8x8x32xf32>
    %41 = arith.mulf %38, %40 : vector<2x8x8x32xf32>
    %cst_32 = arith.constant dense<0.000000e+00> : vector<2x8x8xf32>
    %42 = vector.multi_reduction <add>, %41, %cst_32 [3] : vector<2x8x8x32xf32> to vector<2x8x8xf32>
    %cst_33 = arith.constant 0.176776692 : f32
    %43 = vector.broadcast %cst_33 : f32 to vector<2x8x8xf32>
    %44 = arith.mulf %42, %43 : vector<2x8x8xf32>
    %45 = tpu.iota {dimensions = array<i32: 0>} : vector<8x8xi32>
    %46 = tpu.iota {dimensions = array<i32: 1>} : vector<8x8xi32>
    %47 = arith.cmpi sle, %46, %45 : vector<8x8xi32>
    %48 = vector.shape_cast %47 : vector<8x8xi1> to vector<1x8x8xi1>
    %cst_34 = arith.constant -1.000000e+30 : f32
    %49 = vector.shape_cast %48 : vector<1x8x8xi1> to vector<1x8x8xi1>
    %50 = vector.broadcast %49 : vector<1x8x8xi1> to vector<2x8x8xi1>
    %51 = vector.broadcast %cst_34 : f32 to vector<2x8x8xf32>
    %52 = arith.select %50, %44, %51 : vector<2x8x8xi1>, vector<2x8x8xf32>
    %cst_35 = arith.constant dense<0xFF800000> : vector<2x8xf32>
    %53 = vector.multi_reduction <maximumf>, %52, %cst_35 [2] : vector<2x8x8xf32> to vector<2x8xf32>
    %54 = vector.shape_cast %53 : vector<2x8xf32> to vector<2x8x1xf32>
    %55 = vector.broadcast %54 : vector<2x8x1xf32> to vector<2x8x8xf32>
    %56 = arith.subf %52, %55 : vector<2x8x8xf32>
    %57 = math.exp %56 : vector<2x8x8xf32>
    %cst_36 = arith.constant dense<0.000000e+00> : vector<2x8xf32>
    %58 = vector.multi_reduction <add>, %57, %cst_36 [2] : vector<2x8x8xf32> to vector<2x8xf32>
    %59 = vector.shape_cast %58 : vector<2x8xf32> to vector<2x8x1xf32>
    %60 = tpu.reciprocal %59 {approx = true} : vector<2x8x1xf32> -> vector<2x8x1xf32>
    %61 = vector.broadcast %60 : vector<2x8x1xf32> to vector<2x8x8xf32>
    %62 = arith.mulf %57, %61 : vector<2x8x8xf32>
    %c0_37 = arith.constant 0 : index
    %c0_38 = arith.constant 0 : index
    %c0_39 = arith.constant 0 : index
    %c0_40 = arith.constant 0 : index
    %63 = vector.load %arg11[%c0_37, %c0_38, %c0_39, %c0_40] : memref<1x1x32x8xf32, #tpu.memory_space<vmem>>, vector<1x1x32x8xf32>
    %64 = vector.shape_cast %63 : vector<1x1x32x8xf32> to vector<32x8xf32>
    %65 = vector.shape_cast %64 : vector<32x8xf32> to vector<1x32x8xf32>
    %66 = vector.broadcast %65 : vector<1x32x8xf32> to vector<2x32x8xf32>
    "tpu.trace_start"() <{level = 10 : i32, message = "btc,bch->bth"}> : () -> ()
    %cst_41 = arith.constant dense<0.000000e+00> : vector<2x8x8xf32>
    %67 = tpu.matmul %8, %66, %cst_41 {dimension_numbers = #tpu.dot_dimension_numbers<[2], [1], [1], [2], [0, 0, 0, 1, 1, 2], [0], [0]>} : vector<2x8x32xf32>, vector<2x32x8xf32>, vector<2x8x8xf32> -> vector<2x8x8xf32>
    "tpu.trace_stop"() : () -> ()
    "tpu.trace_start"() <{level = 10 : i32, message = "bqk,bkh->bqh"}> : () -> ()
    %cst_42 = arith.constant dense<0.000000e+00> : vector<2x8x8xf32>
    %68 = tpu.matmul %62, %67, %cst_42 {dimension_numbers = #tpu.dot_dimension_numbers<[2], [1], [1], [2], [0, 0, 0, 1, 1, 2], [0], [0]>} : vector<2x8x8xf32>, vector<2x8x8xf32>, vector<2x8x8xf32> -> vector<2x8x8xf32>
    "tpu.trace_stop"() : () -> ()
    %c0_43 = arith.constant 0 : index
    %c0_44 = arith.constant 0 : index
    %c0_45 = arith.constant 0 : index
    %69 = vector.load %arg27[%c0_43, %c0_44, %c0_45] : memref<2x8x32xf32, #tpu.memory_space<vmem>>, vector<2x8x32xf32>
    %c0_46 = arith.constant 0 : index
    %c0_47 = arith.constant 0 : index
    %c0_48 = arith.constant 0 : index
    %c0_49 = arith.constant 0 : index
    %70 = vector.load %arg12[%c0_46, %c0_47, %c0_48, %c0_49] : memref<1x1x8x32xf32, #tpu.memory_space<vmem>>, vector<1x1x8x32xf32>
    %71 = vector.shape_cast %70 : vector<1x1x8x32xf32> to vector<8x32xf32>
    %72 = vector.shape_cast %71 : vector<8x32xf32> to vector<1x8x32xf32>
    %73 = vector.broadcast %72 : vector<1x8x32xf32> to vector<2x8x32xf32>
    "tpu.trace_start"() <{level = 10 : i32, message = "bqh,bhc->bqc"}> : () -> ()
    %cst_50 = arith.constant dense<0.000000e+00> : vector<2x8x32xf32>
    %74 = tpu.matmul %68, %73, %cst_50 {dimension_numbers = #tpu.dot_dimension_numbers<[2], [1], [1], [2], [0, 0, 0, 1, 1, 2], [0], [0]>} : vector<2x8x8xf32>, vector<2x8x32xf32>, vector<2x8x32xf32> -> vector<2x8x32xf32>
    "tpu.trace_stop"() : () -> ()
    %75 = arith.addf %69, %74 : vector<2x8x32xf32>
    %c0_51 = arith.constant 0 : index
    %c0_52 = arith.constant 0 : index
    %c0_53 = arith.constant 0 : index
    %76 = vector.load %arg27[%c0_51, %c0_52, %c0_53] : memref<2x8x32xf32, #tpu.memory_space<vmem>>, vector<2x8x32xf32>
    tpu.vector_store %arg27[%c0_51, %c0_52, %c0_53], %75 {strides = array<i32>} : memref<2x8x32xf32, #tpu.memory_space<vmem>>, vector<2x8x32xf32>,
    %c3_i32 = arith.constant 3 : i32
    %77 = arith.cmpi eq, %arg1, %c3_i32 : i32
    %78 = arith.extui %77 : i1 to i32
    %c0_i32_54 = arith.constant 0 : i32
    %79 = arith.cmpi ne, %78, %c0_i32_54 : i32
    scf.if %79 {
      %c0_57 = arith.constant 0 : index
      %c0_58 = arith.constant 0 : index
      %c0_59 = arith.constant 0 : index
      %85 = vector.load %arg27[%c0_57, %c0_58, %c0_59] : memref<2x8x32xf32, #tpu.memory_space<vmem>>, vector<2x8x32xf32>
      %c0_60 = arith.constant 0 : index
      %c0_61 = arith.constant 0 : index
      %c0_62 = arith.constant 0 : index
      %86 = vector.load %arg14[%c0_60, %c0_61, %c0_62] : memref<1x1x32xf32, #tpu.memory_space<vmem>>, vector<1x1x32xf32>
      %87 = vector.shape_cast %86 : vector<1x1x32xf32> to vector<1x32xf32>
      %c0_63 = arith.constant 0 : index
      %c0_64 = arith.constant 0 : index
      %c0_65 = arith.constant 0 : index
      %88 = vector.load %arg15[%c0_63, %c0_64, %c0_65] : memref<1x1x32xf32, #tpu.memory_space<vmem>>, vector<1x1x32xf32>
      %89 = vector.shape_cast %88 : vector<1x1x32xf32> to vector<1x32xf32>
      %cst_66 = arith.constant dense<0.000000e+00> : vector<2x8xf32>
      %90 = vector.multi_reduction <add>, %85, %cst_66 [2] : vector<2x8x32xf32> to vector<2x8xf32>
      %91 = vector.shape_cast %90 : vector<2x8xf32> to vector<2x8x1xf32>
      %cst_67 = arith.constant 3.200000e+01 : f32
      %92 = vector.broadcast %cst_67 : f32 to vector<2x8x1xf32>
      %93 = arith.divf %91, %92 : vector<2x8x1xf32>
      %94 = vector.broadcast %93 : vector<2x8x1xf32> to vector<2x8x32xf32>
      %95 = arith.subf %85, %94 : vector<2x8x32xf32>
      %96 = arith.mulf %95, %95 : vector<2x8x32xf32>
      %cst_68 = arith.constant dense<0.000000e+00> : vector<2x8xf32>
      %97 = vector.multi_reduction <add>, %96, %cst_68 [2] : vector<2x8x32xf32> to vector<2x8xf32>
      %98 = vector.shape_cast %97 : vector<2x8xf32> to vector<2x8x1xf32>
      %cst_69 = arith.constant 3.200000e+01 : f32
      %99 = vector.broadcast %cst_69 : f32 to vector<2x8x1xf32>
      %100 = arith.divf %98, %99 : vector<2x8x1xf32>
      %101 = vector.broadcast %93 : vector<2x8x1xf32> to vector<2x8x32xf32>
      %102 = arith.subf %85, %101 : vector<2x8x32xf32>
      %cst_70 = arith.constant 9.99999974E-6 : f32
      %103 = vector.broadcast %cst_70 : f32 to vector<2x8x1xf32>
      %104 = arith.addf %100, %103 : vector<2x8x1xf32>
      %105 = math.rsqrt %104 : vector<2x8x1xf32>
      %106 = vector.broadcast %105 : vector<2x8x1xf32> to vector<2x8x32xf32>
      %107 = arith.mulf %102, %106 : vector<2x8x32xf32>
      %108 = vector.shape_cast %87 : vector<1x32xf32> to vector<1x1x32xf32>
      %109 = vector.broadcast %108 : vector<1x1x32xf32> to vector<2x8x32xf32>
      %110 = arith.mulf %107, %109 : vector<2x8x32xf32>
      %111 = vector.shape_cast %89 : vector<1x32xf32> to vector<1x1x32xf32>
      %112 = vector.broadcast %111 : vector<1x1x32xf32> to vector<2x8x32xf32>
      %113 = arith.addf %110, %112 : vector<2x8x32xf32>
      %c0_71 = arith.constant 0 : index
      %c0_72 = arith.constant 0 : index
      %c0_73 = arith.constant 0 : index
      %114 = vector.load %arg16[%c0_71, %c0_72, %c0_73] : memref<1x32x64xf32, #tpu.memory_space<vmem>>, vector<1x32x64xf32>
      %115 = vector.shape_cast %114 : vector<1x32x64xf32> to vector<32x64xf32>
      %116 = vector.shape_cast %115 : vector<32x64xf32> to vector<1x32x64xf32>
      %117 = vector.broadcast %116 : vector<1x32x64xf32> to vector<2x32x64xf32>
      "tpu.trace_start"() <{level = 10 : i32, message = "btc,bch->bth"}> : () -> ()
      %cst_74 = arith.constant dense<0.000000e+00> : vector<2x8x64xf32>
      %118 = tpu.matmul %113, %117, %cst_74 {dimension_numbers = #tpu.dot_dimension_numbers<[2], [1], [1], [2], [0, 0, 0, 1, 1, 2], [0], [0]>} : vector<2x8x32xf32>, vector<2x32x64xf32>, vector<2x8x64xf32> -> vector<2x8x64xf32>
      "tpu.trace_stop"() : () -> ()
      %c0_75 = arith.constant 0 : index
      %c0_76 = arith.constant 0 : index
      %c0_77 = arith.constant 0 : index
      %119 = vector.load %arg17[%c0_75, %c0_76, %c0_77] : memref<1x1x64xf32, #tpu.memory_space<vmem>>, vector<1x1x64xf32>
      %120 = vector.shape_cast %119 : vector<1x1x64xf32> to vector<1x64xf32>
      %121 = vector.shape_cast %120 : vector<1x64xf32> to vector<1x1x64xf32>
      %122 = vector.broadcast %121 : vector<1x1x64xf32> to vector<2x8x64xf32>
      %123 = arith.addf %118, %122 : vector<2x8x64xf32>
      %cst_78 = arith.constant 0.000000e+00 : f32
      %124 = vector.broadcast %cst_78 : f32 to vector<2x8x64xf32>
      %125 = arith.maximumf %123, %124 : vector<2x8x64xf32>
      %c0_79 = arith.constant 0 : index
      %c0_80 = arith.constant 0 : index
      %c0_81 = arith.constant 0 : index
      %126 = vector.load %arg18[%c0_79, %c0_80, %c0_81] : memref<1x64x32xf32, #tpu.memory_space<vmem>>, vector<1x64x32xf32>
      %127 = vector.shape_cast %126 : vector<1x64x32xf32> to vector<64x32xf32>
      %128 = vector.shape_cast %127 : vector<64x32xf32> to vector<1x64x32xf32>
      %129 = vector.broadcast %128 : vector<1x64x32xf32> to vector<2x64x32xf32>
      "tpu.trace_start"() <{level = 10 : i32, message = "bth,bhc->btc"}> : () -> ()
      %cst_82 = arith.constant dense<0.000000e+00> : vector<2x8x32xf32>
      %130 = tpu.matmul %125, %129, %cst_82 {dimension_numbers = #tpu.dot_dimension_numbers<[2], [1], [1], [2], [0, 0, 0, 1, 1, 2], [0], [0]>} : vector<2x8x64xf32>, vector<2x64x32xf32>, vector<2x8x32xf32> -> vector<2x8x32xf32>
      "tpu.trace_stop"() : () -> ()
      %c0_83 = arith.constant 0 : index
      %c0_84 = arith.constant 0 : index
      %c0_85 = arith.constant 0 : index
      %131 = vector.load %arg19[%c0_83, %c0_84, %c0_85] : memref<1x1x32xf32, #tpu.memory_space<vmem>>, vector<1x1x32xf32>
      %132 = vector.shape_cast %131 : vector<1x1x32xf32> to vector<1x32xf32>
      %133 = vector.shape_cast %132 : vector<1x32xf32> to vector<1x1x32xf32>
      %134 = vector.broadcast %133 : vector<1x1x32xf32> to vector<2x8x32xf32>
      %135 = arith.addf %130, %134 : vector<2x8x32xf32>
      %136 = arith.addf %85, %135 : vector<2x8x32xf32>
      %c0_86 = arith.constant 0 : index
      %c0_87 = arith.constant 0 : index
      %c0_88 = arith.constant 0 : index
      %137 = vector.load %arg25[%c0_86, %c0_87, %c0_88] : memref<2x8x32xf32, #tpu.memory_space<vmem>>, vector<2x8x32xf32>
      tpu.vector_store %arg25[%c0_86, %c0_87, %c0_88], %136 {strides = array<i32>} : memref<2x8x32xf32, #tpu.memory_space<vmem>>, vector<2x8x32xf32>,
    } else {
    }
    %c1_i32 = arith.constant 1 : i32
    %80 = arith.cmpi eq, %arg0, %c1_i32 : i32
    %c3_i32_55 = arith.constant 3 : i32
    %81 = arith.cmpi eq, %arg1, %c3_i32_55 : i32
    %82 = arith.andi %80, %81 : i1
    %83 = arith.extui %82 : i1 to i32
    %c0_i32_56 = arith.constant 0 : i32
    %84 = arith.cmpi ne, %83, %c0_i32_56 : i32
    scf.if %84 {
      %c0_57 = arith.constant 0 : index
      %c0_58 = arith.constant 0 : index
      %c0_59 = arith.constant 0 : index
      %85 = vector.load %arg25[%c0_57, %c0_58, %c0_59] : memref<2x8x32xf32, #tpu.memory_space<vmem>>, vector<2x8x32xf32>
      %c0_60 = arith.constant 0 : index
      %c0_61 = arith.constant 0 : index
      %86 = vector.load %arg20[%c0_60, %c0_61] : memref<1x32xf32, #tpu.memory_space<vmem>>, vector<1x32xf32>
      %c0_62 = arith.constant 0 : index
      %c0_63 = arith.constant 0 : index
      %87 = vector.load %arg21[%c0_62, %c0_63] : memref<1x32xf32, #tpu.memory_space<vmem>>, vector<1x32xf32>
      %cst_64 = arith.constant dense<0.000000e+00> : vector<2x8xf32>
      %88 = vector.multi_reduction <add>, %85, %cst_64 [2] : vector<2x8x32xf32> to vector<2x8xf32>
      %89 = vector.shape_cast %88 : vector<2x8xf32> to vector<2x8x1xf32>
      %cst_65 = arith.constant 3.200000e+01 : f32
      %90 = vector.broadcast %cst_65 : f32 to vector<2x8x1xf32>
      %91 = arith.divf %89, %90 : vector<2x8x1xf32>
      %92 = vector.broadcast %91 : vector<2x8x1xf32> to vector<2x8x32xf32>
      %93 = arith.subf %85, %92 : vector<2x8x32xf32>
      %94 = arith.mulf %93, %93 : vector<2x8x32xf32>
      %cst_66 = arith.constant dense<0.000000e+00> : vector<2x8xf32>
      %95 = vector.multi_reduction <add>, %94, %cst_66 [2] : vector<2x8x32xf32> to vector<2x8xf32>
      %96 = vector.shape_cast %95 : vector<2x8xf32> to vector<2x8x1xf32>
      %cst_67 = arith.constant 3.200000e+01 : f32
      %97 = vector.broadcast %cst_67 : f32 to vector<2x8x1xf32>
      %98 = arith.divf %96, %97 : vector<2x8x1xf32>
      %99 = vector.broadcast %91 : vector<2x8x1xf32> to vector<2x8x32xf32>
      %100 = arith.subf %85, %99 : vector<2x8x32xf32>
      %cst_68 = arith.constant 9.99999974E-6 : f32
      %101 = vector.broadcast %cst_68 : f32 to vector<2x8x1xf32>
      %102 = arith.addf %98, %101 : vector<2x8x1xf32>
      %103 = math.rsqrt %102 : vector<2x8x1xf32>
      %104 = vector.broadcast %103 : vector<2x8x1xf32> to vector<2x8x32xf32>
      %105 = arith.mulf %100, %104 : vector<2x8x32xf32>
      %106 = vector.shape_cast %86 : vector<1x32xf32> to vector<1x1x32xf32>
      %107 = vector.broadcast %106 : vector<1x1x32xf32> to vector<2x8x32xf32>
      %108 = arith.mulf %105, %107 : vector<2x8x32xf32>
      %109 = vector.shape_cast %87 : vector<1x32xf32> to vector<1x1x32xf32>
      %110 = vector.broadcast %109 : vector<1x1x32xf32> to vector<2x8x32xf32>
      %111 = arith.addf %108, %110 : vector<2x8x32xf32>
      %c0_69 = arith.constant 0 : index
      %c0_70 = arith.constant 0 : index
      %112 = vector.load %arg22[%c0_69, %c0_70] : memref<32x128xf32, #tpu.memory_space<vmem>>, vector<32x128xf32>
      %113 = vector.shape_cast %112 : vector<32x128xf32> to vector<1x32x128xf32>
      %114 = vector.broadcast %113 : vector<1x32x128xf32> to vector<2x32x128xf32>
      "tpu.trace_start"() <{level = 10 : i32, message = "btc,bcv->btv"}> : () -> ()
      %cst_71 = arith.constant dense<0.000000e+00> : vector<2x8x128xf32>
      %115 = tpu.matmul %111, %114, %cst_71 {dimension_numbers = #tpu.dot_dimension_numbers<[2], [1], [1], [2], [0, 0, 0, 1, 1, 2], [0], [0]>} : vector<2x8x32xf32>, vector<2x32x128xf32>, vector<2x8x128xf32> -> vector<2x8x128xf32>
      "tpu.trace_stop"() : () -> ()
      %c0_72 = arith.constant 0 : index
      %c0_73 = arith.constant 0 : index
      %116 = vector.load %arg23[%c0_72, %c0_73] : memref<1x128xf32, #tpu.memory_space<vmem>>, vector<1x128xf32>
      %117 = vector.shape_cast %116 : vector<1x128xf32> to vector<1x1x128xf32>
      %118 = vector.broadcast %117 : vector<1x1x128xf32> to vector<2x8x128xf32>
      %119 = arith.addf %115, %118 : vector<2x8x128xf32>
      %c0_74 = arith.constant 0 : index
      %c0_75 = arith.constant 0 : index
      %c0_76 = arith.constant 0 : index
      %120 = vector.load %arg24[%c0_74, %c0_75, %c0_76] : memref<2x8x128xf32, #tpu.memory_space<vmem>>, vector<2x8x128xf32>
      tpu.vector_store %arg24[%c0_74, %c0_75, %c0_76], %119 {strides = array<i32>} : memref<2x8x128xf32, #tpu.memory_space<vmem>>, vector<2x8x128xf32>,
    } else {
    }
    return
  }
  func.func @transform_0(%arg0: i32, %arg1: i32) -> (i32, i32, i32) {
    %c0_i32 = arith.constant 0 : i32
    %c0_i32_0 = arith.constant 0 : i32
    %c0_i32_1 = arith.constant 0 : i32
    %c0_i32_2 = arith.constant 0 : i32
    return %c0_i32, %c0_i32_0, %c0_i32_1 : i32, i32, i32
  }
  func.func @transform_1(%arg0: i32, %arg1: i32) -> (i32, i32, i32) {
    %c0_i32 = arith.constant 0 : i32
    %c0_i32_0 = arith.constant 0 : i32
    %c0_i32_1 = arith.constant 0 : i32
    return %arg0, %c0_i32, %c0_i32_0 : i32, i32, i32
  }
  func.func @transform_2(%arg0: i32, %arg1: i32) -> (i32, i32, i32) {
    %c0_i32 = arith.constant 0 : i32
    %c0_i32_0 = arith.constant 0 : i32
    %c0_i32_1 = arith.constant 0 : i32
    return %arg0, %c0_i32, %c0_i32_0 : i32, i32, i32
  }
  func.func @transform_3(%arg0: i32, %arg1: i32) -> (i32, i32, i32, i32) {
    %c0_i32 = arith.constant 0 : i32
    %c0_i32_0 = arith.constant 0 : i32
    %c0_i32_1 = arith.constant 0 : i32
    return %arg0, %arg1, %c0_i32, %c0_i32_0 : i32, i32, i32, i32
  }
  func.func @transform_4(%arg0: i32, %arg1: i32) -> (i32, i32, i32, i32) {
    %c0_i32 = arith.constant 0 : i32
    %c0_i32_0 = arith.constant 0 : i32
    %c0_i32_1 = arith.constant 0 : i32
    return %arg0, %arg1, %c0_i32, %c0_i32_0 : i32, i32, i32, i32
  }
  func.func @transform_5(%arg0: i32, %arg1: i32) -> (i32, i32, i32, i32) {
    %c0_i32 = arith.constant 0 : i32
    %c0_i32_0 = arith.constant 0 : i32
    %c0_i32_1 = arith.constant 0 : i32
    return %arg0, %arg1, %c0_i32, %c0_i32_0 : i32, i32, i32, i32
  }
  func.func @transform_6(%arg0: i32, %arg1: i32) -> (i32, i32, i32, i32) {
    %c0_i32 = arith.constant 0 : i32
    %c0_i32_0 = arith.constant 0 : i32
    %c0_i32_1 = arith.constant 0 : i32
    return %arg0, %arg1, %c0_i32, %c0_i32_0 : i32, i32, i32, i32
  }
  func.func @transform_7(%arg0: i32, %arg1: i32) -> (i32, i32, i32, i32) {
    %c0_i32 = arith.constant 0 : i32
    %c0_i32_0 = arith.constant 0 : i32
    %c0_i32_1 = arith.constant 0 : i32
    return %arg0, %arg1, %c0_i32, %c0_i32_0 : i32, i32, i32, i32
  }
  func.func @transform_8(%arg0: i32, %arg1: i32) -> (i32, i32, i32, i32) {
    %c0_i32 = arith.constant 0 : i32
    %c0_i32_0 = arith.constant 0 : i32
    %c0_i32_1 = arith.constant 0 : i32
    return %arg0, %arg1, %c0_i32, %c0_i32_0 : i32, i32, i32, i32
  }
  func.func @transform_9(%arg0: i32, %arg1: i32) -> (i32, i32, i32, i32) {
    %c0_i32 = arith.constant 0 : i32
    %c0_i32_0 = arith.constant 0 : i32
    %c0_i32_1 = arith.constant 0 : i32
    return %arg0, %arg1, %c0_i32, %c0_i32_0 : i32, i32, i32, i32
  }
  func.func @transform_10(%arg0: i32, %arg1: i32) -> (i32, i32, i32, i32) {
    %c0_i32 = arith.constant 0 : i32
    %c0_i32_0 = arith.constant 0 : i32
    %c0_i32_1 = arith.constant 0 : i32
    return %arg0, %arg1, %c0_i32, %c0_i32_0 : i32, i32, i32, i32
  }
  func.func @transform_11(%arg0: i32, %arg1: i32) -> (i32, i32, i32) {
    %c0_i32 = arith.constant 0 : i32
    %c0_i32_0 = arith.constant 0 : i32
    %c0_i32_1 = arith.constant 0 : i32
    return %arg0, %c0_i32, %c0_i32_0 : i32, i32, i32
  }
  func.func @transform_12(%arg0: i32, %arg1: i32) -> (i32, i32, i32) {
    %c0_i32 = arith.constant 0 : i32
    %c0_i32_0 = arith.constant 0 : i32
    %c0_i32_1 = arith.constant 0 : i32
    return %arg0, %c0_i32, %c0_i32_0 : i32, i32, i32
  }
  func.func @transform_13(%arg0: i32, %arg1: i32) -> (i32, i32, i32) {
    %c0_i32 = arith.constant 0 : i32
    %c0_i32_0 = arith.constant 0 : i32
    %c0_i32_1 = arith.constant 0 : i32
    return %arg0, %c0_i32, %c0_i32_0 : i32, i32, i32
  }
  func.func @transform_14(%arg0: i32, %arg1: i32) -> (i32, i32, i32) {
    %c0_i32 = arith.constant 0 : i32
    %c0_i32_0 = arith.constant 0 : i32
    %c0_i32_1 = arith.constant 0 : i32
    return %arg0, %c0_i32, %c0_i32_0 : i32, i32, i32
  }
  func.func @transform_15(%arg0: i32, %arg1: i32) -> (i32, i32, i32) {
    %c0_i32 = arith.constant 0 : i32
    %c0_i32_0 = arith.constant 0 : i32
    %c0_i32_1 = arith.constant 0 : i32
    return %arg0, %c0_i32, %c0_i32_0 : i32, i32, i32
  }
  func.func @transform_16(%arg0: i32, %arg1: i32) -> (i32, i32, i32) {
    %c0_i32 = arith.constant 0 : i32
    %c0_i32_0 = arith.constant 0 : i32
    %c0_i32_1 = arith.constant 0 : i32
    return %arg0, %c0_i32, %c0_i32_0 : i32, i32, i32
  }
  func.func @transform_17(%arg0: i32, %arg1: i32) -> (i32, i32, i32) {
    %c0_i32 = arith.constant 0 : i32
    %c0_i32_0 = arith.constant 0 : i32
    %c0_i32_1 = arith.constant 0 : i32
    return %arg0, %c0_i32, %c0_i32_0 : i32, i32, i32
  }
  func.func @transform_18(%arg0: i32, %arg1: i32) -> (i32, i32) {
    %c0_i32 = arith.constant 0 : i32
    %c0_i32_0 = arith.constant 0 : i32
    %c0_i32_1 = arith.constant 0 : i32
    return %c0_i32, %c0_i32_0 : i32, i32
  }
  func.func @transform_19(%arg0: i32, %arg1: i32) -> (i32, i32) {
    %c0_i32 = arith.constant 0 : i32
    %c0_i32_0 = arith.constant 0 : i32
    %c0_i32_1 = arith.constant 0 : i32
    return %c0_i32, %c0_i32_0 : i32, i32
  }
  func.func @transform_20(%arg0: i32, %arg1: i32) -> (i32, i32) {
    %c0_i32 = arith.constant 0 : i32
    %c0_i32_0 = arith.constant 0 : i32
    %c0_i32_1 = arith.constant 0 : i32
    return %c0_i32, %c0_i32_0 : i32, i32
  }
  func.func @transform_21(%arg0: i32, %arg1: i32) -> (i32, i32) {
    %c0_i32 = arith.constant 0 : i32
    %c0_i32_0 = arith.constant 0 : i32
    %c0_i32_1 = arith.constant 0 : i32
    return %c0_i32, %c0_i32_0 : i32, i32
  }
  func.func @transform_22(%arg0: i32, %arg1: i32) -> (i32, i32, i32) {
    %c0_i32 = arith.constant 0 : i32
    %c0_i32_0 = arith.constant 0 : i32
    %c0_i32_1 = arith.constant 0 : i32
    %c0_i32_2 = arith.constant 0 : i32
    return %c0_i32, %c0_i32_0, %c0_i32_1 : i32, i32, i32
  }
}

</mosaic_0001>

<llo_original>
// kernel: _lambda_.1
$region0: #{_lambda_.1}
  #allocation0 [shape = 'u32[]', space=smem, size = 0x4, offset = 0x4, fixed_abs, tag = 'smem constant byte address 0x4 - core index']
  #allocation1 [shape = 'u32[144,128]{1,0:T(1,128)}', space=vmem, size = 0x12000, scoped, tag = 'internal scratch']
  #allocation2 [shape = 'f32[2,8,32]{2,1,0:T(8,128)}', space=vmem, size = 0x2000, scoped, tag = 'scratch operand']
  #allocation3 [shape = 'f32[2,8,32]{2,1,0:T(8,128)}', space=vmem, size = 0x2000, scoped, tag = 'scratch operand']
  #allocation4 [shape = 'f32[2,8,32]{2,1,0:T(8,128)}', space=vmem, size = 0x2000, scoped, tag = 'scratch operand']
  %s0 = inlined_call_operand.vmem [shape: f32[2,8,32], index: 0, kind: input, shape index: {}]
  %s1 = inlined_call_operand.vmem [shape: f32[2,1,32], index: 1, kind: input, shape index: {}]
  %s2 = inlined_call_operand.hbm [shape: f32[2,1,32], index: 2, kind: input, shape index: {}]
  %s3 = inlined_call_operand.vmem [shape: f32[2,4,8,32], index: 3, kind: input, shape index: {}]
  %s4 = inlined_call_operand.vmem [shape: f32[2,4,8,32], index: 4, kind: input, shape index: {}]
  %s5 = inlined_call_operand.vmem [shape: f32[2,4,32,32], index: 5, kind: input, shape index: {}]
  %s6 = inlined_call_operand.vmem [shape: f32[2,4,32,32], index: 6, kind: input, shape index: {}]
  %s7 = inlined_call_operand.hbm [shape: f32[2,4,1,32], index: 7, kind: input, shape index: {}]
  %s8 = inlined_call_operand.vmem [shape: f32[2,4,1,32], index: 8, kind: input, shape index: {}]
  %s9 = inlined_call_operand.vmem [shape: f32[2,4,32,8], index: 9, kind: input, shape index: {}]
  %s10 = inlined_call_operand.vmem [shape: f32[2,4,8,32], index: 10, kind: input, shape index: {}]
  %s11 = inlined_call_operand.hbm [shape: f32[2,1,32], index: 11, kind: input, shape index: {}]
  %s12 = inlined_call_operand.hbm [shape: f32[2,1,32], index: 12, kind: input, shape index: {}]
  %s13 = inlined_call_operand.hbm [shape: f32[2,1,32], index: 13, kind: input, shape index: {}]
  %s14 = inlined_call_operand.hbm [shape: f32[2,32,64], index: 14, kind: input, shape index: {}]
  %s15 = inlined_call_operand.hbm [shape: f32[2,1,64], index: 15, kind: input, shape index: {}]
  %s16 = inlined_call_operand.vmem [shape: f32[2,64,32], index: 16, kind: input, shape index: {}]
  %s17 = inlined_call_operand.hbm [shape: f32[2,1,32], index: 17, kind: input, shape index: {}]
  %s18 = inlined_call_operand.vmem [shape: f32[1,32], index: 18, kind: input, shape index: {}]
  %s19 = inlined_call_operand.hbm [shape: f32[1,32], index: 19, kind: input, shape index: {}]
  %s20 = inlined_call_operand.hbm [shape: f32[32,128], index: 20, kind: input, shape index: {}]
  %s21 = inlined_call_operand.hbm [shape: f32[1,128], index: 21, kind: input, shape index: {}]
  %s22 = inlined_call_operand.hbm [shape: f32[2,8,128], index: 22, kind: output, shape index: {}]
  %s23 = sld [smem:[#allocation0]]
  $region181: #{_lambda_.1} parent=0
    _
  %s25 = ssub.s32 1, %s23
  %s26 = scalar_select 0, %s25, %s23
  $region1: #{_lambda_.1} parent=0
    #allocation5 [shape = 'u8[1024]{0}', space=vmem, size = 0x400, scoped, tag = 'input window, operand 2']
    #allocation6 [shape = 's32[2]{0}', space=sflag, size = 0x8, scoped, tag = 'scoped memory for _lambda_.1']
    #allocation7 [shape = 's32[2]{0}', space=sflag, size = 0x8, scoped, tag = 'scoped memory for _lambda_.1']
    #allocation8 [shape = 'u8[1024]{0}', space=vmem, size = 0x400, scoped, tag = 'input window, operand 7']
    #allocation9 [shape = 's32[2]{0}', space=sflag, size = 0x8, scoped, tag = 'scoped memory for _lambda_.1']
    #allocation10 [shape = 'u8[1024]{0}', space=vmem, size = 0x400, scoped, tag = 'input window, operand 11']
    #allocation11 [shape = 'u8[1024]{0}', space=vmem, size = 0x400, scoped, tag = 'input window, operand 12']
    #allocation12 [shape = 's32[2]{0}', space=sflag, size = 0x8, scoped, tag = 'scoped memory for _lambda_.1']
    #allocation13 [shape = 'u8[1024]{0}', space=vmem, size = 0x400, scoped, tag = 'input window, operand 13']
    #allocation14 [shape = 'u8[32768]{0}', space=vmem, size = 0x8000, scoped, tag = 'input window, operand 14']
    #allocation15 [shape = 's32[2]{0}', space=sflag, size = 0x8, scoped, tag = 'scoped memory for _lambda_.1']
    #allocation16 [shape = 'u8[1024]{0}', space=vmem, size = 0x400, scoped, tag = 'input window, operand 15']
    #allocation17 [shape = 'u8[1024]{0}', space=vmem, size = 0x400, scoped, tag = 'input window, operand 17']
    #allocation18 [shape = 's32[2]{0}', space=sflag, size = 0x8, scoped, tag = 'scoped memory for _lambda_.1']
    #allocation19 [shape = 'u8[512]{0}', space=vmem, size = 0x400, scoped, tag = 'input window, operand 19, single buffered']
    #allocation20 [shape = 'u8[16384]{0}', space=vmem, size = 0x4000, scoped, tag = 'input window, operand 20, single buffered']
    #allocation21 [shape = 's32[1]{0}', space=sflag, size = 0x4, scoped, tag = 'scoped memory for _lambda_.1']
    #allocation22 [shape = 'u8[512]{0}', space=vmem, size = 0x400, scoped, tag = 'input window, operand 21, single buffered']
    #allocation23 [shape = 'u8[8192]{0}', space=vmem, size = 0x2000, scoped, tag = 'output window, operand 0, single buffered']
    %27 = vsyncpa [#allocation6], 0
    %s28 = scalar_lea.sflag [#allocation6], 1
    %29 = vsyncpa %s28, 0
    %30 = vsyncpa [#allocation9], 0
    %s31 = scalar_lea.sflag [#allocation9], 1
    %32 = vsyncpa %s31, 0
    %33 = vsyncpa [#allocation12], 0
    %s34 = scalar_lea.sflag [#allocation12], 1
    %35 = vsyncpa %s34, 0
    %36 = vsyncpa [#allocation15], 0
    %s37 = scalar_lea.sflag [#allocation15], 1
    %38 = vsyncpa %s37, 0
    %39 = vsyncpa [#allocation18], 0
    %s40 = scalar_lea.sflag [#allocation18], 1
    %41 = vsyncpa %s40, 0
    %42 = vsyncpa [#allocation21], 0
    %43 = vsyncpa [#allocation7], 0
    loop: start=0, step=1, limit=10
    $region2: #{_lambda_.1} parent=1 // loop_pre_header
      _
    $region3: #{_lambda_.1} parent=1 // loop_header
      %s45 = sphi 0, %s49
      %p46 = scmp.ge.s32.totalorder %s45, 10
      %s52 = sphi 0, %s64
      %s53 = sphi 0, %s60
      %s54 = sphi 0, %s52
      %s55 = sphi 0, %s53
      %s56 = sphi 0, %s54
      %s57 = sphi 0, %s55
      %s65 = sphi 0, %s65
      %s67 = sphi 0, %s65
      %s68 = sphi 0, %s67
      %s82 = sphi 0, %s68
      %s88 = sphi 0, %s90
      %s91 = sphi 0, %s88
      %s92 = sphi 0, %s91
      %s108 = sphi 0, %s92
      %s114 = sphi 0, %s116
      %s117 = sphi 0, %s114
      %s118 = sphi 0, %s117
      %s134 = sphi 0, %s118
      %s142 = sphi 0, %s144
      %s145 = sphi 0, %s142
      %s146 = sphi 0, %s145
      %s162 = sphi 0, %s146
      %s170 = sphi 0, %s172
      %s173 = sphi 0, %s170
      %s174 = sphi 0, %s173
      %s190 = sphi 0, %s174
      %s198 = sphi 0, %s200
      %s201 = sphi 0, %s198
      %s202 = sphi 0, %s201
      %s218 = sphi 0, %s202
      %s226 = sphi 0, %s228
      %s229 = sphi 0, %s226
      %s230 = sphi 0, %s229
      %s246 = sphi 0, %s230
      %s254 = sphi 0, %s256
      %s257 = sphi 0, %s254
      %s258 = sphi 0, %s257
      %s274 = sphi 0, %s258
      %s282 = sphi 0, %s284
      %s285 = sphi 0, %s282
      %s286 = sphi 0, %s285
      %s302 = sphi 0, %s286
      %s310 = sphi 0, %s312
      %s313 = sphi 0, %s310
      %s314 = sphi 0, %s313
      %s330 = sphi 0, %s314
      %s338 = sphi 0, %s340
      %s341 = sphi 0, %s338
      %s342 = sphi 0, %s341
      %s358 = sphi 0, %s342
      %s364 = sphi 0, %s366
      %s367 = sphi 0, %s364
      %s368 = sphi 0, %s367
      %s384 = sphi 0, %s368
      %s390 = sphi 0, %s392
      %s393 = sphi 0, %s390
      %s394 = sphi 0, %s393
      %s410 = sphi 0, %s394
      %s416 = sphi 0, %s418
      %s419 = sphi 0, %s416
      %s420 = sphi 0, %s419
      %s436 = sphi 0, %s420
      %s442 = sphi 0, %s444
      %s445 = sphi 0, %s442
      %s446 = sphi 0, %s445
      %s462 = sphi 0, %s446
      %s468 = sphi 0, %s470
      %s471 = sphi 0, %s468
      %s472 = sphi 0, %s471
      %s488 = sphi 0, %s472
      %s494 = sphi 0, %s496
      %s497 = sphi 0, %s494
      %s498 = sphi 0, %s497
      %s514 = sphi 0, %s498
      %s520 = sphi 0, %s522
      %s523 = sphi 0, %s520
      %s524 = sphi 0, %s523
      %s540 = sphi 0, %s524
      %s544 = sphi 0, %s544
      %s546 = sphi 0, %s544
      %s547 = sphi 0, %s546
      %s561 = sphi 0, %s547
      %s565 = sphi 0, %s565
      %s567 = sphi 0, %s565
      %s568 = sphi 0, %s567
      %s582 = sphi 0, %s568
      %s586 = sphi 0, %s586
      %s588 = sphi 0, %s586
      %s589 = sphi 0, %s588
      %s603 = sphi 0, %s589
      %s607 = sphi 0, %s607
      %s609 = sphi 0, %s607
      %s610 = sphi 0, %s609
      %s624 = sphi 0, %s610
      %s628 = sphi 0, %s628
      %s630 = sphi 0, %s628
      %s631 = sphi 0, %s630
      %s645 = sphi 0, %s631
    $region4: #{_lambda_.1} parent=1 // loop_header_branch
      %48 = sbr.rel (%p46) target = $region8
    $region5: #{_lambda_.1} parent=1 // loop_body
      %s50 = ssub.s32 %s45, 1
      %s51 = ssub.s32 %s45, 2
      %s58 = sadd.s32 1, %s53
      %p59 = scmp.ge.s32.totalorder %s58, 4
      %s60 = scalar_select %p59, 0, %s58
      %s61 = sadd.s32 1, %s52
      %s62 = scalar_select %p59, %s61, %s52
      %p63 = scmp.ge.s32.totalorder %s62, 2
      %s64 = scalar_select %p63, 0, %s62
      %s66 = sadd.s32 %s65, 1
      %p69 = scmp.eq.s32.totalorder %s45, 7
      %p70 = scmp.ne.s32.totalorder %s65, %s67
      %p71 = scmp.eq.s32.totalorder %s45, 0
      %p72 = por %p70, %p71
      %p73 = scmp.ne.s32.totalorder %s65, %s67
      %p74 = scmp.eq.s32.totalorder %s50, 7
      %p75 = por %p73, %p74
      %p76 = scmp.ne.s32.totalorder %s67, %s68
      %p77 = scmp.eq.s32.totalorder %s50, 0
      %p78 = por %p76, %p77
      %p79 = scmp.ne.s32.totalorder %s67, %s68
      %p80 = scmp.eq.s32.totalorder %s51, 7
      %p81 = por %p79, %p80
      %p83 = scmp.ne.s32.totalorder %s68, %s82
      %p84 = scmp.eq.s32.totalorder %s51, 0
      %p85 = por %p83, %p84
      %s86 = ssub.s32 %s52, %s64
      %p87 = scmp.eq.s32.totalorder %s86, 0
      %s89 = sadd.s32 %s88, 1
      %s90 = scalar_select %p87, %s88, %s89
      %p93 = pneg %p87
      %p94 = scmp.eq.s32.totalorder %s45, 7
      %p95 = por %p93, %p94
      %p96 = scmp.ne.s32.totalorder %s88, %s91
      %p97 = scmp.eq.s32.totalorder %s45, 0
      %p98 = por %p96, %p97
      %p99 = scmp.ne.s32.totalorder %s88, %s91
      %p100 = scmp.eq.s32.totalorder %s50, 7
      %p101 = por %p99, %p100
      %p102 = scmp.ne.s32.totalorder %s91, %s92
      %p103 = scmp.eq.s32.totalorder %s50, 0
      %p104 = por %p102, %p103
      %p105 = scmp.ne.s32.totalorder %s91, %s92
      %p106 = scmp.eq.s32.totalorder %s51, 7
      %p107 = por %p105, %p106
      %p109 = scmp.ne.s32.totalorder %s92, %s108
      %p110 = scmp.eq.s32.totalorder %s51, 0
      %p111 = por %p109, %p110
      %s112 = ssub.s32 %s52, %s64
      %p113 = scmp.eq.s32.totalorder %s112, 0
      %s115 = sadd.s32 %s114, 1
      %s116 = scalar_select %p113, %s114, %s115
      %p119 = pneg %p113
      %p120 = scmp.eq.s32.totalorder %s45, 7
      %p121 = por %p119, %p120
      %p122 = scmp.ne.s32.totalorder %s114, %s117
      %p123 = scmp.eq.s32.totalorder %s45, 0
      %p124 = por %p122, %p123
      %p125 = scmp.ne.s32.totalorder %s114, %s117
      %p126 = scmp.eq.s32.totalorder %s50, 7
      %p127 = por %p125, %p126
      %p128 = scmp.ne.s32.totalorder %s117, %s118
      %p129 = scmp.eq.s32.totalorder %s50, 0
      %p130 = por %p128, %p129
      %p131 = scmp.ne.s32.totalorder %s117, %s118
      %p132 = scmp.eq.s32.totalorder %s51, 7
      %p133 = por %p131, %p132
      %p135 = scmp.ne.s32.totalorder %s118, %s134
      %p136 = scmp.eq.s32.totalorder %s51, 0
      %p137 = por %p135, %p136
      %s138 = ssub.s32 %s52, %s64
      %s139 = ssub.s32 %s53, %s60
      %s140 = sor.u32 %s138, %s139
      %p141 = scmp.eq.s32.totalorder %s140, 0
      %s143 = sadd.s32 %s142, 1
      %s144 = scalar_select %p141, %s142, %s143
      %p147 = pneg %p141
      %p148 = scmp.eq.s32.totalorder %s45, 7
      %p149 = por %p147, %p148
      %p150 = scmp.ne.s32.totalorder %s142, %s145
      %p151 = scmp.eq.s32.totalorder %s45, 0
      %p152 = por %p150, %p151
      %p153 = scmp.ne.s32.totalorder %s142, %s145
      %p154 = scmp.eq.s32.totalorder %s50, 7
      %p155 = por %p153, %p154
      %p156 = scmp.ne.s32.totalorder %s145, %s146
      %p157 = scmp.eq.s32.totalorder %s50, 0
      %p158 = por %p156, %p157
      %p159 = scmp.ne.s32.totalorder %s145, %s146
      %p160 = scmp.eq.s32.totalorder %s51, 7
      %p161 = por %p159, %p160
      %p163 = scmp.ne.s32.totalorder %s146, %s162
      %p164 = scmp.eq.s32.totalorder %s51, 0
      %p165 = por %p163, %p164
      %s166 = ssub.s32 %s52, %s64
      %s167 = ssub.s32 %s53, %s60
      %s168 = sor.u32 %s166, %s167
      %p169 = scmp.eq.s32.totalorder %s168, 0
      %s171 = sadd.s32 %s170, 1
      %s172 = scalar_select %p169, %s170, %s171
      %p175 = pneg %p169
      %p176 = scmp.eq.s32.totalorder %s45, 7
      %p177 = por %p175, %p176
      %p178 = scmp.ne.s32.totalorder %s170, %s173
      %p179 = scmp.eq.s32.totalorder %s45, 0
      %p180 = por %p178, %p179
      %p181 = scmp.ne.s32.totalorder %s170, %s173
      %p182 = scmp.eq.s32.totalorder %s50, 7
      %p183 = por %p181, %p182
      %p184 = scmp.ne.s32.totalorder %s173, %s174
      %p185 = scmp.eq.s32.totalorder %s50, 0
      %p186 = por %p184, %p185
      %p187 = scmp.ne.s32.totalorder %s173, %s174
      %p188 = scmp.eq.s32.totalorder %s51, 7
      %p189 = por %p187, %p188
      %p191 = scmp.ne.s32.totalorder %s174, %s190
      %p192 = scmp.eq.s32.totalorder %s51, 0
      %p193 = por %p191, %p192
      %s194 = ssub.s32 %s52, %s64
      %s195 = ssub.s32 %s53, %s60
      %s196 = sor.u32 %s194, %s195
      %p197 = scmp.eq.s32.totalorder %s196, 0
      %s199 = sadd.s32 %s198, 1
      %s200 = scalar_select %p197, %s198, %s199
      %p203 = pneg %p197
      %p204 = scmp.eq.s32.totalorder %s45, 7
      %p205 = por %p203, %p204
      %p206 = scmp.ne.s32.totalorder %s198, %s201
      %p207 = scmp.eq.s32.totalorder %s45, 0
      %p208 = por %p206, %p207
      %p209 = scmp.ne.s32.totalorder %s198, %s201
      %p210 = scmp.eq.s32.totalorder %s50, 7
      %p211 = por %p209, %p210
      %p212 = scmp.ne.s32.totalorder %s201, %s202
      %p213 = scmp.eq.s32.totalorder %s50, 0
      %p214 = por %p212, %p213
      %p215 = scmp.ne.s32.totalorder %s201, %s202
      %p216 = scmp.eq.s32.totalorder %s51, 7
      %p217 = por %p215, %p216
      %p219 = scmp.ne.s32.totalorder %s202, %s218
      %p220 = scmp.eq.s32.totalorder %s51, 0
      %p221 = por %p219, %p220
      %s222 = ssub.s32 %s52, %s64
      %s223 = ssub.s32 %s53, %s60
      %s224 = sor.u32 %s222, %s223
      %p225 = scmp.eq.s32.totalorder %s224, 0
      %s227 = sadd.s32 %s226, 1
      %s228 = scalar_select %p225, %s226, %s227
      %p231 = pneg %p225
      %p232 = scmp.eq.s32.totalorder %s45, 7
      %p233 = por %p231, %p232
      %p234 = scmp.ne.s32.totalorder %s226, %s229
      %p235 = scmp.eq.s32.totalorder %s45, 0
      %p236 = por %p234, %p235
      %p237 = scmp.ne.s32.totalorder %s226, %s229
      %p238 = scmp.eq.s32.totalorder %s50, 7
      %p239 = por %p237, %p238
      %p240 = scmp.ne.s32.totalorder %s229, %s230
      %p241 = scmp.eq.s32.totalorder %s50, 0
      %p242 = por %p240, %p241
      %p243 = scmp.ne.s32.totalorder %s229, %s230
      %p244 = scmp.eq.s32.totalorder %s51, 7
      %p245 = por %p243, %p244
      %p247 = scmp.ne.s32.totalorder %s230, %s246
      %p248 = scmp.eq.s32.totalorder %s51, 0
      %p249 = por %p247, %p248
      %s250 = ssub.s32 %s52, %s64
      %s251 = ssub.s32 %s53, %s60
      %s252 = sor.u32 %s250, %s251
      %p253 = scmp.eq.s32.totalorder %s252, 0
      %s255 = sadd.s32 %s254, 1
      %s256 = scalar_select %p253, %s254, %s255
      %p259 = pneg %p253
      %p260 = scmp.eq.s32.totalorder %s45, 7
      %p261 = por %p259, %p260
      %p262 = scmp.ne.s32.totalorder %s254, %s257
      %p263 = scmp.eq.s32.totalorder %s45, 0
      %p264 = por %p262, %p263
      %p265 = scmp.ne.s32.totalorder %s254, %s257
      %p266 = scmp.eq.s32.totalorder %s50, 7
      %p267 = por %p265, %p266
      %p268 = scmp.ne.s32.totalorder %s257, %s258
      %p269 = scmp.eq.s32.totalorder %s50, 0
      %p270 = por %p268, %p269
      %p271 = scmp.ne.s32.totalorder %s257, %s258
      %p272 = scmp.eq.s32.totalorder %s51, 7
      %p273 = por %p271, %p272
      %p275 = scmp.ne.s32.totalorder %s258, %s274
      %p276 = scmp.eq.s32.totalorder %s51, 0
      %p277 = por %p275, %p276
      %s278 = ssub.s32 %s52, %s64
      %s279 = ssub.s32 %s53, %s60
      %s280 = sor.u32 %s278, %s279
      %p281 = scmp.eq.s32.totalorder %s280, 0
      %s283 = sadd.s32 %s282, 1
      %s284 = scalar_select %p281, %s282, %s283
      %p287 = pneg %p281
      %p288 = scmp.eq.s32.totalorder %s45, 7
      %p289 = por %p287, %p288
      %p290 = scmp.ne.s32.totalorder %s282, %s285
      %p291 = scmp.eq.s32.totalorder %s45, 0
      %p292 = por %p290, %p291
      %p293 = scmp.ne.s32.totalorder %s282, %s285
      %p294 = scmp.eq.s32.totalorder %s50, 7
      %p295 = por %p293, %p294
      %p296 = scmp.ne.s32.totalorder %s285, %s286
      %p297 = scmp.eq.s32.totalorder %s50, 0
      %p298 = por %p296, %p297
      %p299 = scmp.ne.s32.totalorder %s285, %s286
      %p300 = scmp.eq.s32.totalorder %s51, 7
      %p301 = por %p299, %p300
      %p303 = scmp.ne.s32.totalorder %s286, %s302
      %p304 = scmp.eq.s32.totalorder %s51, 0
      %p305 = por %p303, %p304
      %s306 = ssub.s32 %s52, %s64
      %s307 = ssub.s32 %s53, %s60
      %s308 = sor.u32 %s306, %s307
      %p309 = scmp.eq.s32.totalorder %s308, 0
      %s311 = sadd.s32 %s310, 1
      %s312 = scalar_select %p309, %s310, %s311
      %p315 = pneg %p309
      %p316 = scmp.eq.s32.totalorder %s45, 7
      %p317 = por %p315, %p316
      %p318 = scmp.ne.s32.totalorder %s310, %s313
      %p319 = scmp.eq.s32.totalorder %s45, 0
      %p320 = por %p318, %p319
      %p321 = scmp.ne.s32.totalorder %s310, %s313
      %p322 = scmp.eq.s32.totalorder %s50, 7
      %p323 = por %p321, %p322
      %p324 = scmp.ne.s32.totalorder %s313, %s314
      %p325 = scmp.eq.s32.totalorder %s50, 0
      %p326 = por %p324, %p325
      %p327 = scmp.ne.s32.totalorder %s313, %s314
      %p328 = scmp.eq.s32.totalorder %s51, 7
      %p329 = por %p327, %p328
      %p331 = scmp.ne.s32.totalorder %s314, %s330
      %p332 = scmp.eq.s32.totalorder %s51, 0
      %p333 = por %p331, %p332
      %s334 = ssub.s32 %s52, %s64
      %s335 = ssub.s32 %s53, %s60
      %s336 = sor.u32 %s334, %s335
      %p337 = scmp.eq.s32.totalorder %s336, 0
      %s339 = sadd.s32 %s338, 1
      %s340 = scalar_select %p337, %s338, %s339
      %p343 = pneg %p337
      %p344 = scmp.eq.s32.totalorder %s45, 7
      %p345 = por %p343, %p344
      %p346 = scmp.ne.s32.totalorder %s338, %s341
      %p347 = scmp.eq.s32.totalorder %s45, 0
      %p348 = por %p346, %p347
      %p349 = scmp.ne.s32.totalorder %s338, %s341
      %p350 = scmp.eq.s32.totalorder %s50, 7
      %p351 = por %p349, %p350
      %p352 = scmp.ne.s32.totalorder %s341, %s342
      %p353 = scmp.eq.s32.totalorder %s50, 0
      %p354 = por %p352, %p353
      %p355 = scmp.ne.s32.totalorder %s341, %s342
      %p356 = scmp.eq.s32.totalorder %s51, 7
      %p357 = por %p355, %p356
      %p359 = scmp.ne.s32.totalorder %s342, %s358
      %p360 = scmp.eq.s32.totalorder %s51, 0
      %p361 = por %p359, %p360
      %s362 = ssub.s32 %s52, %s64
      %p363 = scmp.eq.s32.totalorder %s362, 0
      %s365 = sadd.s32 %s364, 1
      %s366 = scalar_select %p363, %s364, %s365
      %p369 = pneg %p363
      %p370 = scmp.eq.s32.totalorder %s45, 7
      %p371 = por %p369, %p370
      %p372 = scmp.ne.s32.totalorder %s364, %s367
      %p373 = scmp.eq.s32.totalorder %s45, 0
      %p374 = por %p372, %p373
      %p375 = scmp.ne.s32.totalorder %s364, %s367
      %p376 = scmp.eq.s32.totalorder %s50, 7
      %p377 = por %p375, %p376
      %p378 = scmp.ne.s32.totalorder %s367, %s368
      %p379 = scmp.eq.s32.totalorder %s50, 0
      %p380 = por %p378, %p379
      %p381 = scmp.ne.s32.totalorder %s367, %s368
      %p382 = scmp.eq.s32.totalorder %s51, 7
      %p383 = por %p381, %p382
      %p385 = scmp.ne.s32.totalorder %s368, %s384
      %p386 = scmp.eq.s32.totalorder %s51, 0
      %p387 = por %p385, %p386
      %s388 = ssub.s32 %s52, %s64
      %p389 = scmp.eq.s32.totalorder %s388, 0
      %s391 = sadd.s32 %s390, 1
      %s392 = scalar_select %p389, %s390, %s391
      %p395 = pneg %p389
      %p396 = scmp.eq.s32.totalorder %s45, 7
      %p397 = por %p395, %p396
      %p398 = scmp.ne.s32.totalorder %s390, %s393
      %p399 = scmp.eq.s32.totalorder %s45, 0
      %p400 = por %p398, %p399
      %p401 = scmp.ne.s32.totalorder %s390, %s393
      %p402 = scmp.eq.s32.totalorder %s50, 7
      %p403 = por %p401, %p402
      %p404 = scmp.ne.s32.totalorder %s393, %s394
      %p405 = scmp.eq.s32.totalorder %s50, 0
      %p406 = por %p404, %p405
      %p407 = scmp.ne.s32.totalorder %s393, %s394
      %p408 = scmp.eq.s32.totalorder %s51, 7
      %p409 = por %p407, %p408
      %p411 = scmp.ne.s32.totalorder %s394, %s410
      %p412 = scmp.eq.s32.totalorder %s51, 0
      %p413 = por %p411, %p412
      %s414 = ssub.s32 %s52, %s64
      %p415 = scmp.eq.s32.totalorder %s414, 0
      %s417 = sadd.s32 %s416, 1
      %s418 = scalar_select %p415, %s416, %s417
      %p421 = pneg %p415
      %p422 = scmp.eq.s32.totalorder %s45, 7
      %p423 = por %p421, %p422
      %p424 = scmp.ne.s32.totalorder %s416, %s419
      %p425 = scmp.eq.s32.totalorder %s45, 0
      %p426 = por %p424, %p425
      %p427 = scmp.ne.s32.totalorder %s416, %s419
      %p428 = scmp.eq.s32.totalorder %s50, 7
      %p429 = por %p427, %p428
      %p430 = scmp.ne.s32.totalorder %s419, %s420
      %p431 = scmp.eq.s32.totalorder %s50, 0
      %p432 = por %p430, %p431
      %p433 = scmp.ne.s32.totalorder %s419, %s420
      %p434 = scmp.eq.s32.totalorder %s51, 7
      %p435 = por %p433, %p434
      %p437 = scmp.ne.s32.totalorder %s420, %s436
      %p438 = scmp.eq.s32.totalorder %s51, 0
      %p439 = por %p437, %p438
      %s440 = ssub.s32 %s52, %s64
      %p441 = scmp.eq.s32.totalorder %s440, 0
      %s443 = sadd.s32 %s442, 1
      %s444 = scalar_select %p441, %s442, %s443
      %p447 = pneg %p441
      %p448 = scmp.eq.s32.totalorder %s45, 7
      %p449 = por %p447, %p448
      %p450 = scmp.ne.s32.totalorder %s442, %s445
      %p451 = scmp.eq.s32.totalorder %s45, 0
      %p452 = por %p450, %p451
      %p453 = scmp.ne.s32.totalorder %s442, %s445
      %p454 = scmp.eq.s32.totalorder %s50, 7
      %p455 = por %p453, %p454
      %p456 = scmp.ne.s32.totalorder %s445, %s446
      %p457 = scmp.eq.s32.totalorder %s50, 0
      %p458 = por %p456, %p457
      %p459 = scmp.ne.s32.totalorder %s445, %s446
      %p460 = scmp.eq.s32.totalorder %s51, 7
      %p461 = por %p459, %p460
      %p463 = scmp.ne.s32.totalorder %s446, %s462
      %p464 = scmp.eq.s32.totalorder %s51, 0
      %p465 = por %p463, %p464
      %s466 = ssub.s32 %s52, %s64
      %p467 = scmp.eq.s32.totalorder %s466, 0
      %s469 = sadd.s32 %s468, 1
      %s470 = scalar_select %p467, %s468, %s469
      %p473 = pneg %p467
      %p474 = scmp.eq.s32.totalorder %s45, 7
      %p475 = por %p473, %p474
      %p476 = scmp.ne.s32.totalorder %s468, %s471
      %p477 = scmp.eq.s32.totalorder %s45, 0
      %p478 = por %p476, %p477
      %p479 = scmp.ne.s32.totalorder %s468, %s471
      %p480 = scmp.eq.s32.totalorder %s50, 7
      %p481 = por %p479, %p480
      %p482 = scmp.ne.s32.totalorder %s471, %s472
      %p483 = scmp.eq.s32.totalorder %s50, 0
      %p484 = por %p482, %p483
      %p485 = scmp.ne.s32.totalorder %s471, %s472
      %p486 = scmp.eq.s32.totalorder %s51, 7
      %p487 = por %p485, %p486
      %p489 = scmp.ne.s32.totalorder %s472, %s488
      %p490 = scmp.eq.s32.totalorder %s51, 0
      %p491 = por %p489, %p490
      %s492 = ssub.s32 %s52, %s64
      %p493 = scmp.eq.s32.totalorder %s492, 0
      %s495 = sadd.s32 %s494, 1
      %s496 = scalar_select %p493, %s494, %s495
      %p499 = pneg %p493
      %p500 = scmp.eq.s32.totalorder %s45, 7
      %p501 = por %p499, %p500
      %p502 = scmp.ne.s32.totalorder %s494, %s497
      %p503 = scmp.eq.s32.totalorder %s45, 0
      %p504 = por %p502, %p503
      %p505 = scmp.ne.s32.totalorder %s494, %s497
      %p506 = scmp.eq.s32.totalorder %s50, 7
      %p507 = por %p505, %p506
      %p508 = scmp.ne.s32.totalorder %s497, %s498
      %p509 = scmp.eq.s32.totalorder %s50, 0
      %p510 = por %p508, %p509
      %p511 = scmp.ne.s32.totalorder %s497, %s498
      %p512 = scmp.eq.s32.totalorder %s51, 7
      %p513 = por %p511, %p512
      %p515 = scmp.ne.s32.totalorder %s498, %s514
      %p516 = scmp.eq.s32.totalorder %s51, 0
      %p517 = por %p515, %p516
      %s518 = ssub.s32 %s52, %s64
      %p519 = scmp.eq.s32.totalorder %s518, 0
      %s521 = sadd.s32 %s520, 1
      %s522 = scalar_select %p519, %s520, %s521
      %p525 = pneg %p519
      %p526 = scmp.eq.s32.totalorder %s45, 7
      %p527 = por %p525, %p526
      %p528 = scmp.ne.s32.totalorder %s520, %s523
      %p529 = scmp.eq.s32.totalorder %s45, 0
      %p530 = por %p528, %p529
      %p531 = scmp.ne.s32.totalorder %s520, %s523
      %p532 = scmp.eq.s32.totalorder %s50, 7
      %p533 = por %p531, %p532
      %p534 = scmp.ne.s32.totalorder %s523, %s524
      %p535 = scmp.eq.s32.totalorder %s50, 0
      %p536 = por %p534, %p535
      %p537 = scmp.ne.s32.totalorder %s523, %s524
      %p538 = scmp.eq.s32.totalorder %s51, 7
      %p539 = por %p537, %p538
      %p541 = scmp.ne.s32.totalorder %s524, %s540
      %p542 = scmp.eq.s32.totalorder %s51, 0
      %p543 = por %p541, %p542
      %s545 = sadd.s32 %s544, 1
      %p548 = scmp.eq.s32.totalorder %s45, 7
      %p549 = scmp.ne.s32.totalorder %s544, %s546
      %p550 = scmp.eq.s32.totalorder %s45, 0
      %p551 = por %p549, %p550
      %p552 = scmp.ne.s32.totalorder %s544, %s546
      %p553 = scmp.eq.s32.totalorder %s50, 7
      %p554 = por %p552, %p553
      %p555 = scmp.ne.s32.totalorder %s546, %s547
      %p556 = scmp.eq.s32.totalorder %s50, 0
      %p557 = por %p555, %p556
      %p558 = scmp.ne.s32.totalorder %s546, %s547
      %p559 = scmp.eq.s32.totalorder %s51, 7
      %p560 = por %p558, %p559
      %p562 = scmp.ne.s32.totalorder %s547, %s561
      %p563 = scmp.eq.s32.totalorder %s51, 0
      %p564 = por %p562, %p563
      %s566 = sadd.s32 %s565, 1
      %p569 = scmp.eq.s32.totalorder %s45, 7
      %p570 = scmp.ne.s32.totalorder %s565, %s567
      %p571 = scmp.eq.s32.totalorder %s45, 0
      %p572 = por %p570, %p571
      %p573 = scmp.ne.s32.totalorder %s565, %s567
      %p574 = scmp.eq.s32.totalorder %s50, 7
      %p575 = por %p573, %p574
      %p576 = scmp.ne.s32.totalorder %s567, %s568
      %p577 = scmp.eq.s32.totalorder %s50, 0
      %p578 = por %p576, %p577
      %p579 = scmp.ne.s32.totalorder %s567, %s568
      %p580 = scmp.eq.s32.totalorder %s51, 7
      %p581 = por %p579, %p580
      %p583 = scmp.ne.s32.totalorder %s568, %s582
      %p584 = scmp.eq.s32.totalorder %s51, 0
      %p585 = por %p583, %p584
      %s587 = sadd.s32 %s586, 1
      %p590 = scmp.eq.s32.totalorder %s45, 7
      %p591 = scmp.ne.s32.totalorder %s586, %s588
      %p592 = scmp.eq.s32.totalorder %s45, 0
      %p593 = por %p591, %p592
      %p594 = scmp.ne.s32.totalorder %s586, %s588
      %p595 = scmp.eq.s32.totalorder %s50, 7
      %p596 = por %p594, %p595
      %p597 = scmp.ne.s32.totalorder %s588, %s589
      %p598 = scmp.eq.s32.totalorder %s50, 0
      %p599 = por %p597, %p598
      %p600 = scmp.ne.s32.totalorder %s588, %s589
      %p601 = scmp.eq.s32.totalorder %s51, 7
      %p602 = por %p600, %p601
      %p604 = scmp.ne.s32.totalorder %s589, %s603
      %p605 = scmp.eq.s32.totalorder %s51, 0
      %p606 = por %p604, %p605
      %s608 = sadd.s32 %s607, 1
      %p611 = scmp.eq.s32.totalorder %s45, 7
      %p612 = scmp.ne.s32.totalorder %s607, %s609
      %p613 = scmp.eq.s32.totalorder %s45, 0
      %p614 = por %p612, %p613
      %p615 = scmp.ne.s32.totalorder %s607, %s609
      %p616 = scmp.eq.s32.totalorder %s50, 7
      %p617 = por %p615, %p616
      %p618 = scmp.ne.s32.totalorder %s609, %s610
      %p619 = scmp.eq.s32.totalorder %s50, 0
      %p620 = por %p618, %p619
      %p621 = scmp.ne.s32.totalorder %s609, %s610
      %p622 = scmp.eq.s32.totalorder %s51, 7
      %p623 = por %p621, %p622
      %p625 = scmp.ne.s32.totalorder %s610, %s624
      %p626 = scmp.eq.s32.totalorder %s51, 0
      %p627 = por %p625, %p626
      %s629 = sadd.s32 %s628, 1
      %p632 = scmp.eq.s32.totalorder %s45, 7
      %p633 = scmp.ne.s32.totalorder %s628, %s630
      %p634 = scmp.eq.s32.totalorder %s45, 0
      %p635 = por %p633, %p634
      %p636 = scmp.ne.s32.totalorder %s628, %s630
      %p637 = scmp.eq.s32.totalorder %s50, 7
      %p638 = por %p636, %p637
      %p639 = scmp.ne.s32.totalorder %s630, %s631
      %p640 = scmp.eq.s32.totalorder %s50, 0
      %p641 = por %p639, %p640
      %p642 = scmp.ne.s32.totalorder %s630, %s631
      %p643 = scmp.eq.s32.totalorder %s51, 7
      %p644 = por %p642, %p643
      %p646 = scmp.ne.s32.totalorder %s631, %s645
      %p647 = scmp.eq.s32.totalorder %s51, 0
      %p648 = por %p646, %p647
      %p649 = scmp.le.s32.totalorder 1, %s45
      %p650 = scmp.lt.s32.totalorder %s45, 9
      %p651 = pnand %p649, %p650
      %p652 = pneg %p651
      // Predicated region
      $region9: #{_lambda_.1} parent=5 // pred_check
        _
      $region10: #{_lambda_.1} parent=5 // pred_check_branch
        %654 = sbr.rel (%p651) target = $region12
      $region11: #{_lambda_.1} parent=5 // pred_region
        %s655 = ssub.s32 %s45, 1
        // Predicated region
        $region13: #{_lambda_.1} parent=11 // pred_check
          %p656 = pneg %p78
        $region14: #{_lambda_.1} parent=11 // pred_check_branch
          %658 = sbr.rel (%p656) target = $region16
        $region15: #{_lambda_.1} parent=11 // pred_region
          _
        $region16: #{_lambda_.1} parent=11 // pred_fallthru
          _
        // Predicated region
        $region17: #{_lambda_.1} parent=11 // pred_check
          %p659 = pneg %p557
        $region18: #{_lambda_.1} parent=11 // pred_check_branch
          %661 = sbr.rel (%p659) target = $region20
        $region19: #{_lambda_.1} parent=11 // pred_region
          _
        $region20: #{_lambda_.1} parent=11 // pred_fallthru
          _
        // Predicated region
        $region21: #{_lambda_.1} parent=11 // pred_check
          %p662 = pneg %p578
        $region22: #{_lambda_.1} parent=11 // pred_check_branch
          %664 = sbr.rel (%p662) target = $region24
        $region23: #{_lambda_.1} parent=11 // pred_region
          %s666 = ssub.s32 16, 16
          %667 = vsyncadd [#allocation18], %s666
          %s669 = sshll.u32 [#allocation19], 4
          %s670 = int_to_ptr.vmem [resolvable:$true] %s669
          %672 = dma.hbm_to_vmem [thread:$0]  %s19, 16, %s670, [#allocation18]
        $region24: #{_lambda_.1} parent=11 // pred_fallthru
          _
        // Predicated region
        $region25: #{_lambda_.1} parent=11 // pred_check
          %p673 = pneg %p599
        $region26: #{_lambda_.1} parent=11 // pred_check_branch
          %675 = sbr.rel (%p673) target = $region28
        $region27: #{_lambda_.1} parent=11 // pred_region
          %s677 = ssub.s32 512, 512
          %678 = vsyncadd [#allocation21], %s677
          %s679 = sshll.u32 [#allocation20], 4
          %s680 = int_to_ptr.vmem [resolvable:$true] %s679
          %685 = dma.hbm_to_vmem [thread:$0]  %s20, 512, %s680, [#allocation21], 128, 128, 8
        $region28: #{_lambda_.1} parent=11 // pred_fallthru
          _
        // Predicated region
        $region29: #{_lambda_.1} parent=11 // pred_check
          %p686 = pneg %p620
        $region30: #{_lambda_.1} parent=11 // pred_check_branch
          %688 = sbr.rel (%p686) target = $region32
        $region31: #{_lambda_.1} parent=11 // pred_region
          %s690 = ssub.s32 16, 16
          %691 = vsyncadd [#allocation21], %s690
          %s693 = sshll.u32 [#allocation22], 4
          %s694 = int_to_ptr.vmem [resolvable:$true] %s693
          %696 = dma.hbm_to_vmem [thread:$0]  %s21, 16, %s694, [#allocation21]
        $region32: #{_lambda_.1} parent=11 // pred_fallthru
          _
      $region12: #{_lambda_.1} parent=5 // pred_fallthru
        _
      %p697 = scmp.lt.s32.totalorder %s45, 8
      // Predicated region
      $region33: #{_lambda_.1} parent=5 // pred_check
        %p698 = pneg %p697
      $region34: #{_lambda_.1} parent=5 // pred_check_branch
        %700 = sbr.rel (%p698) target = $region36
      $region35: #{_lambda_.1} parent=5 // pred_region
        // Predicated region
        $region37: #{_lambda_.1} parent=35 // pred_check
          %p701 = pneg %p98
        $region38: #{_lambda_.1} parent=35 // pred_check_branch
          %703 = sbr.rel (%p701) target = $region40
        $region39: #{_lambda_.1} parent=35 // pred_region
          %p704 = scmp.lt.s32.totalorder %s52, 1
          %s705 = scalar_select %p704, %s52, 1
          %s706 = scalar_lea.vmem %s1, %s705
        $region40: #{_lambda_.1} parent=35 // pred_fallthru
          _
        // Predicated region
        $region41: #{_lambda_.1} parent=35 // pred_check
          %p707 = pneg %p124
        $region42: #{_lambda_.1} parent=35 // pred_check_branch
          %709 = sbr.rel (%p707) target = $region44
        $region43: #{_lambda_.1} parent=35 // pred_region
          %s710 = sand.u32 %s114, 1
          %s711 = scalar_lea.sflag [#allocation6], %s710
          %s712 = sand.u32 %s114, 1
          %s713 = scalar_lea.vmem [#allocation5], %s712
          %s715 = ssub.s32 16, 16
          %716 = vsyncadd %s711, %s715
          %s717 = smul.addr %s52, 16
          %s718 = scalar_lea.hbm %s2, %s717
          %s720 = sshll.u32 %s713, 4
          %s721 = int_to_ptr.vmem [resolvable:$true] %s720
          %723 = dma.hbm_to_vmem [thread:$0]  %s718, 16, %s721, %s711
        $region44: #{_lambda_.1} parent=35 // pred_fallthru
          _
        // Predicated region
        $region45: #{_lambda_.1} parent=35 // pred_check
          %p724 = pneg %p152
        $region46: #{_lambda_.1} parent=35 // pred_check_branch
          %726 = sbr.rel (%p724) target = $region48
        $region47: #{_lambda_.1} parent=35 // pred_region
          %p727 = scmp.lt.s32.totalorder %s52, 1
          %s728 = scalar_select %p727, %s52, 1
          %p729 = scmp.lt.s32.totalorder %s53, 3
          %s730 = scalar_select %p729, %s53, 3
          %s731 = smul.addr %s728, 4
          %s732 = sadd.s32 %s730, %s731
          %s733 = smul.addr %s732, 8
          %s734 = scalar_lea.vmem %s3, %s733
        $region48: #{_lambda_.1} parent=35 // pred_fallthru
          _
        // Predicated region
        $region49: #{_lambda_.1} parent=35 // pred_check
          %p735 = pneg %p180
        $region50: #{_lambda_.1} parent=35 // pred_check_branch
          %737 = sbr.rel (%p735) target = $region52
        $region51: #{_lambda_.1} parent=35 // pred_region
          %p738 = scmp.lt.s32.totalorder %s52, 1
          %s739 = scalar_select %p738, %s52, 1
          %p740 = scmp.lt.s32.totalorder %s53, 3
          %s741 = scalar_select %p740, %s53, 3
          %s742 = smul.addr %s739, 4
          %s743 = sadd.s32 %s741, %s742
          %s744 = smul.addr %s743, 8
          %s745 = scalar_lea.vmem %s4, %s744
        $region52: #{_lambda_.1} parent=35 // pred_fallthru
          _
        // Predicated region
        $region53: #{_lambda_.1} parent=35 // pred_check
          %p746 = pneg %p208
        $region54: #{_lambda_.1} parent=35 // pred_check_branch
          %748 = sbr.rel (%p746) target = $region56
        $region55: #{_lambda_.1} parent=35 // pred_region
          %p749 = scmp.lt.s32.totalorder %s52, 1
          %s750 = scalar_select %p749, %s52, 1
          %p751 = scmp.lt.s32.totalorder %s53, 3
          %s752 = scalar_select %p751, %s53, 3
          %s753 = smul.addr %s752, 4
          %s754 = smul.addr %s750, 16
          %s755 = sadd.s32 %s753, %s754
          %s756 = smul.addr %s755, 8
          %s757 = scalar_lea.vmem %s5, %s756
        $region56: #{_lambda_.1} parent=35 // pred_fallthru
          _
        // Predicated region
        $region57: #{_lambda_.1} parent=35 // pred_check
          %p758 = pneg %p236
        $region58: #{_lambda_.1} parent=35 // pred_check_branch
          %760 = sbr.rel (%p758) target = $region60
        $region59: #{_lambda_.1} parent=35 // pred_region
          %p761 = scmp.lt.s32.totalorder %s52, 1
          %s762 = scalar_select %p761, %s52, 1
          %p763 = scmp.lt.s32.totalorder %s53, 3
          %s764 = scalar_select %p763, %s53, 3
          %s765 = smul.addr %s764, 4
          %s766 = smul.addr %s762, 16
          %s767 = sadd.s32 %s765, %s766
          %s768 = smul.addr %s767, 8
          %s769 = scalar_lea.vmem %s6, %s768
        $region60: #{_lambda_.1} parent=35 // pred_fallthru
          _
        // Predicated region
        $region61: #{_lambda_.1} parent=35 // pred_check
          %p770 = pneg %p264
        $region62: #{_lambda_.1} parent=35 // pred_check_branch
          %772 = sbr.rel (%p770) target = $region64
        $region63: #{_lambda_.1} parent=35 // pred_region
          %s773 = sand.u32 %s45, 1
          %s774 = scalar_lea.sflag [#allocation9], %s773
          %s775 = sand.u32 %s254, 1
          %s776 = scalar_lea.vmem [#allocation8], %s775
          %s778 = ssub.s32 16, 16
          %779 = vsyncadd %s774, %s778
          %s780 = smul.addr %s52, 4
          %s781 = sadd.s32 %s53, %s780
          %s782 = smul.addr %s781, 16
          %s783 = scalar_lea.hbm %s7, %s782
          %s785 = sshll.u32 %s776, 4
          %s786 = int_to_ptr.vmem [resolvable:$true] %s785
          %788 = dma.hbm_to_vmem [thread:$0]  %s783, 16, %s786, %s774
        $region64: #{_lambda_.1} parent=35 // pred_fallthru
          _
        // Predicated region
        $region65: #{_lambda_.1} parent=35 // pred_check
          %p789 = pneg %p292
        $region66: #{_lambda_.1} parent=35 // pred_check_branch
          %791 = sbr.rel (%p789) target = $region68
        $region67: #{_lambda_.1} parent=35 // pred_region
          %p792 = scmp.lt.s32.totalorder %s52, 1
          %s793 = scalar_select %p792, %s52, 1
          %p794 = scmp.lt.s32.totalorder %s53, 3
          %s795 = scalar_select %p794, %s53, 3
          %s796 = smul.addr %s793, 4
          %s797 = sadd.s32 %s795, %s796
          %s798 = scalar_lea.vmem %s8, %s797
        $region68: #{_lambda_.1} parent=35 // pred_fallthru
          _
        // Predicated region
        $region69: #{_lambda_.1} parent=35 // pred_check
          %p799 = pneg %p320
        $region70: #{_lambda_.1} parent=35 // pred_check_branch
          %801 = sbr.rel (%p799) target = $region72
        $region71: #{_lambda_.1} parent=35 // pred_region
          %p802 = scmp.lt.s32.totalorder %s52, 1
          %s803 = scalar_select %p802, %s52, 1
          %p804 = scmp.lt.s32.totalorder %s53, 3
          %s805 = scalar_select %p804, %s53, 3
          %s806 = smul.addr %s805, 4
          %s807 = smul.addr %s803, 16
          %s808 = sadd.s32 %s806, %s807
          %s809 = smul.addr %s808, 8
          %s810 = scalar_lea.vmem %s9, %s809
        $region72: #{_lambda_.1} parent=35 // pred_fallthru
          _
        // Predicated region
        $region73: #{_lambda_.1} parent=35 // pred_check
          %p811 = pneg %p348
        $region74: #{_lambda_.1} parent=35 // pred_check_branch
          %813 = sbr.rel (%p811) target = $region76
        $region75: #{_lambda_.1} parent=35 // pred_region
          %p814 = scmp.lt.s32.totalorder %s52, 1
          %s815 = scalar_select %p814, %s52, 1
          %p816 = scmp.lt.s32.totalorder %s53, 3
          %s817 = scalar_select %p816, %s53, 3
          %s818 = smul.addr %s815, 4
          %s819 = sadd.s32 %s817, %s818
          %s820 = smul.addr %s819, 8
          %s821 = scalar_lea.vmem %s10, %s820
        $region76: #{_lambda_.1} parent=35 // pred_fallthru
          _
        // Predicated region
        $region77: #{_lambda_.1} parent=35 // pred_check
          %p822 = pneg %p374
        $region78: #{_lambda_.1} parent=35 // pred_check_branch
          %824 = sbr.rel (%p822) target = $region80
        $region79: #{_lambda_.1} parent=35 // pred_region
          %s825 = sand.u32 %s45, 1
          %s826 = scalar_lea.sflag [#allocation9], %s825
          %s827 = sand.u32 %s364, 1
          %s828 = scalar_lea.vmem [#allocation10], %s827
          %s830 = ssub.s32 16, 16
          %831 = vsyncadd %s826, %s830
          %s832 = smul.addr %s52, 16
          %s833 = scalar_lea.hbm %s11, %s832
          %s835 = sshll.u32 %s828, 4
          %s836 = int_to_ptr.vmem [resolvable:$true] %s835
          %838 = dma.hbm_to_vmem [thread:$0]  %s833, 16, %s836, %s826
        $region80: #{_lambda_.1} parent=35 // pred_fallthru
          _
        // Predicated region
        $region81: #{_lambda_.1} parent=35 // pred_check
          %p839 = pneg %p400
        $region82: #{_lambda_.1} parent=35 // pred_check_branch
          %841 = sbr.rel (%p839) target = $region84
        $region83: #{_lambda_.1} parent=35 // pred_region
          %s842 = sand.u32 %s45, 1
          %s843 = scalar_lea.sflag [#allocation12], %s842
          %s844 = sand.u32 %s390, 1
          %s845 = scalar_lea.vmem [#allocation11], %s844
          %s847 = ssub.s32 16, 16
          %848 = vsyncadd %s843, %s847
          %s849 = smul.addr %s52, 16
          %s850 = scalar_lea.hbm %s12, %s849
          %s852 = sshll.u32 %s845, 4
          %s853 = int_to_ptr.vmem [resolvable:$true] %s852
          %855 = dma.hbm_to_vmem [thread:$0]  %s850, 16, %s853, %s843
        $region84: #{_lambda_.1} parent=35 // pred_fallthru
          _
        // Predicated region
        $region85: #{_lambda_.1} parent=35 // pred_check
          %p856 = pneg %p426
        $region86: #{_lambda_.1} parent=35 // pred_check_branch
          %858 = sbr.rel (%p856) target = $region88
        $region87: #{_lambda_.1} parent=35 // pred_region
          %s859 = sand.u32 %s45, 1
          %s860 = scalar_lea.sflag [#allocation12], %s859
          %s861 = sand.u32 %s416, 1
          %s862 = scalar_lea.vmem [#allocation13], %s861
          %s864 = ssub.s32 16, 16
          %865 = vsyncadd %s860, %s864
          %s866 = smul.addr %s52, 16
          %s867 = scalar_lea.hbm %s13, %s866
          %s869 = sshll.u32 %s862, 4
          %s870 = int_to_ptr.vmem [resolvable:$true] %s869
          %872 = dma.hbm_to_vmem [thread:$0]  %s867, 16, %s870, %s860
        $region88: #{_lambda_.1} parent=35 // pred_fallthru
          _
        // Predicated region
        $region89: #{_lambda_.1} parent=35 // pred_check
          %p873 = pneg %p452
        $region90: #{_lambda_.1} parent=35 // pred_check_branch
          %875 = sbr.rel (%p873) target = $region92
        $region91: #{_lambda_.1} parent=35 // pred_region
          %s876 = sand.u32 %s45, 1
          %s877 = scalar_lea.sflag [#allocation15], %s876
          %s878 = sand.u32 %s442, 1
          %s879 = smul.addr %s878, 32
          %s880 = scalar_lea.vmem [#allocation14], %s879
          %s882 = ssub.s32 512, 512
          %883 = vsyncadd %s877, %s882
          %s884 = smul.addr %s52, 4
          %s885 = smul.addr %s884, 128
          %s886 = scalar_lea.hbm %s14, %s885
          %s887 = sshll.u32 %s880, 4
          %s888 = int_to_ptr.vmem [resolvable:$true] %s887
          %893 = dma.hbm_to_vmem [thread:$0]  %s886, 512, %s888, %s877, 128, 128, 8
        $region92: #{_lambda_.1} parent=35 // pred_fallthru
          _
        // Predicated region
        $region93: #{_lambda_.1} parent=35 // pred_check
          %p894 = pneg %p478
        $region94: #{_lambda_.1} parent=35 // pred_check_branch
          %896 = sbr.rel (%p894) target = $region96
        $region95: #{_lambda_.1} parent=35 // pred_region
          %s897 = sand.u32 %s45, 1
          %s898 = scalar_lea.sflag [#allocation15], %s897
          %s899 = sand.u32 %s468, 1
          %s900 = scalar_lea.vmem [#allocation16], %s899
          %s902 = ssub.s32 16, 16
          %903 = vsyncadd %s898, %s902
          %s904 = smul.addr %s52, 16
          %s905 = scalar_lea.hbm %s15, %s904
          %s907 = sshll.u32 %s900, 4
          %s908 = int_to_ptr.vmem [resolvable:$true] %s907
          %910 = dma.hbm_to_vmem [thread:$0]  %s905, 16, %s908, %s898
        $region96: #{_lambda_.1} parent=35 // pred_fallthru
          _
        // Predicated region
        $region97: #{_lambda_.1} parent=35 // pred_check
          %p911 = pneg %p504
        $region98: #{_lambda_.1} parent=35 // pred_check_branch
          %913 = sbr.rel (%p911) target = $region100
        $region99: #{_lambda_.1} parent=35 // pred_region
          %p914 = scmp.lt.s32.totalorder %s52, 1
          %s915 = scalar_select %p914, %s52, 1
          %s916 = smul.addr %s915, 8
          %s917 = smul.addr %s916, 8
          %s918 = scalar_lea.vmem %s16, %s917
        $region100: #{_lambda_.1} parent=35 // pred_fallthru
          _
        // Predicated region
        $region101: #{_lambda_.1} parent=35 // pred_check
          %p919 = pneg %p530
        $region102: #{_lambda_.1} parent=35 // pred_check_branch
          %921 = sbr.rel (%p919) target = $region104
        $region103: #{_lambda_.1} parent=35 // pred_region
          %s922 = sand.u32 %s45, 1
          %s923 = scalar_lea.sflag [#allocation18], %s922
          %s924 = sand.u32 %s520, 1
          %s925 = scalar_lea.vmem [#allocation17], %s924
          %s927 = ssub.s32 16, 16
          %928 = vsyncadd %s923, %s927
          %s929 = smul.addr %s52, 16
          %s930 = scalar_lea.hbm %s17, %s929
          %s932 = sshll.u32 %s925, 4
          %s933 = int_to_ptr.vmem [resolvable:$true] %s932
          %935 = dma.hbm_to_vmem [thread:$0]  %s930, 16, %s933, %s923
        $region104: #{_lambda_.1} parent=35 // pred_fallthru
          _
      $region36: #{_lambda_.1} parent=5 // pred_fallthru
        _
      %p936 = scmp.le.s32.totalorder 1, %s45
      %p937 = scmp.lt.s32.totalorder %s45, 9
      %p938 = pnand %p936, %p937
      %p939 = pneg %p938
      // Predicated region
      $region105: #{_lambda_.1} parent=5 // pred_check
        _
      $region106: #{_lambda_.1} parent=5 // pred_check_branch
        %941 = sbr.rel (%p938) target = $region108
      $region107: #{_lambda_.1} parent=5 // pred_region
        %s942 = ssub.s32 %s45, 1
        %s943 = sand.u32 %s117, 1
        %s944 = scalar_lea.sflag [#allocation6], %s943
        %s945 = sand.u32 %s117, 1
        %s946 = scalar_lea.vmem [#allocation5], %s945
        // Predicated region
        $region109: #{_lambda_.1} parent=107 // pred_check
          %p947 = pneg %p130
        $region110: #{_lambda_.1} parent=107 // pred_check_branch
          %949 = sbr.rel (%p947) target = $region112
        $region111: #{_lambda_.1} parent=107 // pred_region
          %950 = dma.done %s944, 16
        $region112: #{_lambda_.1} parent=107 // pred_fallthru
          _
        %s951 = sand.u32 %s50, 1
        %s952 = scalar_lea.sflag [#allocation9], %s951
        %s953 = sand.u32 %s257, 1
        %s954 = scalar_lea.vmem [#allocation8], %s953
        // Predicated region
        $region113: #{_lambda_.1} parent=107 // pred_check
          %p955 = pneg %p270
        $region114: #{_lambda_.1} parent=107 // pred_check_branch
          %957 = sbr.rel (%p955) target = $region116
        $region115: #{_lambda_.1} parent=107 // pred_region
          %958 = dma.done %s952, 16
        $region116: #{_lambda_.1} parent=107 // pred_fallthru
          _
        %s959 = sand.u32 %s50, 1
        %s960 = scalar_lea.sflag [#allocation9], %s959
        %s961 = sand.u32 %s367, 1
        %s962 = scalar_lea.vmem [#allocation10], %s961
        // Predicated region
        $region117: #{_lambda_.1} parent=107 // pred_check
          %p963 = pneg %p380
        $region118: #{_lambda_.1} parent=107 // pred_check_branch
          %965 = sbr.rel (%p963) target = $region120
        $region119: #{_lambda_.1} parent=107 // pred_region
          %966 = dma.done %s960, 16
        $region120: #{_lambda_.1} parent=107 // pred_fallthru
          _
        %s967 = sand.u32 %s50, 1
        %s968 = scalar_lea.sflag [#allocation12], %s967
        %s969 = sand.u32 %s393, 1
        %s970 = scalar_lea.vmem [#allocation11], %s969
        // Predicated region
        $region121: #{_lambda_.1} parent=107 // pred_check
          %p971 = pneg %p406
        $region122: #{_lambda_.1} parent=107 // pred_check_branch
          %973 = sbr.rel (%p971) target = $region124
        $region123: #{_lambda_.1} parent=107 // pred_region
          %974 = dma.done %s968, 16
        $region124: #{_lambda_.1} parent=107 // pred_fallthru
          _
        %s975 = sand.u32 %s50, 1
        %s976 = scalar_lea.sflag [#allocation12], %s975
        %s977 = sand.u32 %s419, 1
        %s978 = scalar_lea.vmem [#allocation13], %s977
        // Predicated region
        $region125: #{_lambda_.1} parent=107 // pred_check
          %p979 = pneg %p432
        $region126: #{_lambda_.1} parent=107 // pred_check_branch
          %981 = sbr.rel (%p979) target = $region128
        $region127: #{_lambda_.1} parent=107 // pred_region
          %982 = dma.done %s976, 16
        $region128: #{_lambda_.1} parent=107 // pred_fallthru
          _
        %s983 = sand.u32 %s50, 1
        %s984 = scalar_lea.sflag [#allocation15], %s983
        %s985 = sand.u32 %s445, 1
        %s986 = smul.addr %s985, 32
        %s987 = scalar_lea.vmem [#allocation14], %s986
        // Predicated region
        $region129: #{_lambda_.1} parent=107 // pred_check
          %p988 = pneg %p458
        $region130: #{_lambda_.1} parent=107 // pred_check_branch
          %990 = sbr.rel (%p988) target = $region132
        $region131: #{_lambda_.1} parent=107 // pred_region
          %991 = dma.done %s984, 512
        $region132: #{_lambda_.1} parent=107 // pred_fallthru
          _
        %s992 = sand.u32 %s50, 1
        %s993 = scalar_lea.sflag [#allocation15], %s992
        %s994 = sand.u32 %s471, 1
        %s995 = scalar_lea.vmem [#allocation16], %s994
        // Predicated region
        $region133: #{_lambda_.1} parent=107 // pred_check
          %p996 = pneg %p484
        $region134: #{_lambda_.1} parent=107 // pred_check_branch
          %998 = sbr.rel (%p996) target = $region136
        $region135: #{_lambda_.1} parent=107 // pred_region
          %999 = dma.done %s993, 16
        $region136: #{_lambda_.1} parent=107 // pred_fallthru
          _
        %s1000 = sand.u32 %s50, 1
        %s1001 = scalar_lea.sflag [#allocation18], %s1000
        %s1002 = sand.u32 %s523, 1
        %s1003 = scalar_lea.vmem [#allocation17], %s1002
        // Predicated region
        $region137: #{_lambda_.1} parent=107 // pred_check
          %p1004 = pneg %p536
        $region138: #{_lambda_.1} parent=107 // pred_check_branch
          %1006 = sbr.rel (%p1004) target = $region140
        $region139: #{_lambda_.1} parent=107 // pred_region
          %1007 = dma.done %s1001, 16
        $region140: #{_lambda_.1} parent=107 // pred_fallthru
          _
        // Predicated region
        $region141: #{_lambda_.1} parent=107 // pred_check
          %p1008 = pneg %p578
        $region142: #{_lambda_.1} parent=107 // pred_check_branch
          %1010 = sbr.rel (%p1008) target = $region144
        $region143: #{_lambda_.1} parent=107 // pred_region
          %1011 = dma.done [#allocation18], 16
        $region144: #{_lambda_.1} parent=107 // pred_fallthru
          _
        // Predicated region
        $region145: #{_lambda_.1} parent=107 // pred_check
          %p1012 = pneg %p599
        $region146: #{_lambda_.1} parent=107 // pred_check_branch
          %1014 = sbr.rel (%p1012) target = $region148
        $region147: #{_lambda_.1} parent=107 // pred_region
          %1015 = dma.done [#allocation21], 512
        $region148: #{_lambda_.1} parent=107 // pred_fallthru
          _
        // Predicated region
        $region149: #{_lambda_.1} parent=107 // pred_check
          %p1016 = pneg %p620
        $region150: #{_lambda_.1} parent=107 // pred_check_branch
          %1018 = sbr.rel (%p1016) target = $region152
        $region151: #{_lambda_.1} parent=107 // pred_region
          %1019 = dma.done [#allocation21], 16
        $region152: #{_lambda_.1} parent=107 // pred_fallthru
          _
        %p1020 = pneg %p78
        %p1021 = pneg %p75
        %p1022 = scmp.lt.s32.totalorder %s54, 1
        %s1023 = scalar_select %p1022, %s54, 1
        %s1024 = scalar_lea.vmem %s1, %s1023
        %p1025 = pneg %p104
        %p1026 = pneg %p101
        %s1027 = sand.u32 %s117, 1
        %s1028 = scalar_lea.sflag [#allocation6], %s1027
        %s1029 = sand.u32 %s117, 1
        %s1030 = scalar_lea.vmem [#allocation5], %s1029
        %p1031 = pneg %p130
        %p1032 = pneg %p127
        %p1033 = scmp.lt.s32.totalorder %s54, 1
        %s1034 = scalar_select %p1033, %s54, 1
        %p1035 = scmp.lt.s32.totalorder %s55, 3
        %s1036 = scalar_select %p1035, %s55, 3
        %s1037 = smul.addr %s1034, 4
        %s1038 = sadd.s32 %s1036, %s1037
        %s1039 = smul.addr %s1038, 8
        %s1040 = scalar_lea.vmem %s3, %s1039
        %p1041 = pneg %p158
        %p1042 = pneg %p155
        %p1043 = scmp.lt.s32.totalorder %s54, 1
        %s1044 = scalar_select %p1043, %s54, 1
        %p1045 = scmp.lt.s32.totalorder %s55, 3
        %s1046 = scalar_select %p1045, %s55, 3
        %s1047 = smul.addr %s1044, 4
        %s1048 = sadd.s32 %s1046, %s1047
        %s1049 = smul.addr %s1048, 8
        %s1050 = scalar_lea.vmem %s4, %s1049
        %p1051 = pneg %p186
        %p1052 = pneg %p183
        %p1053 = scmp.lt.s32.totalorder %s54, 1
        %s1054 = scalar_select %p1053, %s54, 1
        %p1055 = scmp.lt.s32.totalorder %s55, 3
        %s1056 = scalar_select %p1055, %s55, 3
        %s1057 = smul.addr %s1056, 4
        %s1058 = smul.addr %s1054, 16
        %s1059 = sadd.s32 %s1057, %s1058
        %s1060 = smul.addr %s1059, 8
        %s1061 = scalar_lea.vmem %s5, %s1060
        %p1062 = pneg %p214
        %p1063 = pneg %p211
        %p1064 = scmp.lt.s32.totalorder %s54, 1
        %s1065 = scalar_select %p1064, %s54, 1
        %p1066 = scmp.lt.s32.totalorder %s55, 3
        %s1067 = scalar_select %p1066, %s55, 3
        %s1068 = smul.addr %s1067, 4
        %s1069 = smul.addr %s1065, 16
        %s1070 = sadd.s32 %s1068, %s1069
        %s1071 = smul.addr %s1070, 8
        %s1072 = scalar_lea.vmem %s6, %s1071
        %p1073 = pneg %p242
        %p1074 = pneg %p239
        %s1075 = sand.u32 %s50, 1
        %s1076 = scalar_lea.sflag [#allocation9], %s1075
        %s1077 = sand.u32 %s257, 1
        %s1078 = scalar_lea.vmem [#allocation8], %s1077
        %p1079 = pneg %p270
        %p1080 = pneg %p267
        %p1081 = scmp.lt.s32.totalorder %s54, 1
        %s1082 = scalar_select %p1081, %s54, 1
        %p1083 = scmp.lt.s32.totalorder %s55, 3
        %s1084 = scalar_select %p1083, %s55, 3
        %s1085 = smul.addr %s1082, 4
        %s1086 = sadd.s32 %s1084, %s1085
        %s1087 = scalar_lea.vmem %s8, %s1086
        %p1088 = pneg %p298
        %p1089 = pneg %p295
        %p1090 = scmp.lt.s32.totalorder %s54, 1
        %s1091 = scalar_select %p1090, %s54, 1
        %p1092 = scmp.lt.s32.totalorder %s55, 3
        %s1093 = scalar_select %p1092, %s55, 3
        %s1094 = smul.addr %s1093, 4
        %s1095 = smul.addr %s1091, 16
        %s1096 = sadd.s32 %s1094, %s1095
        %s1097 = smul.addr %s1096, 8
        %s1098 = scalar_lea.vmem %s9, %s1097
        %p1099 = pneg %p326
        %p1100 = pneg %p323
        %p1101 = scmp.lt.s32.totalorder %s54, 1
        %s1102 = scalar_select %p1101, %s54, 1
        %p1103 = scmp.lt.s32.totalorder %s55, 3
        %s1104 = scalar_select %p1103, %s55, 3
        %s1105 = smul.addr %s1102, 4
        %s1106 = sadd.s32 %s1104, %s1105
        %s1107 = smul.addr %s1106, 8
        %s1108 = scalar_lea.vmem %s10, %s1107
        %p1109 = pneg %p354
        %p1110 = pneg %p351
        %s1111 = sand.u32 %s50, 1
        %s1112 = scalar_lea.sflag [#allocation9], %s1111
        %s1113 = sand.u32 %s367, 1
        %s1114 = scalar_lea.vmem [#allocation10], %s1113
        %p1115 = pneg %p380
        %p1116 = pneg %p377
        %s1117 = sand.u32 %s50, 1
        %s1118 = scalar_lea.sflag [#allocation12], %s1117
        %s1119 = sand.u32 %s393, 1
        %s1120 = scalar_lea.vmem [#allocation11], %s1119
        %p1121 = pneg %p406
        %p1122 = pneg %p403
        %s1123 = sand.u32 %s50, 1
        %s1124 = scalar_lea.sflag [#allocation12], %s1123
        %s1125 = sand.u32 %s419, 1
        %s1126 = scalar_lea.vmem [#allocation13], %s1125
        %p1127 = pneg %p432
        %p1128 = pneg %p429
        %s1129 = sand.u32 %s50, 1
        %s1130 = scalar_lea.sflag [#allocation15], %s1129
        %s1131 = sand.u32 %s445, 1
        %s1132 = smul.addr %s1131, 32
        %s1133 = scalar_lea.vmem [#allocation14], %s1132
        %p1134 = pneg %p458
        %p1135 = pneg %p455
        %s1136 = sand.u32 %s50, 1
        %s1137 = scalar_lea.sflag [#allocation15], %s1136
        %s1138 = sand.u32 %s471, 1
        %s1139 = scalar_lea.vmem [#allocation16], %s1138
        %p1140 = pneg %p484
        %p1141 = pneg %p481
        %p1142 = scmp.lt.s32.totalorder %s54, 1
        %s1143 = scalar_select %p1142, %s54, 1
        %s1144 = smul.addr %s1143, 8
        %s1145 = smul.addr %s1144, 8
        %s1146 = scalar_lea.vmem %s16, %s1145
        %p1147 = pneg %p510
        %p1148 = pneg %p507
        %s1149 = sand.u32 %s50, 1
        %s1150 = scalar_lea.sflag [#allocation18], %s1149
        %s1151 = sand.u32 %s523, 1
        %s1152 = scalar_lea.vmem [#allocation17], %s1151
        %p1153 = pneg %p536
        %p1154 = pneg %p533
        %p1155 = pneg %p557
        %p1156 = pneg %p554
        %p1157 = pneg %p578
        %p1158 = pneg %p575
        %p1159 = pneg %p599
        %p1160 = pneg %p596
        %p1161 = pneg %p620
        %p1162 = pneg %p617
        %p1163 = pneg %p641
        %p1164 = pneg %p638
        %p1165 = scmp.lt.s32.totalorder %s54, 1
        %s1166 = scalar_select %p1165, %s54, 1
        %s1167 = scalar_lea.vmem %s1, %s1166
        %p1168 = scmp.lt.s32.totalorder %s54, 1
        %s1169 = scalar_select %p1168, %s54, 1
        %p1170 = scmp.lt.s32.totalorder %s55, 3
        %s1171 = scalar_select %p1170, %s55, 3
        %s1172 = smul.addr %s1169, 4
        %s1173 = sadd.s32 %s1171, %s1172
        %s1174 = smul.addr %s1173, 8
        %s1175 = scalar_lea.vmem %s3, %s1174
        %p1176 = scmp.lt.s32.totalorder %s54, 1
        %s1177 = scalar_select %p1176, %s54, 1
        %p1178 = scmp.lt.s32.totalorder %s55, 3
        %s1179 = scalar_select %p1178, %s55, 3
        %s1180 = smul.addr %s1177, 4
        %s1181 = sadd.s32 %s1179, %s1180
        %s1182 = smul.addr %s1181, 8
        %s1183 = scalar_lea.vmem %s4, %s1182
        %p1184 = scmp.lt.s32.totalorder %s54, 1
        %s1185 = scalar_select %p1184, %s54, 1
        %p1186 = scmp.lt.s32.totalorder %s55, 3
        %s1187 = scalar_select %p1186, %s55, 3
        %s1188 = smul.addr %s1187, 4
        %s1189 = smul.addr %s1185, 16
        %s1190 = sadd.s32 %s1188, %s1189
        %s1191 = smul.addr %s1190, 8
        %s1192 = scalar_lea.vmem %s5, %s1191
        %p1193 = scmp.lt.s32.totalorder %s54, 1
        %s1194 = scalar_select %p1193, %s54, 1
        %p1195 = scmp.lt.s32.totalorder %s55, 3
        %s1196 = scalar_select %p1195, %s55, 3
        %s1197 = smul.addr %s1196, 4
        %s1198 = smul.addr %s1194, 16
        %s1199 = sadd.s32 %s1197, %s1198
        %s1200 = smul.addr %s1199, 8
        %s1201 = scalar_lea.vmem %s6, %s1200
        %p1202 = scmp.lt.s32.totalorder %s54, 1
        %s1203 = scalar_select %p1202, %s54, 1
        %p1204 = scmp.lt.s32.totalorder %s55, 3
        %s1205 = scalar_select %p1204, %s55, 3
        %s1206 = smul.addr %s1203, 4
        %s1207 = sadd.s32 %s1205, %s1206
        %s1208 = scalar_lea.vmem %s8, %s1207
        %p1209 = scmp.lt.s32.totalorder %s54, 1
        %s1210 = scalar_select %p1209, %s54, 1
        %p1211 = scmp.lt.s32.totalorder %s55, 3
        %s1212 = scalar_select %p1211, %s55, 3
        %s1213 = smul.addr %s1212, 4
        %s1214 = smul.addr %s1210, 16
        %s1215 = sadd.s32 %s1213, %s1214
        %s1216 = smul.addr %s1215, 8
        %s1217 = scalar_lea.vmem %s9, %s1216
        %p1218 = scmp.lt.s32.totalorder %s54, 1
        %s1219 = scalar_select %p1218, %s54, 1
        %p1220 = scmp.lt.s32.totalorder %s55, 3
        %s1221 = scalar_select %p1220, %s55, 3
        %s1222 = smul.addr %s1219, 4
        %s1223 = sadd.s32 %s1221, %s1222
        %s1224 = smul.addr %s1223, 8
        %s1225 = scalar_lea.vmem %s10, %s1224
        %p1226 = scmp.lt.s32.totalorder %s54, 1
        %s1227 = scalar_select %p1226, %s54, 1
        %s1228 = smul.addr %s1227, 8
        %s1229 = smul.addr %s1228, 8
        %s1230 = scalar_lea.vmem %s16, %s1229
        %p1231 = scmp.eq.s32.totalorder %s54, 0
        %p1232 = scmp.eq.s32.totalorder %s55, 0
        %p1233 = pnand %p1231, %p1232
        %p1234 = pneg %p1233
        // Predicated region
        $region153: #{_lambda_.1} parent=107 // pred_check
          _
        $region154: #{_lambda_.1} parent=107 // pred_check_branch
          %1236 = sbr.rel (%p1233) target = $region156
        $region155: #{_lambda_.1} parent=107 // pred_region
          %v1237 = vld [vmem:[%s0] sm:$0xff]
          %v1238 = vld [vmem:[%s0 + $0x8] sm:$0xff]
          %vm1239 = vcmask 261120
          %1240 = vst.msk [vmem:[#allocation2] sm:$0xff] %vm1239, %v1237
          %1241 = vst.msk [vmem:[#allocation2 + $0x8] sm:$0xff] %vm1239, %v1238
        $region156: #{_lambda_.1} parent=107 // pred_fallthru
          _
        // Predicated region
        $region157: #{_lambda_.1} parent=107 // pred_check
          %p1242 = pneg %p1232
        $region158: #{_lambda_.1} parent=107 // pred_check_branch
          %1244 = sbr.rel (%p1242) target = $region160
        $region159: #{_lambda_.1} parent=107 // pred_region
          %v1245 = vld [vmem:[#allocation2] sm:$0xff]
          %v1246 = vld [vmem:[#allocation2 + $0x8] sm:$0xff]
          %v1247 = vld [vmem:[%s1167] sm:$0x1]
          %v1248 = vld [vmem:[%s946] sm:$0x1]
          %vm1249 = vcmask 261120
          %v1250 = vsel %vm1249, %v1245, 0.0
          %1251 = vadd.xlane.f32.xlu0 %v1250
          %v1252 = vpop.xlane.xlu0 %1251
          %v1253 = vsel %vm1249, %v1246, 0.0
          %1254 = vadd.xlane.f32.xlu0 %v1253
          %v1255 = vpop.xlane.xlu0 %1254
          %v1256 = vrcp.pop 32.0
          %v1257 = vmul.f32 %v1252, %v1256
          %v1258 = vmul.f32 %v1255, %v1256
          %v1259 = vsub.f32 %v1245, %v1257
          %v1260 = vsub.f32 %v1246, %v1258
          %v1261 = vmul.f32 %v1259, %v1259
          %v1262 = vmul.f32 %v1260, %v1260
          %v1263 = vsel %vm1249, %v1261, 0.0
          %1264 = vadd.xlane.f32.xlu0 %v1263
          %v1265 = vpop.xlane.xlu0 %1264
          %v1266 = vsel %vm1249, %v1262, 0.0
          %1267 = vadd.xlane.f32.xlu0 %v1266
          %v1268 = vpop.xlane.xlu0 %1267
          %v1269 = vmul.f32 %v1265, %v1256
          %v1270 = vmul.f32 %v1268, %v1256
          %v1271 = vadd.f32 %v1269, 1e-05
          %v1272 = vadd.f32 %v1270, 1e-05
          %v1273 = vrsqrt.pop %v1271
          %v1274 = vrsqrt.pop %v1272
          %v1275 = vmul.f32 %v1259, %v1273
          %v1276 = vmul.f32 %v1260, %v1274
          %v1278 = vlaneseq
          %v1279 = vshrl.u32 %v1278, 7
          %v1280 = vsub.s32 0, %v1279
          %v1281 = vrot.slane %v1247, %v1280
          %v1283 = vmul.f32 %v1275, %v1281
          %v1284 = vmul.f32 %v1276, %v1281
          %v1286 = vlaneseq
          %v1287 = vshrl.u32 %v1286, 7
          %v1288 = vsub.s32 0, %v1287
          %v1289 = vrot.slane %v1248, %v1288
          %v1291 = vadd.f32 %v1283, %v1289
          %v1292 = vadd.f32 %v1284, %v1289
          %1293 = vst.msk [vmem:[#allocation3] sm:$0xff] %vm1249, %v1291
          %1294 = vst.msk [vmem:[#allocation3 + $0x8] sm:$0xff] %vm1249, %v1292
          %v1295 = vld [vmem:[%s962] sm:$0x1]
          %v1297 = vlaneseq
          %v1298 = vshrl.u32 %v1297, 7
          %v1299 = vsub.s32 0, %v1298
          %v1300 = vrot.slane %v1295, %v1299
          %v1302 = vadd.f32 %v1245, %v1300
          %v1303 = vadd.f32 %v1246, %v1300
          %1304 = vst.msk [vmem:[#allocation4] sm:$0xff] %vm1249, %v1302
          %1305 = vst.msk [vmem:[#allocation4 + $0x8] sm:$0xff] %vm1249, %v1303
        $region160: #{_lambda_.1} parent=107 // pred_fallthru
          _
        %v1306 = vld [vmem:[#allocation3] sm:$0xff]
        %v1307 = vld [vmem:[#allocation3 + $0x8] sm:$0xff]
        %v1308 = vld [vmem:[%s1175] sm:$0xff]
        %v1309 = vld [vmem:[%s1192] sm:$0xff]
        %v1310 = vld [vmem:[%s1192 + $0x8] sm:$0xff]
        %v1311 = vld [vmem:[%s1192 + $0x10] sm:$0xff]
        %v1312 = vld [vmem:[%s1192 + $0x18] sm:$0xff]
        %vm1313 = vcmask 261120
        %v1315 = vsel %vm1313, %v1306, 0
        %1317 = vmatprep.subr.mxu0 0.0
        %1318 = vmatpush1.msra.mxu0 %v1309
        %1319 = vmatprep.subr.mxu0 0.0
        %1320 = vmatpush1.msra.mxu0 %v1310
        %1321 = vmatprep.subr.mxu0 0.0
        %1322 = vmatpush1.msra.mxu0 %v1311
        %1323 = vmatprep.subr.mxu0 0.0
        %1324 = vmatpush1.msra.mxu0 %v1312
        %1325 = vmatprep.subr.mxu0 0.0
        %1326 = vmatpush1.msra.mxu0 0.0
        %1327 = vmatprep.subr.mxu0 0.0
        %1328 = vmatpush1.msra.mxu0 0.0
        %1329 = vmatprep.subr.mxu0 0.0
        %1330 = vmatpush1.msra.mxu0 0.0
        %1331 = vmatprep.subr.mxu0 0.0
        %1332 = vmatpush1.msra.mxu0 0.0
        %1333 = vmatprep.subr.mxu0 0.0
        %1334 = vmatpush1.msra.mxu0 0.0
        %1335 = vmatprep.subr.mxu0 0.0
        %1336 = vmatpush1.msra.mxu0 0.0
        %1337 = vmatprep.subr.mxu0 0.0
        %1338 = vmatpush1.msra.mxu0 0.0
        %1339 = vmatprep.subr.mxu0 0.0
        %1340 = vmatpush1.msra.mxu0 0.0
        %1341 = vmatprep.subr.mxu0 0.0
        %1342 = vmatpush1.msra.mxu0 0.0
        %1343 = vmatprep.subr.mxu0 0.0
        %1344 = vmatpush1.msra.mxu0 0.0
        %1345 = vmatprep.subr.mxu0 0.0
        %1346 = vmatpush1.msra.mxu0 0.0
        %1347 = vmatprep.subr.mxu0 0.0
        %1348 = vmatpush1.msra.mxu0 0.0
        %1349 = vmatprep.subr.mxu0 0.0
        %1350 = vmatpush1.msra.mxu0 0.0
        %1351 = vmatprep.subr.mxu0 0.0
        %1352 = vmatpush1.msra.mxu0 0.0
        %1353 = vmatprep.subr.mxu0 0.0
        %1354 = vmatpush1.msra.mxu0 0.0
        %1355 = vmatprep.subr.mxu0 0.0
        %1356 = vmatpush1.msra.mxu0 0.0
        %1357 = vmatprep.subr.mxu0 0.0
        %1358 = vmatpush1.msra.mxu0 0.0
        %1359 = vmatprep.subr.mxu0 0.0
        %1360 = vmatpush1.msra.mxu0 0.0
        %1361 = vmatprep.subr.mxu0 0.0
        %1362 = vmatpush1.msra.mxu0 0.0
        %1363 = vmatprep.subr.mxu0 0.0
        %1364 = vmatpush1.msra.mxu0 0.0
        %1365 = vmatprep.subr.mxu0 0.0
        %1366 = vmatpush1.msra.mxu0 0.0
        %1367 = vmatprep.subr.mxu0 0.0
        %1368 = vmatpush1.msra.mxu0 0.0
        %1369 = vmatprep.subr.mxu0 0.0
        %1370 = vmatpush1.msra.mxu0 0.0
        %1371 = vmatprep.subr.mxu0 0.0
        %1372 = vmatpush1.msra.mxu0 0.0
        %1373 = vmatprep.subr.mxu0 0.0
        %1374 = vmatpush1.msra.mxu0 0.0
        %1375 = vmatprep.subr.mxu0 0.0
        %1376 = vmatpush1.msra.mxu0 0.0
        %1377 = vmatprep.subr.mxu0 0.0
        %1378 = vmatpush1.msra.mxu0 0.0
        %1379 = vmatprep.subr.mxu0 0.0
        %1380 = vmatpush1.msra.mxu0 0.0
        %1381 = vmatprep.mubr.f32.mxu0 0.0
        %1382 = vmatmul.mubr.f32.gmra.mrb[0].mxu0 %v1315
        %v1383 = vpop.f32.mrb[0].mxu0
        %v1384 = vadd.f32 0.0, %v1383
        %v1385 = vpop.f32.mrb[0].mxu0
        %1386 = vdwg.mxu0
        %v1388 = vsel %vm1313, %v1307, 0
        %1390 = vmatprep.subr.mxu0 0.0
        %1391 = vmatpush1.msra.mxu0 %v1309
        %1392 = vmatprep.subr.mxu0 0.0
        %1393 = vmatpush1.msra.mxu0 %v1310
        %1394 = vmatprep.subr.mxu0 0.0
        %1395 = vmatpush1.msra.mxu0 %v1311
        %1396 = vmatprep.subr.mxu0 0.0
        %1397 = vmatpush1.msra.mxu0 %v1312
        %1398 = vmatprep.subr.mxu0 0.0
        %1399 = vmatpush1.msra.mxu0 0.0
        %1400 = vmatprep.subr.mxu0 0.0
        %1401 = vmatpush1.msra.mxu0 0.0
        %1402 = vmatprep.subr.mxu0 0.0
        %1403 = vmatpush1.msra.mxu0 0.0
        %1404 = vmatprep.subr.mxu0 0.0
        %1405 = vmatpush1.msra.mxu0 0.0
        %1406 = vmatprep.subr.mxu0 0.0
        %1407 = vmatpush1.msra.mxu0 0.0
        %1408 = vmatprep.subr.mxu0 0.0
        %1409 = vmatpush1.msra.mxu0 0.0
        %1410 = vmatprep.subr.mxu0 0.0
        %1411 = vmatpush1.msra.mxu0 0.0
        %1412 = vmatprep.subr.mxu0 0.0
        %1413 = vmatpush1.msra.mxu0 0.0
        %1414 = vmatprep.subr.mxu0 0.0
        %1415 = vmatpush1.msra.mxu0 0.0
        %1416 = vmatprep.subr.mxu0 0.0
        %1417 = vmatpush1.msra.mxu0 0.0
        %1418 = vmatprep.subr.mxu0 0.0
        %1419 = vmatpush1.msra.mxu0 0.0
        %1420 = vmatprep.subr.mxu0 0.0
        %1421 = vmatpush1.msra.mxu0 0.0
        %1422 = vmatprep.subr.mxu0 0.0
        %1423 = vmatpush1.msra.mxu0 0.0
        %1424 = vmatprep.subr.mxu0 0.0
        %1425 = vmatpush1.msra.mxu0 0.0
        %1426 = vmatprep.subr.mxu0 0.0
        %1427 = vmatpush1.msra.mxu0 0.0
        %1428 = vmatprep.subr.mxu0 0.0
        %1429 = vmatpush1.msra.mxu0 0.0
        %1430 = vmatprep.subr.mxu0 0.0
        %1431 = vmatpush1.msra.mxu0 0.0
        %1432 = vmatprep.subr.mxu0 0.0
        %1433 = vmatpush1.msra.mxu0 0.0
        %1434 = vmatprep.subr.mxu0 0.0
        %1435 = vmatpush1.msra.mxu0 0.0
        %1436 = vmatprep.subr.mxu0 0.0
        %1437 = vmatpush1.msra.mxu0 0.0
        %1438 = vmatprep.subr.mxu0 0.0
        %1439 = vmatpush1.msra.mxu0 0.0
        %1440 = vmatprep.subr.mxu0 0.0
        %1441 = vmatpush1.msra.mxu0 0.0
        %1442 = vmatprep.subr.mxu0 0.0
        %1443 = vmatpush1.msra.mxu0 0.0
        %1444 = vmatprep.subr.mxu0 0.0
        %1445 = vmatpush1.msra.mxu0 0.0
        %1446 = vmatprep.subr.mxu0 0.0
        %1447 = vmatpush1.msra.mxu0 0.0
        %1448 = vmatprep.subr.mxu0 0.0
        %1449 = vmatpush1.msra.mxu0 0.0
        %1450 = vmatprep.subr.mxu0 0.0
        %1451 = vmatpush1.msra.mxu0 0.0
        %1452 = vmatprep.subr.mxu0 0.0
        %1453 = vmatpush1.msra.mxu0 0.0
        %1454 = vmatprep.mubr.f32.mxu0 0.0
        %1455 = vmatmul.mubr.f32.gmra.mrb[0].mxu0 %v1388
        %v1456 = vpop.f32.mrb[0].mxu0
        %v1457 = vadd.f32 0.0, %v1456
        %v1458 = vpop.f32.mrb[0].mxu0
        %1459 = vdwg.mxu0
        %v1460 = vadd.f32 %v1308, %v1384
        %v1461 = vadd.f32 %v1308, %v1457
        %v1462 = vld [vmem:[%s1183] sm:$0xff]
        %v1463 = vld [vmem:[%s1201] sm:$0xff]
        %v1464 = vld [vmem:[%s1201 + $0x8] sm:$0xff]
        %v1465 = vld [vmem:[%s1201 + $0x10] sm:$0xff]
        %v1466 = vld [vmem:[%s1201 + $0x18] sm:$0xff]
        %1467 = vmatprep.subr.mxu0 0.0
        %1468 = vmatpush1.msra.mxu0 %v1463
        %1469 = vmatprep.subr.mxu0 0.0
        %1470 = vmatpush1.msra.mxu0 %v1464
        %1471 = vmatprep.subr.mxu0 0.0
        %1472 = vmatpush1.msra.mxu0 %v1465
        %1473 = vmatprep.subr.mxu0 0.0
        %1474 = vmatpush1.msra.mxu0 %v1466
        %1475 = vmatprep.subr.mxu0 0.0
        %1476 = vmatpush1.msra.mxu0 0.0
        %1477 = vmatprep.subr.mxu0 0.0
        %1478 = vmatpush1.msra.mxu0 0.0
        %1479 = vmatprep.subr.mxu0 0.0
        %1480 = vmatpush1.msra.mxu0 0.0
        %1481 = vmatprep.subr.mxu0 0.0
        %1482 = vmatpush1.msra.mxu0 0.0
        %1483 = vmatprep.subr.mxu0 0.0
        %1484 = vmatpush1.msra.mxu0 0.0
        %1485 = vmatprep.subr.mxu0 0.0
        %1486 = vmatpush1.msra.mxu0 0.0
        %1487 = vmatprep.subr.mxu0 0.0
        %1488 = vmatpush1.msra.mxu0 0.0
        %1489 = vmatprep.subr.mxu0 0.0
        %1490 = vmatpush1.msra.mxu0 0.0
        %1491 = vmatprep.subr.mxu0 0.0
        %1492 = vmatpush1.msra.mxu0 0.0
        %1493 = vmatprep.subr.mxu0 0.0
        %1494 = vmatpush1.msra.mxu0 0.0
        %1495 = vmatprep.subr.mxu0 0.0
        %1496 = vmatpush1.msra.mxu0 0.0
        %1497 = vmatprep.subr.mxu0 0.0
        %1498 = vmatpush1.msra.mxu0 0.0
        %1499 = vmatprep.subr.mxu0 0.0
        %1500 = vmatpush1.msra.mxu0 0.0
        %1501 = vmatprep.subr.mxu0 0.0
        %1502 = vmatpush1.msra.mxu0 0.0
        %1503 = vmatprep.subr.mxu0 0.0
        %1504 = vmatpush1.msra.mxu0 0.0
        %1505 = vmatprep.subr.mxu0 0.0
        %1506 = vmatpush1.msra.mxu0 0.0
        %1507 = vmatprep.subr.mxu0 0.0
        %1508 = vmatpush1.msra.mxu0 0.0
        %1509 = vmatprep.subr.mxu0 0.0
        %1510 = vmatpush1.msra.mxu0 0.0
        %1511 = vmatprep.subr.mxu0 0.0
        %1512 = vmatpush1.msra.mxu0 0.0
        %1513 = vmatprep.subr.mxu0 0.0
        %1514 = vmatpush1.msra.mxu0 0.0
        %1515 = vmatprep.subr.mxu0 0.0
        %1516 = vmatpush1.msra.mxu0 0.0
        %1517 = vmatprep.subr.mxu0 0.0
        %1518 = vmatpush1.msra.mxu0 0.0
        %1519 = vmatprep.subr.mxu0 0.0
        %1520 = vmatpush1.msra.mxu0 0.0
        %1521 = vmatprep.subr.mxu0 0.0
        %1522 = vmatpush1.msra.mxu0 0.0
        %1523 = vmatprep.subr.mxu0 0.0
        %1524 = vmatpush1.msra.mxu0 0.0
        %1525 = vmatprep.subr.mxu0 0.0
        %1526 = vmatpush1.msra.mxu0 0.0
        %1527 = vmatprep.subr.mxu0 0.0
        %1528 = vmatpush1.msra.mxu0 0.0
        %1529 = vmatprep.subr.mxu0 0.0
        %1530 = vmatpush1.msra.mxu0 0.0
        %1531 = vmatprep.mubr.f32.mxu0 0.0
        %1532 = vmatmul.mubr.f32.gmra.mrb[0].mxu0 %v1315
        %v1533 = vpop.f32.mrb[0].mxu0
        %v1534 = vadd.f32 0.0, %v1533
        %v1535 = vpop.f32.mrb[0].mxu0
        %1536 = vdwg.mxu0
        %1537 = vmatprep.subr.mxu0 0.0
        %1538 = vmatpush1.msra.mxu0 %v1463
        %1539 = vmatprep.subr.mxu0 0.0
        %1540 = vmatpush1.msra.mxu0 %v1464
        %1541 = vmatprep.subr.mxu0 0.0
        %1542 = vmatpush1.msra.mxu0 %v1465
        %1543 = vmatprep.subr.mxu0 0.0
        %1544 = vmatpush1.msra.mxu0 %v1466
        %1545 = vmatprep.subr.mxu0 0.0
        %1546 = vmatpush1.msra.mxu0 0.0
        %1547 = vmatprep.subr.mxu0 0.0
        %1548 = vmatpush1.msra.mxu0 0.0
        %1549 = vmatprep.subr.mxu0 0.0
        %1550 = vmatpush1.msra.mxu0 0.0
        %1551 = vmatprep.subr.mxu0 0.0
        %1552 = vmatpush1.msra.mxu0 0.0
        %1553 = vmatprep.subr.mxu0 0.0
        %1554 = vmatpush1.msra.mxu0 0.0
        %1555 = vmatprep.subr.mxu0 0.0
        %1556 = vmatpush1.msra.mxu0 0.0
        %1557 = vmatprep.subr.mxu0 0.0
        %1558 = vmatpush1.msra.mxu0 0.0
        %1559 = vmatprep.subr.mxu0 0.0
        %1560 = vmatpush1.msra.mxu0 0.0
        %1561 = vmatprep.subr.mxu0 0.0
        %1562 = vmatpush1.msra.mxu0 0.0
        %1563 = vmatprep.subr.mxu0 0.0
        %1564 = vmatpush1.msra.mxu0 0.0
        %1565 = vmatprep.subr.mxu0 0.0
        %1566 = vmatpush1.msra.mxu0 0.0
        %1567 = vmatprep.subr.mxu0 0.0
        %1568 = vmatpush1.msra.mxu0 0.0
        %1569 = vmatprep.subr.mxu0 0.0
        %1570 = vmatpush1.msra.mxu0 0.0
        %1571 = vmatprep.subr.mxu0 0.0
        %1572 = vmatpush1.msra.mxu0 0.0
        %1573 = vmatprep.subr.mxu0 0.0
        %1574 = vmatpush1.msra.mxu0 0.0
        %1575 = vmatprep.subr.mxu0 0.0
        %1576 = vmatpush1.msra.mxu0 0.0
        %1577 = vmatprep.subr.mxu0 0.0
        %1578 = vmatpush1.msra.mxu0 0.0
        %1579 = vmatprep.subr.mxu0 0.0
        %1580 = vmatpush1.msra.mxu0 0.0
        %1581 = vmatprep.subr.mxu0 0.0
        %1582 = vmatpush1.msra.mxu0 0.0
        %1583 = vmatprep.subr.mxu0 0.0
        %1584 = vmatpush1.msra.mxu0 0.0
        %1585 = vmatprep.subr.mxu0 0.0
        %1586 = vmatpush1.msra.mxu0 0.0
        %1587 = vmatprep.subr.mxu0 0.0
        %1588 = vmatpush1.msra.mxu0 0.0
        %1589 = vmatprep.subr.mxu0 0.0
        %1590 = vmatpush1.msra.mxu0 0.0
        %1591 = vmatprep.subr.mxu0 0.0
        %1592 = vmatpush1.msra.mxu0 0.0
        %1593 = vmatprep.subr.mxu0 0.0
        %1594 = vmatpush1.msra.mxu0 0.0
        %1595 = vmatprep.subr.mxu0 0.0
        %1596 = vmatpush1.msra.mxu0 0.0
        %1597 = vmatprep.subr.mxu0 0.0
        %1598 = vmatpush1.msra.mxu0 0.0
        %1599 = vmatprep.subr.mxu0 0.0
        %1600 = vmatpush1.msra.mxu0 0.0
        %1601 = vmatprep.mubr.f32.mxu0 0.0
        %1602 = vmatmul.mubr.f32.gmra.mrb[0].mxu0 %v1388
        %v1603 = vpop.f32.mrb[0].mxu0
        %v1604 = vadd.f32 0.0, %v1603
        %v1605 = vpop.f32.mrb[0].mxu0
        %1606 = vdwg.mxu0
        %v1607 = vadd.f32 %v1462, %v1534
        %v1608 = vadd.f32 %v1462, %v1604
        %v1611 = vcombine.high %v1607, %v1607
        %v1613 = vunpack.c.l.s4 1966171168
        %v1614 = vunpack.c.0.s8 %v1613
        %v1615 = vlaneseq
        %v1616 = vshrl.u32 %v1615, 7
        %v1617 = vsub.s32 %v1614, %v1616
        %v1618 = vrot.slane %v1607, %v1617
        %v1620 = vunpack.c.l.s4 1966171168
        %v1621 = vunpack.c.0.s8 %v1620
        %v1622 = vlaneseq
        %v1623 = vshrl.u32 %v1622, 7
        %v1624 = vsub.s32 %v1621, %v1623
        %v1625 = vrot.slane %v1611, %v1624
        %v1626 = vcombine.high %v1618, %v1618
        %v1627 = vcombine.high %v1625, %v1625
        %v1629 = vunpack.c.l.s4 1966171168
        %v1630 = vunpack.c.0.s8 %v1629
        %v1631 = vlaneseq
        %v1632 = vshrl.u32 %v1631, 7
        %v1633 = vsub.s32 %v1630, %v1632
        %v1634 = vrot.slane %v1618, %v1633
        %v1636 = vunpack.c.l.s4 1966171168
        %v1637 = vunpack.c.0.s8 %v1636
        %v1638 = vlaneseq
        %v1639 = vshrl.u32 %v1638, 7
        %v1640 = vsub.s32 %v1637, %v1639
        %v1641 = vrot.slane %v1625, %v1640
        %v1643 = vunpack.c.l.s4 1966171168
        %v1644 = vunpack.c.0.s8 %v1643
        %v1645 = vlaneseq
        %v1646 = vshrl.u32 %v1645, 7
        %v1647 = vsub.s32 %v1644, %v1646
        %v1648 = vrot.slane %v1626, %v1647
        %v1650 = vunpack.c.l.s4 1966171168
        %v1651 = vunpack.c.0.s8 %v1650
        %v1652 = vlaneseq
        %v1653 = vshrl.u32 %v1652, 7
        %v1654 = vsub.s32 %v1651, %v1653
        %v1655 = vrot.slane %v1627, %v1654
        %v1656 = vcombine.high %v1634, %v1634
        %v1657 = vcombine.high %v1641, %v1641
        %v1658 = vcombine.high %v1648, %v1648
        %v1659 = vcombine.high %v1655, %v1655
        %v1660 = vcombine.high %v1608, %v1608
        %v1662 = vunpack.c.l.s4 1966171168
        %v1663 = vunpack.c.0.s8 %v1662
        %v1664 = vlaneseq
        %v1665 = vshrl.u32 %v1664, 7
        %v1666 = vsub.s32 %v1663, %v1665
        %v1667 = vrot.slane %v1608, %v1666
        %v1669 = vunpack.c.l.s4 1966171168
        %v1670 = vunpack.c.0.s8 %v1669
        %v1671 = vlaneseq
        %v1672 = vshrl.u32 %v1671, 7
        %v1673 = vsub.s32 %v1670, %v1672
        %v1674 = vrot.slane %v1660, %v1673
        %v1675 = vcombine.high %v1667, %v1667
        %v1676 = vcombine.high %v1674, %v1674
        %v1678 = vunpack.c.l.s4 1966171168
        %v1679 = vunpack.c.0.s8 %v1678
        %v1680 = vlaneseq
        %v1681 = vshrl.u32 %v1680, 7
        %v1682 = vsub.s32 %v1679, %v1681
        %v1683 = vrot.slane %v1667, %v1682
        %v1685 = vunpack.c.l.s4 1966171168
        %v1686 = vunpack.c.0.s8 %v1685
        %v1687 = vlaneseq
        %v1688 = vshrl.u32 %v1687, 7
        %v1689 = vsub.s32 %v1686, %v1688
        %v1690 = vrot.slane %v1674, %v1689
        %v1692 = vunpack.c.l.s4 1966171168
        %v1693 = vunpack.c.0.s8 %v1692
        %v1694 = vlaneseq
        %v1695 = vshrl.u32 %v1694, 7
        %v1696 = vsub.s32 %v1693, %v1695
        %v1697 = vrot.slane %v1675, %v1696
        %v1699 = vunpack.c.l.s4 1966171168
        %v1700 = vunpack.c.0.s8 %v1699
        %v1701 = vlaneseq
        %v1702 = vshrl.u32 %v1701, 7
        %v1703 = vsub.s32 %v1700, %v1702
        %v1704 = vrot.slane %v1676, %v1703
        %v1705 = vcombine.high %v1683, %v1683
        %v1706 = vcombine.high %v1690, %v1690
        %v1707 = vcombine.high %v1697, %v1697
        %v1708 = vcombine.high %v1704, %v1704
        %v1709 = vlaneseq
        %v1710 = vshrl.u32 %v1709, 7
        %v1711 = vsub.s32 0, %v1710
        %v1712 = vrot.slane %v1634, %v1711
        %v1713 = vlaneseq
        %v1714 = vshrl.u32 %v1713, 7
        %v1715 = vsub.s32 0, %v1714
        %v1716 = vrot.slane %v1648, %v1715
        %v1717 = vlaneseq
        %v1718 = vshrl.u32 %v1717, 7
        %v1719 = vsub.s32 0, %v1718
        %v1720 = vrot.slane %v1656, %v1719
        %v1721 = vlaneseq
        %v1722 = vshrl.u32 %v1721, 7
        %v1723 = vsub.s32 0, %v1722
        %v1724 = vrot.slane %v1658, %v1723
        %v1725 = vlaneseq
        %v1726 = vshrl.u32 %v1725, 7
        %v1727 = vsub.s32 0, %v1726
        %v1728 = vrot.slane %v1641, %v1727
        %v1729 = vlaneseq
        %v1730 = vshrl.u32 %v1729, 7
        %v1731 = vsub.s32 0, %v1730
        %v1732 = vrot.slane %v1655, %v1731
        %v1733 = vlaneseq
        %v1734 = vshrl.u32 %v1733, 7
        %v1735 = vsub.s32 0, %v1734
        %v1736 = vrot.slane %v1657, %v1735
        %v1737 = vlaneseq
        %v1738 = vshrl.u32 %v1737, 7
        %v1739 = vsub.s32 0, %v1738
        %v1740 = vrot.slane %v1659, %v1739
        %v1741 = vlaneseq
        %v1742 = vshrl.u32 %v1741, 7
        %v1743 = vsub.s32 0, %v1742
        %v1744 = vrot.slane %v1683, %v1743
        %v1745 = vlaneseq
        %v1746 = vshrl.u32 %v1745, 7
        %v1747 = vsub.s32 0, %v1746
        %v1748 = vrot.slane %v1697, %v1747
        %v1749 = vlaneseq
        %v1750 = vshrl.u32 %v1749, 7
        %v1751 = vsub.s32 0, %v1750
        %v1752 = vrot.slane %v1705, %v1751
        %v1753 = vlaneseq
        %v1754 = vshrl.u32 %v1753, 7
        %v1755 = vsub.s32 0, %v1754
        %v1756 = vrot.slane %v1707, %v1755
        %v1757 = vlaneseq
        %v1758 = vshrl.u32 %v1757, 7
        %v1759 = vsub.s32 0, %v1758
        %v1760 = vrot.slane %v1690, %v1759
        %v1761 = vlaneseq
        %v1762 = vshrl.u32 %v1761, 7
        %v1763 = vsub.s32 0, %v1762
        %v1764 = vrot.slane %v1704, %v1763
        %v1765 = vlaneseq
        %v1766 = vshrl.u32 %v1765, 7
        %v1767 = vsub.s32 0, %v1766
        %v1768 = vrot.slane %v1706, %v1767
        %v1769 = vlaneseq
        %v1770 = vshrl.u32 %v1769, 7
        %v1771 = vsub.s32 0, %v1770
        %v1772 = vrot.slane %v1708, %v1771
        %v1789 = vadd.f32 %v1712, %v1460
        %v1790 = vadd.f32 %v1716, %v1460
        %v1791 = vadd.f32 %v1720, %v1460
        %v1792 = vadd.f32 %v1724, %v1460
        %v1793 = vadd.f32 %v1728, %v1460
        %v1794 = vadd.f32 %v1732, %v1460
        %v1795 = vadd.f32 %v1736, %v1460
        %v1796 = vadd.f32 %v1740, %v1460
        %v1797 = vadd.f32 %v1744, %v1461
        %v1798 = vadd.f32 %v1748, %v1461
        %v1799 = vadd.f32 %v1752, %v1461
        %v1800 = vadd.f32 %v1756, %v1461
        %v1801 = vadd.f32 %v1760, %v1461
        %v1802 = vadd.f32 %v1764, %v1461
        %v1803 = vadd.f32 %v1768, %v1461
        %v1804 = vadd.f32 %v1772, %v1461
        %v1805 = vld [vmem:[%s954] sm:$0x1]
        %v1807 = vlaneseq
        %v1808 = vshrl.u32 %v1807, 7
        %v1809 = vsub.s32 0, %v1808
        %v1810 = vrot.slane %v1805, %v1809
        %v1812 = vadd.f32 %v1789, %v1810
        %v1813 = vadd.f32 %v1790, %v1810
        %v1814 = vadd.f32 %v1791, %v1810
        %v1815 = vadd.f32 %v1792, %v1810
        %v1816 = vadd.f32 %v1793, %v1810
        %v1817 = vadd.f32 %v1794, %v1810
        %v1818 = vadd.f32 %v1795, %v1810
        %v1819 = vadd.f32 %v1796, %v1810
        %v1820 = vadd.f32 %v1797, %v1810
        %v1821 = vadd.f32 %v1798, %v1810
        %v1822 = vadd.f32 %v1799, %v1810
        %v1823 = vadd.f32 %v1800, %v1810
        %v1824 = vadd.f32 %v1801, %v1810
        %v1825 = vadd.f32 %v1802, %v1810
        %v1826 = vadd.f32 %v1803, %v1810
        %v1827 = vadd.f32 %v1804, %v1810
        %v1828 = vmax.f32 %v1812, 0.0
        %v1829 = vmax.f32 %v1813, 0.0
        %v1830 = vmax.f32 %v1814, 0.0
        %v1831 = vmax.f32 %v1815, 0.0
        %v1832 = vmax.f32 %v1816, 0.0
        %v1833 = vmax.f32 %v1817, 0.0
        %v1834 = vmax.f32 %v1818, 0.0
        %v1835 = vmax.f32 %v1819, 0.0
        %v1836 = vmax.f32 %v1820, 0.0
        %v1837 = vmax.f32 %v1821, 0.0
        %v1838 = vmax.f32 %v1822, 0.0
        %v1839 = vmax.f32 %v1823, 0.0
        %v1840 = vmax.f32 %v1824, 0.0
        %v1841 = vmax.f32 %v1825, 0.0
        %v1842 = vmax.f32 %v1826, 0.0
        %v1843 = vmax.f32 %v1827, 0.0
        %v1844 = vld [vmem:[%s1208] sm:$0x1]
        %v1846 = vlaneseq
        %v1847 = vshrl.u32 %v1846, 7
        %v1848 = vsub.s32 0, %v1847
        %v1849 = vrot.slane %v1844, %v1848
        %v1851 = vmul.f32 %v1828, %v1849
        %v1852 = vmul.f32 %v1829, %v1849
        %v1853 = vmul.f32 %v1830, %v1849
        %v1854 = vmul.f32 %v1831, %v1849
        %v1855 = vmul.f32 %v1832, %v1849
        %v1856 = vmul.f32 %v1833, %v1849
        %v1857 = vmul.f32 %v1834, %v1849
        %v1858 = vmul.f32 %v1835, %v1849
        %v1859 = vmul.f32 %v1836, %v1849
        %v1860 = vmul.f32 %v1837, %v1849
        %v1861 = vmul.f32 %v1838, %v1849
        %v1862 = vmul.f32 %v1839, %v1849
        %v1863 = vmul.f32 %v1840, %v1849
        %v1864 = vmul.f32 %v1841, %v1849
        %v1865 = vmul.f32 %v1842, %v1849
        %v1866 = vmul.f32 %v1843, %v1849
        %v1867 = vsel %vm1313, %v1851, 0.0
        %1868 = vadd.xlane.f32.xlu0 %v1867
        %v1869 = vpop.xlane.xlu0 %1868
        %v1870 = vsel %vm1313, %v1852, 0.0
        %1871 = vadd.xlane.f32.xlu0 %v1870
        %v1872 = vpop.xlane.xlu0 %1871
        %v1873 = vsel %vm1313, %v1853, 0.0
        %1874 = vadd.xlane.f32.xlu0 %v1873
        %v1875 = vpop.xlane.xlu0 %1874
        %v1876 = vsel %vm1313, %v1854, 0.0
        %1877 = vadd.xlane.f32.xlu0 %v1876
        %v1878 = vpop.xlane.xlu0 %1877
        %v1879 = vsel %vm1313, %v1855, 0.0
        %1880 = vadd.xlane.f32.xlu0 %v1879
        %v1881 = vpop.xlane.xlu0 %1880
        %v1882 = vsel %vm1313, %v1856, 0.0
        %1883 = vadd.xlane.f32.xlu0 %v1882
        %v1884 = vpop.xlane.xlu0 %1883
        %v1885 = vsel %vm1313, %v1857, 0.0
        %1886 = vadd.xlane.f32.xlu0 %v1885
        %v1887 = vpop.xlane.xlu0 %1886
        %v1888 = vsel %vm1313, %v1858, 0.0
        %1889 = vadd.xlane.f32.xlu0 %v1888
        %v1890 = vpop.xlane.xlu0 %1889
        %v1891 = vsel %vm1313, %v1859, 0.0
        %1892 = vadd.xlane.f32.xlu0 %v1891
        %v1893 = vpop.xlane.xlu0 %1892
        %v1894 = vsel %vm1313, %v1860, 0.0
        %1895 = vadd.xlane.f32.xlu0 %v1894
        %v1896 = vpop.xlane.xlu0 %1895
        %v1897 = vsel %vm1313, %v1861, 0.0
        %1898 = vadd.xlane.f32.xlu0 %v1897
        %v1899 = vpop.xlane.xlu0 %1898
        %v1900 = vsel %vm1313, %v1862, 0.0
        %1901 = vadd.xlane.f32.xlu0 %v1900
        %v1902 = vpop.xlane.xlu0 %1901
        %v1903 = vsel %vm1313, %v1863, 0.0
        %1904 = vadd.xlane.f32.xlu0 %v1903
        %v1905 = vpop.xlane.xlu0 %1904
        %v1906 = vsel %vm1313, %v1864, 0.0
        %1907 = vadd.xlane.f32.xlu0 %v1906
        %v1908 = vpop.xlane.xlu0 %1907
        %v1909 = vsel %vm1313, %v1865, 0.0
        %1910 = vadd.xlane.f32.xlu0 %v1909
        %v1911 = vpop.xlane.xlu0 %1910
        %v1912 = vsel %vm1313, %v1866, 0.0
        %1913 = vadd.xlane.f32.xlu0 %v1912
        %v1914 = vpop.xlane.xlu0 %1913
        %v1915 = vmul.f32 %v1869, 0.17677669
        %v1916 = vmul.f32 %v1872, 0.17677669
        %v1917 = vmul.f32 %v1875, 0.17677669
        %v1918 = vmul.f32 %v1878, 0.17677669
        %v1919 = vmul.f32 %v1881, 0.17677669
        %v1920 = vmul.f32 %v1884, 0.17677669
        %v1921 = vmul.f32 %v1887, 0.17677669
        %v1922 = vmul.f32 %v1890, 0.17677669
        %v1923 = vmul.f32 %v1893, 0.17677669
        %v1924 = vmul.f32 %v1896, 0.17677669
        %v1925 = vmul.f32 %v1899, 0.17677669
        %v1926 = vmul.f32 %v1902, 0.17677669
        %v1927 = vmul.f32 %v1905, 0.17677669
        %v1928 = vmul.f32 %v1908, 0.17677669
        %v1929 = vmul.f32 %v1911, 0.17677669
        %v1930 = vmul.f32 %v1914, 0.17677669
        %v1931 = vlaneseq
        %v1932 = vshrl.u32 %v1931, 7
        %v1933 = vlaneseq
        %v1934 = vand.u32 %v1933, 127
        %vm1935 = vcmp.le.s32.totalorder %v1934, %v1932
        %v1936 = vsel %vm1935, 1, 0
        %vm1937 = vcmp.eq.s32.totalorder %v1936, 1
        %v1954 = vlaneseq
        %v1955 = vshrl.u32 %v1954, 7
        %v1956 = vsub.s32 %v1934, %v1955
        %v1957 = vrot.slane %v1915, %v1956
        %v1958 = vlaneseq
        %v1959 = vshrl.u32 %v1958, 7
        %v1960 = vsub.s32 %v1934, %v1959
        %v1961 = vrot.slane %v1916, %v1960
        %v1962 = vlaneseq
        %v1963 = vshrl.u32 %v1962, 7
        %v1964 = vsub.s32 %v1934, %v1963
        %v1965 = vrot.slane %v1917, %v1964
        %v1966 = vlaneseq
        %v1967 = vshrl.u32 %v1966, 7
        %v1968 = vsub.s32 %v1934, %v1967
        %v1969 = vrot.slane %v1918, %v1968
        %v1970 = vlaneseq
        %v1971 = vshrl.u32 %v1970, 7
        %v1972 = vsub.s32 %v1934, %v1971
        %v1973 = vrot.slane %v1919, %v1972
        %v1974 = vlaneseq
        %v1975 = vshrl.u32 %v1974, 7
        %v1976 = vsub.s32 %v1934, %v1975
        %v1977 = vrot.slane %v1920, %v1976
        %v1978 = vlaneseq
        %v1979 = vshrl.u32 %v1978, 7
        %v1980 = vsub.s32 %v1934, %v1979
        %v1981 = vrot.slane %v1921, %v1980
        %v1982 = vlaneseq
        %v1983 = vshrl.u32 %v1982, 7
        %v1984 = vsub.s32 %v1934, %v1983
        %v1985 = vrot.slane %v1922, %v1984
        %v1986 = vlaneseq
        %v1987 = vshrl.u32 %v1986, 7
        %v1988 = vsub.s32 %v1934, %v1987
        %v1989 = vrot.slane %v1923, %v1988
        %v1990 = vlaneseq
        %v1991 = vshrl.u32 %v1990, 7
        %v1992 = vsub.s32 %v1934, %v1991
        %v1993 = vrot.slane %v1924, %v1992
        %v1994 = vlaneseq
        %v1995 = vshrl.u32 %v1994, 7
        %v1996 = vsub.s32 %v1934, %v1995
        %v1997 = vrot.slane %v1925, %v1996
        %v1998 = vlaneseq
        %v1999 = vshrl.u32 %v1998, 7
        %v2000 = vsub.s32 %v1934, %v1999
        %v2001 = vrot.slane %v1926, %v2000
        %v2002 = vlaneseq
        %v2003 = vshrl.u32 %v2002, 7
        %v2004 = vsub.s32 %v1934, %v2003
        %v2005 = vrot.slane %v1927, %v2004
        %v2006 = vlaneseq
        %v2007 = vshrl.u32 %v2006, 7
        %v2008 = vsub.s32 %v1934, %v2007
        %v2009 = vrot.slane %v1928, %v2008
        %v2010 = vlaneseq
        %v2011 = vshrl.u32 %v2010, 7
        %v2012 = vsub.s32 %v1934, %v2011
        %v2013 = vrot.slane %v1929, %v2012
        %v2014 = vlaneseq
        %v2015 = vshrl.u32 %v2014, 7
        %v2016 = vsub.s32 %v1934, %v2015
        %v2017 = vrot.slane %v1930, %v2016
        %vm2018 = vcmask 1041409
        %v2019 = vsel %vm2018, %v1961, %v1957
        %vm2020 = vcmask 1042434
        %v2021 = vsel %vm2020, %v1965, %v2019
        %vm2022 = vcmask 1043459
        %v2023 = vsel %vm2022, %v1969, %v2021
        %vm2024 = vcmask 1044484
        %v2025 = vsel %vm2024, %v1973, %v2023
        %vm2026 = vcmask 1045509
        %v2027 = vsel %vm2026, %v1977, %v2025
        %vm2028 = vcmask 1046534
        %v2029 = vsel %vm2028, %v1981, %v2027
        %vm2030 = vcmask 1047559
        %v2031 = vsel %vm2030, %v1985, %v2029
        %v2032 = vsel %vm2018, %v1993, %v1989
        %v2033 = vsel %vm2020, %v1997, %v2032
        %v2034 = vsel %vm2022, %v2001, %v2033
        %v2035 = vsel %vm2024, %v2005, %v2034
        %v2036 = vsel %vm2026, %v2009, %v2035
        %v2037 = vsel %vm2028, %v2013, %v2036
        %v2038 = vsel %vm2030, %v2017, %v2037
        %v2041 = vsel %vm1937, %v2031, -1e+30
        %v2042 = vsel %vm1937, %v2038, -1e+30
        %vm2043 = vcmask 64512
        %v2044 = vsel %vm2043, %v2041, -inf
        %2045 = vmax.xlane.f32.xlu0 %v2044
        %v2046 = vpop.xlane.xlu0 %2045
        %v2047 = vsel %vm2043, %v2042, -inf
        %2048 = vmax.xlane.f32.xlu0 %v2047
        %v2049 = vpop.xlane.xlu0 %2048
        %v2050 = vsub.f32 %v2041, %v2046
        %v2051 = vsub.f32 %v2042, %v2049
        %v2052 = vmul.f32 %v2050, 1.442695
        %v2053 = vpow.pop %v2052
        %v2054 = vmul.f32 %v2051, 1.442695
        %v2055 = vpow.pop %v2054
        %v2056 = vsel %vm2043, %v2053, 0.0
        %2057 = vadd.xlane.f32.xlu0 %v2056
        %v2058 = vpop.xlane.xlu0 %2057
        %v2059 = vsel %vm2043, %v2055, 0.0
        %2060 = vadd.xlane.f32.xlu0 %v2059
        %v2061 = vpop.xlane.xlu0 %2060
        %v2062 = vrcp.pop %v2058
        %v2063 = vrcp.pop %v2061
        %v2064 = vmul.f32 %v2053, %v2062
        %v2065 = vmul.f32 %v2055, %v2063
        %v2066 = vld [vmem:[%s1217] sm:$0xff]
        %v2067 = vld [vmem:[%s1217 + $0x8] sm:$0xff]
        %v2068 = vld [vmem:[%s1217 + $0x10] sm:$0xff]
        %v2069 = vld [vmem:[%s1217 + $0x18] sm:$0xff]
        %2070 = vmatprep.subr.mxu0 0.0
        %2071 = vmatpush1.msra.mxu0 %v2066
        %2072 = vmatprep.subr.mxu0 0.0
        %2073 = vmatpush1.msra.mxu0 %v2067
        %2074 = vmatprep.subr.mxu0 0.0
        %2075 = vmatpush1.msra.mxu0 %v2068
        %2076 = vmatprep.subr.mxu0 0.0
        %2077 = vmatpush1.msra.mxu0 %v2069
        %2078 = vmatprep.subr.mxu0 0.0
        %2079 = vmatpush1.msra.mxu0 0.0
        %2080 = vmatprep.subr.mxu0 0.0
        %2081 = vmatpush1.msra.mxu0 0.0
        %2082 = vmatprep.subr.mxu0 0.0
        %2083 = vmatpush1.msra.mxu0 0.0
        %2084 = vmatprep.subr.mxu0 0.0
        %2085 = vmatpush1.msra.mxu0 0.0
        %2086 = vmatprep.subr.mxu0 0.0
        %2087 = vmatpush1.msra.mxu0 0.0
        %2088 = vmatprep.subr.mxu0 0.0
        %2089 = vmatpush1.msra.mxu0 0.0
        %2090 = vmatprep.subr.mxu0 0.0
        %2091 = vmatpush1.msra.mxu0 0.0
        %2092 = vmatprep.subr.mxu0 0.0
        %2093 = vmatpush1.msra.mxu0 0.0
        %2094 = vmatprep.subr.mxu0 0.0
        %2095 = vmatpush1.msra.mxu0 0.0
        %2096 = vmatprep.subr.mxu0 0.0
        %2097 = vmatpush1.msra.mxu0 0.0
        %2098 = vmatprep.subr.mxu0 0.0
        %2099 = vmatpush1.msra.mxu0 0.0
        %2100 = vmatprep.subr.mxu0 0.0
        %2101 = vmatpush1.msra.mxu0 0.0
        %2102 = vmatprep.subr.mxu0 0.0
        %2103 = vmatpush1.msra.mxu0 0.0
        %2104 = vmatprep.subr.mxu0 0.0
        %2105 = vmatpush1.msra.mxu0 0.0
        %2106 = vmatprep.subr.mxu0 0.0
        %2107 = vmatpush1.msra.mxu0 0.0
        %2108 = vmatprep.subr.mxu0 0.0
        %2109 = vmatpush1.msra.mxu0 0.0
        %2110 = vmatprep.subr.mxu0 0.0
        %2111 = vmatpush1.msra.mxu0 0.0
        %2112 = vmatprep.subr.mxu0 0.0
        %2113 = vmatpush1.msra.mxu0 0.0
        %2114 = vmatprep.subr.mxu0 0.0
        %2115 = vmatpush1.msra.mxu0 0.0
        %2116 = vmatprep.subr.mxu0 0.0
        %2117 = vmatpush1.msra.mxu0 0.0
        %2118 = vmatprep.subr.mxu0 0.0
        %2119 = vmatpush1.msra.mxu0 0.0
        %2120 = vmatprep.subr.mxu0 0.0
        %2121 = vmatpush1.msra.mxu0 0.0
        %2122 = vmatprep.subr.mxu0 0.0
        %2123 = vmatpush1.msra.mxu0 0.0
        %2124 = vmatprep.subr.mxu0 0.0
        %2125 = vmatpush1.msra.mxu0 0.0
        %2126 = vmatprep.subr.mxu0 0.0
        %2127 = vmatpush1.msra.mxu0 0.0
        %2128 = vmatprep.subr.mxu0 0.0
        %2129 = vmatpush1.msra.mxu0 0.0
        %2130 = vmatprep.subr.mxu0 0.0
        %2131 = vmatpush1.msra.mxu0 0.0
        %2132 = vmatprep.subr.mxu0 0.0
        %2133 = vmatpush1.msra.mxu0 0.0
        %2134 = vmatprep.mubr.f32.mxu0 0.0
        %2135 = vmatmul.mubr.f32.gmra.mrb[0].mxu0 %v1315
        %v2136 = vpop.f32.mrb[0].mxu0
        %v2137 = vadd.f32 0.0, %v2136
        %v2138 = vpop.f32.mrb[0].mxu0
        %2139 = vdwg.mxu0
        %2140 = vmatprep.subr.mxu0 0.0
        %2141 = vmatpush1.msra.mxu0 %v2066
        %2142 = vmatprep.subr.mxu0 0.0
        %2143 = vmatpush1.msra.mxu0 %v2067
        %2144 = vmatprep.subr.mxu0 0.0
        %2145 = vmatpush1.msra.mxu0 %v2068
        %2146 = vmatprep.subr.mxu0 0.0
        %2147 = vmatpush1.msra.mxu0 %v2069
        %2148 = vmatprep.subr.mxu0 0.0
        %2149 = vmatpush1.msra.mxu0 0.0
        %2150 = vmatprep.subr.mxu0 0.0
        %2151 = vmatpush1.msra.mxu0 0.0
        %2152 = vmatprep.subr.mxu0 0.0
        %2153 = vmatpush1.msra.mxu0 0.0
        %2154 = vmatprep.subr.mxu0 0.0
        %2155 = vmatpush1.msra.mxu0 0.0
        %2156 = vmatprep.subr.mxu0 0.0
        %2157 = vmatpush1.msra.mxu0 0.0
        %2158 = vmatprep.subr.mxu0 0.0
        %2159 = vmatpush1.msra.mxu0 0.0
        %2160 = vmatprep.subr.mxu0 0.0
        %2161 = vmatpush1.msra.mxu0 0.0
        %2162 = vmatprep.subr.mxu0 0.0
        %2163 = vmatpush1.msra.mxu0 0.0
        %2164 = vmatprep.subr.mxu0 0.0
        %2165 = vmatpush1.msra.mxu0 0.0
        %2166 = vmatprep.subr.mxu0 0.0
        %2167 = vmatpush1.msra.mxu0 0.0
        %2168 = vmatprep.subr.mxu0 0.0
        %2169 = vmatpush1.msra.mxu0 0.0
        %2170 = vmatprep.subr.mxu0 0.0
        %2171 = vmatpush1.msra.mxu0 0.0
        %2172 = vmatprep.subr.mxu0 0.0
        %2173 = vmatpush1.msra.mxu0 0.0
        %2174 = vmatprep.subr.mxu0 0.0
        %2175 = vmatpush1.msra.mxu0 0.0
        %2176 = vmatprep.subr.mxu0 0.0
        %2177 = vmatpush1.msra.mxu0 0.0
        %2178 = vmatprep.subr.mxu0 0.0
        %2179 = vmatpush1.msra.mxu0 0.0
        %2180 = vmatprep.subr.mxu0 0.0
        %2181 = vmatpush1.msra.mxu0 0.0
        %2182 = vmatprep.subr.mxu0 0.0
        %2183 = vmatpush1.msra.mxu0 0.0
        %2184 = vmatprep.subr.mxu0 0.0
        %2185 = vmatpush1.msra.mxu0 0.0
        %2186 = vmatprep.subr.mxu0 0.0
        %2187 = vmatpush1.msra.mxu0 0.0
        %2188 = vmatprep.subr.mxu0 0.0
        %2189 = vmatpush1.msra.mxu0 0.0
        %2190 = vmatprep.subr.mxu0 0.0
        %2191 = vmatpush1.msra.mxu0 0.0
        %2192 = vmatprep.subr.mxu0 0.0
        %2193 = vmatpush1.msra.mxu0 0.0
        %2194 = vmatprep.subr.mxu0 0.0
        %2195 = vmatpush1.msra.mxu0 0.0
        %2196 = vmatprep.subr.mxu0 0.0
        %2197 = vmatpush1.msra.mxu0 0.0
        %2198 = vmatprep.subr.mxu0 0.0
        %2199 = vmatpush1.msra.mxu0 0.0
        %2200 = vmatprep.subr.mxu0 0.0
        %2201 = vmatpush1.msra.mxu0 0.0
        %2202 = vmatprep.subr.mxu0 0.0
        %2203 = vmatpush1.msra.mxu0 0.0
        %2204 = vmatprep.mubr.f32.mxu0 0.0
        %2205 = vmatmul.mubr.f32.gmra.mrb[0].mxu0 %v1388
        %v2206 = vpop.f32.mrb[0].mxu0
        %v2207 = vadd.f32 0.0, %v2206
        %v2208 = vpop.f32.mrb[0].mxu0
        %2209 = vdwg.mxu0
        %v2211 = vsel %vm2043, %v2064, 0
        %2213 = vmatprep.subr.mxu0 0.0
        %2214 = vmatpush1.msra.mxu0 %v2137
        %2215 = vmatprep.subr.mxu0 0.0
        %2216 = vmatpush1.msra.mxu0 0.0
        %2217 = vmatprep.subr.mxu0 0.0
        %2218 = vmatpush1.msra.mxu0 0.0
        %2219 = vmatprep.subr.mxu0 0.0
        %2220 = vmatpush1.msra.mxu0 0.0
        %2221 = vmatprep.subr.mxu0 0.0
        %2222 = vmatpush1.msra.mxu0 0.0
        %2223 = vmatprep.subr.mxu0 0.0
        %2224 = vmatpush1.msra.mxu0 0.0
        %2225 = vmatprep.subr.mxu0 0.0
        %2226 = vmatpush1.msra.mxu0 0.0
        %2227 = vmatprep.subr.mxu0 0.0
        %2228 = vmatpush1.msra.mxu0 0.0
        %2229 = vmatprep.subr.mxu0 0.0
        %2230 = vmatpush1.msra.mxu0 0.0
        %2231 = vmatprep.subr.mxu0 0.0
        %2232 = vmatpush1.msra.mxu0 0.0
        %2233 = vmatprep.subr.mxu0 0.0
        %2234 = vmatpush1.msra.mxu0 0.0
        %2235 = vmatprep.subr.mxu0 0.0
        %2236 = vmatpush1.msra.mxu0 0.0
        %2237 = vmatprep.subr.mxu0 0.0
        %2238 = vmatpush1.msra.mxu0 0.0
        %2239 = vmatprep.subr.mxu0 0.0
        %2240 = vmatpush1.msra.mxu0 0.0
        %2241 = vmatprep.subr.mxu0 0.0
        %2242 = vmatpush1.msra.mxu0 0.0
        %2243 = vmatprep.subr.mxu0 0.0
        %2244 = vmatpush1.msra.mxu0 0.0
        %2245 = vmatprep.subr.mxu0 0.0
        %2246 = vmatpush1.msra.mxu0 0.0
        %2247 = vmatprep.subr.mxu0 0.0
        %2248 = vmatpush1.msra.mxu0 0.0
        %2249 = vmatprep.subr.mxu0 0.0
        %2250 = vmatpush1.msra.mxu0 0.0
        %2251 = vmatprep.subr.mxu0 0.0
        %2252 = vmatpush1.msra.mxu0 0.0
        %2253 = vmatprep.subr.mxu0 0.0
        %2254 = vmatpush1.msra.mxu0 0.0
        %2255 = vmatprep.subr.mxu0 0.0
        %2256 = vmatpush1.msra.mxu0 0.0
        %2257 = vmatprep.subr.mxu0 0.0
        %2258 = vmatpush1.msra.mxu0 0.0
        %2259 = vmatprep.subr.mxu0 0.0
        %2260 = vmatpush1.msra.mxu0 0.0
        %2261 = vmatprep.subr.mxu0 0.0
        %2262 = vmatpush1.msra.mxu0 0.0
        %2263 = vmatprep.subr.mxu0 0.0
        %2264 = vmatpush1.msra.mxu0 0.0
        %2265 = vmatprep.subr.mxu0 0.0
        %2266 = vmatpush1.msra.mxu0 0.0
        %2267 = vmatprep.subr.mxu0 0.0
        %2268 = vmatpush1.msra.mxu0 0.0
        %2269 = vmatprep.subr.mxu0 0.0
        %2270 = vmatpush1.msra.mxu0 0.0
        %2271 = vmatprep.subr.mxu0 0.0
        %2272 = vmatpush1.msra.mxu0 0.0
        %2273 = vmatprep.subr.mxu0 0.0
        %2274 = vmatpush1.msra.mxu0 0.0
        %2275 = vmatprep.subr.mxu0 0.0
        %2276 = vmatpush1.msra.mxu0 0.0
        %2277 = vmatprep.mubr.f32.mxu0 0.0
        %2278 = vmatmul.mubr.f32.gmra.mrb[0].mxu0 %v2211
        %v2279 = vpop.f32.mrb[0].mxu0
        %v2280 = vadd.f32 0.0, %v2279
        %v2281 = vpop.f32.mrb[0].mxu0
        %2282 = vdwg.mxu0
        %v2284 = vsel %vm2043, %v2065, 0
        %2286 = vmatprep.subr.mxu0 0.0
        %2287 = vmatpush1.msra.mxu0 %v2207
        %2288 = vmatprep.subr.mxu0 0.0
        %2289 = vmatpush1.msra.mxu0 0.0
        %2290 = vmatprep.subr.mxu0 0.0
        %2291 = vmatpush1.msra.mxu0 0.0
        %2292 = vmatprep.subr.mxu0 0.0
        %2293 = vmatpush1.msra.mxu0 0.0
        %2294 = vmatprep.subr.mxu0 0.0
        %2295 = vmatpush1.msra.mxu0 0.0
        %2296 = vmatprep.subr.mxu0 0.0
        %2297 = vmatpush1.msra.mxu0 0.0
        %2298 = vmatprep.subr.mxu0 0.0
        %2299 = vmatpush1.msra.mxu0 0.0
        %2300 = vmatprep.subr.mxu0 0.0
        %2301 = vmatpush1.msra.mxu0 0.0
        %2302 = vmatprep.subr.mxu0 0.0
        %2303 = vmatpush1.msra.mxu0 0.0
        %2304 = vmatprep.subr.mxu0 0.0
        %2305 = vmatpush1.msra.mxu0 0.0
        %2306 = vmatprep.subr.mxu0 0.0
        %2307 = vmatpush1.msra.mxu0 0.0
        %2308 = vmatprep.subr.mxu0 0.0
        %2309 = vmatpush1.msra.mxu0 0.0
        %2310 = vmatprep.subr.mxu0 0.0
        %2311 = vmatpush1.msra.mxu0 0.0
        %2312 = vmatprep.subr.mxu0 0.0
        %2313 = vmatpush1.msra.mxu0 0.0
        %2314 = vmatprep.subr.mxu0 0.0
        %2315 = vmatpush1.msra.mxu0 0.0
        %2316 = vmatprep.subr.mxu0 0.0
        %2317 = vmatpush1.msra.mxu0 0.0
        %2318 = vmatprep.subr.mxu0 0.0
        %2319 = vmatpush1.msra.mxu0 0.0
        %2320 = vmatprep.subr.mxu0 0.0
        %2321 = vmatpush1.msra.mxu0 0.0
        %2322 = vmatprep.subr.mxu0 0.0
        %2323 = vmatpush1.msra.mxu0 0.0
        %2324 = vmatprep.subr.mxu0 0.0
        %2325 = vmatpush1.msra.mxu0 0.0
        %2326 = vmatprep.subr.mxu0 0.0
        %2327 = vmatpush1.msra.mxu0 0.0
        %2328 = vmatprep.subr.mxu0 0.0
        %2329 = vmatpush1.msra.mxu0 0.0
        %2330 = vmatprep.subr.mxu0 0.0
        %2331 = vmatpush1.msra.mxu0 0.0
        %2332 = vmatprep.subr.mxu0 0.0
        %2333 = vmatpush1.msra.mxu0 0.0
        %2334 = vmatprep.subr.mxu0 0.0
        %2335 = vmatpush1.msra.mxu0 0.0
        %2336 = vmatprep.subr.mxu0 0.0
        %2337 = vmatpush1.msra.mxu0 0.0
        %2338 = vmatprep.subr.mxu0 0.0
        %2339 = vmatpush1.msra.mxu0 0.0
        %2340 = vmatprep.subr.mxu0 0.0
        %2341 = vmatpush1.msra.mxu0 0.0
        %2342 = vmatprep.subr.mxu0 0.0
        %2343 = vmatpush1.msra.mxu0 0.0
        %2344 = vmatprep.subr.mxu0 0.0
        %2345 = vmatpush1.msra.mxu0 0.0
        %2346 = vmatprep.subr.mxu0 0.0
        %2347 = vmatpush1.msra.mxu0 0.0
        %2348 = vmatprep.subr.mxu0 0.0
        %2349 = vmatpush1.msra.mxu0 0.0
        %2350 = vmatprep.mubr.f32.mxu0 0.0
        %2351 = vmatmul.mubr.f32.gmra.mrb[0].mxu0 %v2284
        %v2352 = vpop.f32.mrb[0].mxu0
        %v2353 = vadd.f32 0.0, %v2352
        %v2354 = vpop.f32.mrb[0].mxu0
        %2355 = vdwg.mxu0
        %v2356 = vld [vmem:[#allocation4] sm:$0xff]
        %v2357 = vld [vmem:[#allocation4 + $0x8] sm:$0xff]
        %v2358 = vld [vmem:[%s1225] sm:$0xff]
        %v2360 = vsel %vm2043, %v2280, 0
        %2362 = vmatprep.subr.mxu0 0.0
        %2363 = vmatpush1.msra.mxu0 %v2358
        %2364 = vmatprep.subr.mxu0 0.0
        %2365 = vmatpush1.msra.mxu0 0.0
        %2366 = vmatprep.subr.mxu0 0.0
        %2367 = vmatpush1.msra.mxu0 0.0
        %2368 = vmatprep.subr.mxu0 0.0
        %2369 = vmatpush1.msra.mxu0 0.0
        %2370 = vmatprep.subr.mxu0 0.0
        %2371 = vmatpush1.msra.mxu0 0.0
        %2372 = vmatprep.subr.mxu0 0.0
        %2373 = vmatpush1.msra.mxu0 0.0
        %2374 = vmatprep.subr.mxu0 0.0
        %2375 = vmatpush1.msra.mxu0 0.0
        %2376 = vmatprep.subr.mxu0 0.0
        %2377 = vmatpush1.msra.mxu0 0.0
        %2378 = vmatprep.subr.mxu0 0.0
        %2379 = vmatpush1.msra.mxu0 0.0
        %2380 = vmatprep.subr.mxu0 0.0
        %2381 = vmatpush1.msra.mxu0 0.0
        %2382 = vmatprep.subr.mxu0 0.0
        %2383 = vmatpush1.msra.mxu0 0.0
        %2384 = vmatprep.subr.mxu0 0.0
        %2385 = vmatpush1.msra.mxu0 0.0
        %2386 = vmatprep.subr.mxu0 0.0
        %2387 = vmatpush1.msra.mxu0 0.0
        %2388 = vmatprep.subr.mxu0 0.0
        %2389 = vmatpush1.msra.mxu0 0.0
        %2390 = vmatprep.subr.mxu0 0.0
        %2391 = vmatpush1.msra.mxu0 0.0
        %2392 = vmatprep.subr.mxu0 0.0
        %2393 = vmatpush1.msra.mxu0 0.0
        %2394 = vmatprep.subr.mxu0 0.0
        %2395 = vmatpush1.msra.mxu0 0.0
        %2396 = vmatprep.subr.mxu0 0.0
        %2397 = vmatpush1.msra.mxu0 0.0
        %2398 = vmatprep.subr.mxu0 0.0
        %2399 = vmatpush1.msra.mxu0 0.0
        %2400 = vmatprep.subr.mxu0 0.0
        %2401 = vmatpush1.msra.mxu0 0.0
        %2402 = vmatprep.subr.mxu0 0.0
        %2403 = vmatpush1.msra.mxu0 0.0
        %2404 = vmatprep.subr.mxu0 0.0
        %2405 = vmatpush1.msra.mxu0 0.0
        %2406 = vmatprep.subr.mxu0 0.0
        %2407 = vmatpush1.msra.mxu0 0.0
        %2408 = vmatprep.subr.mxu0 0.0
        %2409 = vmatpush1.msra.mxu0 0.0
        %2410 = vmatprep.subr.mxu0 0.0
        %2411 = vmatpush1.msra.mxu0 0.0
        %2412 = vmatprep.subr.mxu0 0.0
        %2413 = vmatpush1.msra.mxu0 0.0
        %2414 = vmatprep.subr.mxu0 0.0
        %2415 = vmatpush1.msra.mxu0 0.0
        %2416 = vmatprep.subr.mxu0 0.0
        %2417 = vmatpush1.msra.mxu0 0.0
        %2418 = vmatprep.subr.mxu0 0.0
        %2419 = vmatpush1.msra.mxu0 0.0
        %2420 = vmatprep.subr.mxu0 0.0
        %2421 = vmatpush1.msra.mxu0 0.0
        %2422 = vmatprep.subr.mxu0 0.0
        %2423 = vmatpush1.msra.mxu0 0.0
        %2424 = vmatprep.subr.mxu0 0.0
        %2425 = vmatpush1.msra.mxu0 0.0
        %2426 = vmatprep.mubr.f32.mxu0 0.0
        %2427 = vmatmul.mubr.f32.gmra.mrb[0].mxu0 %v2360
        %v2428 = vpop.f32.mrb[0].mxu0
        %v2429 = vadd.f32 0.0, %v2428
        %v2430 = vpop.f32.mrb[0].mxu0
        %2431 = vdwg.mxu0
        %v2433 = vsel %vm2043, %v2353, 0
        %2435 = vmatprep.subr.mxu0 0.0
        %2436 = vmatpush1.msra.mxu0 %v2358
        %2437 = vmatprep.subr.mxu0 0.0
        %2438 = vmatpush1.msra.mxu0 0.0
        %2439 = vmatprep.subr.mxu0 0.0
        %2440 = vmatpush1.msra.mxu0 0.0
        %2441 = vmatprep.subr.mxu0 0.0
        %2442 = vmatpush1.msra.mxu0 0.0
        %2443 = vmatprep.subr.mxu0 0.0
        %2444 = vmatpush1.msra.mxu0 0.0
        %2445 = vmatprep.subr.mxu0 0.0
        %2446 = vmatpush1.msra.mxu0 0.0
        %2447 = vmatprep.subr.mxu0 0.0
        %2448 = vmatpush1.msra.mxu0 0.0
        %2449 = vmatprep.subr.mxu0 0.0
        %2450 = vmatpush1.msra.mxu0 0.0
        %2451 = vmatprep.subr.mxu0 0.0
        %2452 = vmatpush1.msra.mxu0 0.0
        %2453 = vmatprep.subr.mxu0 0.0
        %2454 = vmatpush1.msra.mxu0 0.0
        %2455 = vmatprep.subr.mxu0 0.0
        %2456 = vmatpush1.msra.mxu0 0.0
        %2457 = vmatprep.subr.mxu0 0.0
        %2458 = vmatpush1.msra.mxu0 0.0
        %2459 = vmatprep.subr.mxu0 0.0
        %2460 = vmatpush1.msra.mxu0 0.0
        %2461 = vmatprep.subr.mxu0 0.0
        %2462 = vmatpush1.msra.mxu0 0.0
        %2463 = vmatprep.subr.mxu0 0.0
        %2464 = vmatpush1.msra.mxu0 0.0
        %2465 = vmatprep.subr.mxu0 0.0
        %2466 = vmatpush1.msra.mxu0 0.0
        %2467 = vmatprep.subr.mxu0 0.0
        %2468 = vmatpush1.msra.mxu0 0.0
        %2469 = vmatprep.subr.mxu0 0.0
        %2470 = vmatpush1.msra.mxu0 0.0
        %2471 = vmatprep.subr.mxu0 0.0
        %2472 = vmatpush1.msra.mxu0 0.0
        %2473 = vmatprep.subr.mxu0 0.0
        %2474 = vmatpush1.msra.mxu0 0.0
        %2475 = vmatprep.subr.mxu0 0.0
        %2476 = vmatpush1.msra.mxu0 0.0
        %2477 = vmatprep.subr.mxu0 0.0
        %2478 = vmatpush1.msra.mxu0 0.0
        %2479 = vmatprep.subr.mxu0 0.0
        %2480 = vmatpush1.msra.mxu0 0.0
        %2481 = vmatprep.subr.mxu0 0.0
        %2482 = vmatpush1.msra.mxu0 0.0
        %2483 = vmatprep.subr.mxu0 0.0
        %2484 = vmatpush1.msra.mxu0 0.0
        %2485 = vmatprep.subr.mxu0 0.0
        %2486 = vmatpush1.msra.mxu0 0.0
        %2487 = vmatprep.subr.mxu0 0.0
        %2488 = vmatpush1.msra.mxu0 0.0
        %2489 = vmatprep.subr.mxu0 0.0
        %2490 = vmatpush1.msra.mxu0 0.0
        %2491 = vmatprep.subr.mxu0 0.0
        %2492 = vmatpush1.msra.mxu0 0.0
        %2493 = vmatprep.subr.mxu0 0.0
        %2494 = vmatpush1.msra.mxu0 0.0
        %2495 = vmatprep.subr.mxu0 0.0
        %2496 = vmatpush1.msra.mxu0 0.0
        %2497 = vmatprep.subr.mxu0 0.0
        %2498 = vmatpush1.msra.mxu0 0.0
        %2499 = vmatprep.mubr.f32.mxu0 0.0
        %2500 = vmatmul.mubr.f32.gmra.mrb[0].mxu0 %v2433
        %v2501 = vpop.f32.mrb[0].mxu0
        %v2502 = vadd.f32 0.0, %v2501
        %v2503 = vpop.f32.mrb[0].mxu0
        %2504 = vdwg.mxu0
        %v2505 = vadd.f32 %v2356, %v2429
        %v2506 = vadd.f32 %v2357, %v2502
        %2507 = vst.msk [vmem:[#allocation4] sm:$0xff] %vm1313, %v2505
        %2508 = vst.msk [vmem:[#allocation4 + $0x8] sm:$0xff] %vm1313, %v2506
        %p2509 = scmp.eq.s32.totalorder %s55, 3
        // Predicated region
        $region161: #{_lambda_.1} parent=107 // pred_check
          %p2510 = pneg %p2509
        $region162: #{_lambda_.1} parent=107 // pred_check_branch
          %2512 = sbr.rel (%p2510) target = $region164
        $region163: #{_lambda_.1} parent=107 // pred_region
          %v2513 = vld [vmem:[#allocation4] sm:$0xff]
          %v2514 = vld [vmem:[#allocation4 + $0x8] sm:$0xff]
          %v2515 = vld [vmem:[%s970] sm:$0x1]
          %v2516 = vld [vmem:[%s978] sm:$0x1]
          %v2517 = vsel %vm1313, %v2513, 0.0
          %2518 = vadd.xlane.f32.xlu0 %v2517
          %v2519 = vpop.xlane.xlu0 %2518
          %v2520 = vsel %vm1313, %v2514, 0.0
          %2521 = vadd.xlane.f32.xlu0 %v2520
          %v2522 = vpop.xlane.xlu0 %2521
          %v2523 = vrcp.pop 32.0
          %v2524 = vmul.f32 %v2519, %v2523
          %v2525 = vmul.f32 %v2522, %v2523
          %v2526 = vsub.f32 %v2513, %v2524
          %v2527 = vsub.f32 %v2514, %v2525
          %v2528 = vmul.f32 %v2526, %v2526
          %v2529 = vmul.f32 %v2527, %v2527
          %v2530 = vsel %vm1313, %v2528, 0.0
          %2531 = vadd.xlane.f32.xlu0 %v2530
          %v2532 = vpop.xlane.xlu0 %2531
          %v2533 = vsel %vm1313, %v2529, 0.0
          %2534 = vadd.xlane.f32.xlu0 %v2533
          %v2535 = vpop.xlane.xlu0 %2534
          %v2536 = vmul.f32 %v2532, %v2523
          %v2537 = vmul.f32 %v2535, %v2523
          %v2538 = vadd.f32 %v2536, 1e-05
          %v2539 = vadd.f32 %v2537, 1e-05
          %v2540 = vrsqrt.pop %v2538
          %v2541 = vrsqrt.pop %v2539
          %v2542 = vmul.f32 %v2526, %v2540
          %v2543 = vmul.f32 %v2527, %v2541
          %v2545 = vlaneseq
          %v2546 = vshrl.u32 %v2545, 7
          %v2547 = vsub.s32 0, %v2546
          %v2548 = vrot.slane %v2515, %v2547
          %v2550 = vmul.f32 %v2542, %v2548
          %v2551 = vmul.f32 %v2543, %v2548
          %v2553 = vlaneseq
          %v2554 = vshrl.u32 %v2553, 7
          %v2555 = vsub.s32 0, %v2554
          %v2556 = vrot.slane %v2516, %v2555
          %v2558 = vadd.f32 %v2550, %v2556
          %v2559 = vadd.f32 %v2551, %v2556
          %v2560 = vld [vmem:[%s987] sm:$0xff]
          %v2561 = vld [vmem:[%s987 + $0x8] sm:$0xff]
          %v2562 = vld [vmem:[%s987 + $0x10] sm:$0xff]
          %v2563 = vld [vmem:[%s987 + $0x18] sm:$0xff]
          %v2564 = vld [vmem:[%s995] sm:$0x1]
          %v2566 = vlaneseq
          %v2567 = vshrl.u32 %v2566, 7
          %v2568 = vsub.s32 0, %v2567
          %v2569 = vrot.slane %v2564, %v2568
          %v2572 = vsel %vm1313, %v2558, 0
          %2574 = vmatprep.subr.mxu0 0.0
          %2575 = vmatpush1.msra.mxu0 %v2560
          %2576 = vmatprep.subr.mxu0 0.0
          %2577 = vmatpush1.msra.mxu0 %v2561
          %2578 = vmatprep.subr.mxu0 0.0
          %2579 = vmatpush1.msra.mxu0 %v2562
          %2580 = vmatprep.subr.mxu0 0.0
          %2581 = vmatpush1.msra.mxu0 %v2563
          %2582 = vmatprep.subr.mxu0 0.0
          %2583 = vmatpush1.msra.mxu0 0.0
          %2584 = vmatprep.subr.mxu0 0.0
          %2585 = vmatpush1.msra.mxu0 0.0
          %2586 = vmatprep.subr.mxu0 0.0
          %2587 = vmatpush1.msra.mxu0 0.0
          %2588 = vmatprep.subr.mxu0 0.0
          %2589 = vmatpush1.msra.mxu0 0.0
          %2590 = vmatprep.subr.mxu0 0.0
          %2591 = vmatpush1.msra.mxu0 0.0
          %2592 = vmatprep.subr.mxu0 0.0
          %2593 = vmatpush1.msra.mxu0 0.0
          %2594 = vmatprep.subr.mxu0 0.0
          %2595 = vmatpush1.msra.mxu0 0.0
          %2596 = vmatprep.subr.mxu0 0.0
          %2597 = vmatpush1.msra.mxu0 0.0
          %2598 = vmatprep.subr.mxu0 0.0
          %2599 = vmatpush1.msra.mxu0 0.0
          %2600 = vmatprep.subr.mxu0 0.0
          %2601 = vmatpush1.msra.mxu0 0.0
          %2602 = vmatprep.subr.mxu0 0.0
          %2603 = vmatpush1.msra.mxu0 0.0
          %2604 = vmatprep.subr.mxu0 0.0
          %2605 = vmatpush1.msra.mxu0 0.0
          %2606 = vmatprep.subr.mxu0 0.0
          %2607 = vmatpush1.msra.mxu0 0.0
          %2608 = vmatprep.subr.mxu0 0.0
          %2609 = vmatpush1.msra.mxu0 0.0
          %2610 = vmatprep.subr.mxu0 0.0
          %2611 = vmatpush1.msra.mxu0 0.0
          %2612 = vmatprep.subr.mxu0 0.0
          %2613 = vmatpush1.msra.mxu0 0.0
          %2614 = vmatprep.subr.mxu0 0.0
          %2615 = vmatpush1.msra.mxu0 0.0
          %2616 = vmatprep.subr.mxu0 0.0
          %2617 = vmatpush1.msra.mxu0 0.0
          %2618 = vmatprep.subr.mxu0 0.0
          %2619 = vmatpush1.msra.mxu0 0.0
          %2620 = vmatprep.subr.mxu0 0.0
          %2621 = vmatpush1.msra.mxu0 0.0
          %2622 = vmatprep.subr.mxu0 0.0
          %2623 = vmatpush1.msra.mxu0 0.0
          %2624 = vmatprep.subr.mxu0 0.0
          %2625 = vmatpush1.msra.mxu0 0.0
          %2626 = vmatprep.subr.mxu0 0.0
          %2627 = vmatpush1.msra.mxu0 0.0
          %2628 = vmatprep.subr.mxu0 0.0
          %2629 = vmatpush1.msra.mxu0 0.0
          %2630 = vmatprep.subr.mxu0 0.0
          %2631 = vmatpush1.msra.mxu0 0.0
          %2632 = vmatprep.subr.mxu0 0.0
          %2633 = vmatpush1.msra.mxu0 0.0
          %2634 = vmatprep.subr.mxu0 0.0
          %2635 = vmatpush1.msra.mxu0 0.0
          %2636 = vmatprep.subr.mxu0 0.0
          %2637 = vmatpush1.msra.mxu0 0.0
          %2638 = vmatprep.mubr.f32.mxu0 0.0
          %2639 = vmatmul.mubr.f32.gmra.mrb[0].mxu0 %v2572
          %v2640 = vpop.f32.mrb[0].mxu0
          %v2641 = vadd.f32 %v2569, %v2640
          %v2642 = vpop.f32.mrb[0].mxu0
          %2643 = vdwg.mxu0
          %v2645 = vsel %vm1313, %v2559, 0
          %2647 = vmatprep.subr.mxu0 0.0
          %2648 = vmatpush1.msra.mxu0 %v2560
          %2649 = vmatprep.subr.mxu0 0.0
          %2650 = vmatpush1.msra.mxu0 %v2561
          %2651 = vmatprep.subr.mxu0 0.0
          %2652 = vmatpush1.msra.mxu0 %v2562
          %2653 = vmatprep.subr.mxu0 0.0
          %2654 = vmatpush1.msra.mxu0 %v2563
          %2655 = vmatprep.subr.mxu0 0.0
          %2656 = vmatpush1.msra.mxu0 0.0
          %2657 = vmatprep.subr.mxu0 0.0
          %2658 = vmatpush1.msra.mxu0 0.0
          %2659 = vmatprep.subr.mxu0 0.0
          %2660 = vmatpush1.msra.mxu0 0.0
          %2661 = vmatprep.subr.mxu0 0.0
          %2662 = vmatpush1.msra.mxu0 0.0
          %2663 = vmatprep.subr.mxu0 0.0
          %2664 = vmatpush1.msra.mxu0 0.0
          %2665 = vmatprep.subr.mxu0 0.0
          %2666 = vmatpush1.msra.mxu0 0.0
          %2667 = vmatprep.subr.mxu0 0.0
          %2668 = vmatpush1.msra.mxu0 0.0
          %2669 = vmatprep.subr.mxu0 0.0
          %2670 = vmatpush1.msra.mxu0 0.0
          %2671 = vmatprep.subr.mxu0 0.0
          %2672 = vmatpush1.msra.mxu0 0.0
          %2673 = vmatprep.subr.mxu0 0.0
          %2674 = vmatpush1.msra.mxu0 0.0
          %2675 = vmatprep.subr.mxu0 0.0
          %2676 = vmatpush1.msra.mxu0 0.0
          %2677 = vmatprep.subr.mxu0 0.0
          %2678 = vmatpush1.msra.mxu0 0.0
          %2679 = vmatprep.subr.mxu0 0.0
          %2680 = vmatpush1.msra.mxu0 0.0
          %2681 = vmatprep.subr.mxu0 0.0
          %2682 = vmatpush1.msra.mxu0 0.0
          %2683 = vmatprep.subr.mxu0 0.0
          %2684 = vmatpush1.msra.mxu0 0.0
          %2685 = vmatprep.subr.mxu0 0.0
          %2686 = vmatpush1.msra.mxu0 0.0
          %2687 = vmatprep.subr.mxu0 0.0
          %2688 = vmatpush1.msra.mxu0 0.0
          %2689 = vmatprep.subr.mxu0 0.0
          %2690 = vmatpush1.msra.mxu0 0.0
          %2691 = vmatprep.subr.mxu0 0.0
          %2692 = vmatpush1.msra.mxu0 0.0
          %2693 = vmatprep.subr.mxu0 0.0
          %2694 = vmatpush1.msra.mxu0 0.0
          %2695 = vmatprep.subr.mxu0 0.0
          %2696 = vmatpush1.msra.mxu0 0.0
          %2697 = vmatprep.subr.mxu0 0.0
          %2698 = vmatpush1.msra.mxu0 0.0
          %2699 = vmatprep.subr.mxu0 0.0
          %2700 = vmatpush1.msra.mxu0 0.0
          %2701 = vmatprep.subr.mxu0 0.0
          %2702 = vmatpush1.msra.mxu0 0.0
          %2703 = vmatprep.subr.mxu0 0.0
          %2704 = vmatpush1.msra.mxu0 0.0
          %2705 = vmatprep.subr.mxu0 0.0
          %2706 = vmatpush1.msra.mxu0 0.0
          %2707 = vmatprep.subr.mxu0 0.0
          %2708 = vmatpush1.msra.mxu0 0.0
          %2709 = vmatprep.subr.mxu0 0.0
          %2710 = vmatpush1.msra.mxu0 0.0
          %2711 = vmatprep.mubr.f32.mxu0 0.0
          %2712 = vmatmul.mubr.f32.gmra.mrb[0].mxu0 %v2645
          %v2713 = vpop.f32.mrb[0].mxu0
          %v2714 = vadd.f32 %v2569, %v2713
          %v2715 = vpop.f32.mrb[0].mxu0
          %2716 = vdwg.mxu0
          %v2717 = vmax.f32 %v2641, 0.0
          %v2718 = vmax.f32 %v2714, 0.0
          %v2719 = vld [vmem:[%s1230] sm:$0xff]
          %v2720 = vld [vmem:[%s1230 + $0x8] sm:$0xff]
          %v2721 = vld [vmem:[%s1230 + $0x10] sm:$0xff]
          %v2722 = vld [vmem:[%s1230 + $0x18] sm:$0xff]
          %v2723 = vld [vmem:[%s1230 + $0x20] sm:$0xff]
          %v2724 = vld [vmem:[%s1230 + $0x28] sm:$0xff]
          %v2725 = vld [vmem:[%s1230 + $0x30] sm:$0xff]
          %v2726 = vld [vmem:[%s1230 + $0x38] sm:$0xff]
          %v2727 = vld [vmem:[%s1003] sm:$0x1]
          %v2729 = vlaneseq
          %v2730 = vshrl.u32 %v2729, 7
          %v2731 = vsub.s32 0, %v2730
          %v2732 = vrot.slane %v2727, %v2731
          %vm2734 = vcmask 523264
          %v2736 = vsel %vm2734, %v2717, 0
          %2738 = vmatprep.subr.mxu0 0.0
          %2739 = vmatpush1.msra.mxu0 %v2719
          %2740 = vmatprep.subr.mxu0 0.0
          %2741 = vmatpush1.msra.mxu0 %v2720
          %2742 = vmatprep.subr.mxu0 0.0
          %2743 = vmatpush1.msra.mxu0 %v2721
          %2744 = vmatprep.subr.mxu0 0.0
          %2745 = vmatpush1.msra.mxu0 %v2722
          %2746 = vmatprep.subr.mxu0 0.0
          %2747 = vmatpush1.msra.mxu0 %v2723
          %2748 = vmatprep.subr.mxu0 0.0
          %2749 = vmatpush1.msra.mxu0 %v2724
          %2750 = vmatprep.subr.mxu0 0.0
          %2751 = vmatpush1.msra.mxu0 %v2725
          %2752 = vmatprep.subr.mxu0 0.0
          %2753 = vmatpush1.msra.mxu0 %v2726
          %2754 = vmatprep.subr.mxu0 0.0
          %2755 = vmatpush1.msra.mxu0 0.0
          %2756 = vmatprep.subr.mxu0 0.0
          %2757 = vmatpush1.msra.mxu0 0.0
          %2758 = vmatprep.subr.mxu0 0.0
          %2759 = vmatpush1.msra.mxu0 0.0
          %2760 = vmatprep.subr.mxu0 0.0
          %2761 = vmatpush1.msra.mxu0 0.0
          %2762 = vmatprep.subr.mxu0 0.0
          %2763 = vmatpush1.msra.mxu0 0.0
          %2764 = vmatprep.subr.mxu0 0.0
          %2765 = vmatpush1.msra.mxu0 0.0
          %2766 = vmatprep.subr.mxu0 0.0
          %2767 = vmatpush1.msra.mxu0 0.0
          %2768 = vmatprep.subr.mxu0 0.0
          %2769 = vmatpush1.msra.mxu0 0.0
          %2770 = vmatprep.subr.mxu0 0.0
          %2771 = vmatpush1.msra.mxu0 0.0
          %2772 = vmatprep.subr.mxu0 0.0
          %2773 = vmatpush1.msra.mxu0 0.0
          %2774 = vmatprep.subr.mxu0 0.0
          %2775 = vmatpush1.msra.mxu0 0.0
          %2776 = vmatprep.subr.mxu0 0.0
          %2777 = vmatpush1.msra.mxu0 0.0
          %2778 = vmatprep.subr.mxu0 0.0
          %2779 = vmatpush1.msra.mxu0 0.0
          %2780 = vmatprep.subr.mxu0 0.0
          %2781 = vmatpush1.msra.mxu0 0.0
          %2782 = vmatprep.subr.mxu0 0.0
          %2783 = vmatpush1.msra.mxu0 0.0
          %2784 = vmatprep.subr.mxu0 0.0
          %2785 = vmatpush1.msra.mxu0 0.0
          %2786 = vmatprep.subr.mxu0 0.0
          %2787 = vmatpush1.msra.mxu0 0.0
          %2788 = vmatprep.subr.mxu0 0.0
          %2789 = vmatpush1.msra.mxu0 0.0
          %2790 = vmatprep.subr.mxu0 0.0
          %2791 = vmatpush1.msra.mxu0 0.0
          %2792 = vmatprep.subr.mxu0 0.0
          %2793 = vmatpush1.msra.mxu0 0.0
          %2794 = vmatprep.subr.mxu0 0.0
          %2795 = vmatpush1.msra.mxu0 0.0
          %2796 = vmatprep.subr.mxu0 0.0
          %2797 = vmatpush1.msra.mxu0 0.0
          %2798 = vmatprep.subr.mxu0 0.0
          %2799 = vmatpush1.msra.mxu0 0.0
          %2800 = vmatprep.subr.mxu0 0.0
          %2801 = vmatpush1.msra.mxu0 0.0
          %2802 = vmatprep.mubr.f32.mxu0 0.0
          %2803 = vmatmul.mubr.f32.gmra.mrb[0].mxu0 %v2736
          %v2804 = vpop.f32.mrb[0].mxu0
          %v2805 = vadd.f32 %v2732, %v2804
          %v2806 = vpop.f32.mrb[0].mxu0
          %2807 = vdwg.mxu0
          %v2809 = vsel %vm2734, %v2718, 0
          %2811 = vmatprep.subr.mxu0 0.0
          %2812 = vmatpush1.msra.mxu0 %v2719
          %2813 = vmatprep.subr.mxu0 0.0
          %2814 = vmatpush1.msra.mxu0 %v2720
          %2815 = vmatprep.subr.mxu0 0.0
          %2816 = vmatpush1.msra.mxu0 %v2721
          %2817 = vmatprep.subr.mxu0 0.0
          %2818 = vmatpush1.msra.mxu0 %v2722
          %2819 = vmatprep.subr.mxu0 0.0
          %2820 = vmatpush1.msra.mxu0 %v2723
          %2821 = vmatprep.subr.mxu0 0.0
          %2822 = vmatpush1.msra.mxu0 %v2724
          %2823 = vmatprep.subr.mxu0 0.0
          %2824 = vmatpush1.msra.mxu0 %v2725
          %2825 = vmatprep.subr.mxu0 0.0
          %2826 = vmatpush1.msra.mxu0 %v2726
          %2827 = vmatprep.subr.mxu0 0.0
          %2828 = vmatpush1.msra.mxu0 0.0
          %2829 = vmatprep.subr.mxu0 0.0
          %2830 = vmatpush1.msra.mxu0 0.0
          %2831 = vmatprep.subr.mxu0 0.0
          %2832 = vmatpush1.msra.mxu0 0.0
          %2833 = vmatprep.subr.mxu0 0.0
          %2834 = vmatpush1.msra.mxu0 0.0
          %2835 = vmatprep.subr.mxu0 0.0
          %2836 = vmatpush1.msra.mxu0 0.0
          %2837 = vmatprep.subr.mxu0 0.0
          %2838 = vmatpush1.msra.mxu0 0.0
          %2839 = vmatprep.subr.mxu0 0.0
          %2840 = vmatpush1.msra.mxu0 0.0
          %2841 = vmatprep.subr.mxu0 0.0
          %2842 = vmatpush1.msra.mxu0 0.0
          %2843 = vmatprep.subr.mxu0 0.0
          %2844 = vmatpush1.msra.mxu0 0.0
          %2845 = vmatprep.subr.mxu0 0.0
          %2846 = vmatpush1.msra.mxu0 0.0
          %2847 = vmatprep.subr.mxu0 0.0
          %2848 = vmatpush1.msra.mxu0 0.0
          %2849 = vmatprep.subr.mxu0 0.0
          %2850 = vmatpush1.msra.mxu0 0.0
          %2851 = vmatprep.subr.mxu0 0.0
          %2852 = vmatpush1.msra.mxu0 0.0
          %2853 = vmatprep.subr.mxu0 0.0
          %2854 = vmatpush1.msra.mxu0 0.0
          %2855 = vmatprep.subr.mxu0 0.0
          %2856 = vmatpush1.msra.mxu0 0.0
          %2857 = vmatprep.subr.mxu0 0.0
          %2858 = vmatpush1.msra.mxu0 0.0
          %2859 = vmatprep.subr.mxu0 0.0
          %2860 = vmatpush1.msra.mxu0 0.0
          %2861 = vmatprep.subr.mxu0 0.0
          %2862 = vmatpush1.msra.mxu0 0.0
          %2863 = vmatprep.subr.mxu0 0.0
          %2864 = vmatpush1.msra.mxu0 0.0
          %2865 = vmatprep.subr.mxu0 0.0
          %2866 = vmatpush1.msra.mxu0 0.0
          %2867 = vmatprep.subr.mxu0 0.0
          %2868 = vmatpush1.msra.mxu0 0.0
          %2869 = vmatprep.subr.mxu0 0.0
          %2870 = vmatpush1.msra.mxu0 0.0
          %2871 = vmatprep.subr.mxu0 0.0
          %2872 = vmatpush1.msra.mxu0 0.0
          %2873 = vmatprep.subr.mxu0 0.0
          %2874 = vmatpush1.msra.mxu0 0.0
          %2875 = vmatprep.mubr.f32.mxu0 0.0
          %2876 = vmatmul.mubr.f32.gmra.mrb[0].mxu0 %v2809
          %v2877 = vpop.f32.mrb[0].mxu0
          %v2878 = vadd.f32 %v2732, %v2877
          %v2879 = vpop.f32.mrb[0].mxu0
          %2880 = vdwg.mxu0
          %v2881 = vadd.f32 %v2513, %v2805
          %v2882 = vadd.f32 %v2514, %v2878
          %2883 = vst.msk [vmem:[#allocation2] sm:$0xff] %vm1313, %v2881
          %2884 = vst.msk [vmem:[#allocation2 + $0x8] sm:$0xff] %vm1313, %v2882
        $region164: #{_lambda_.1} parent=107 // pred_fallthru
          _
        %p2885 = scmp.eq.s32.totalorder %s54, 1
        %p2886 = pnand %p2885, %p2509
        %p2887 = pneg %p2886
        // Predicated region
        $region165: #{_lambda_.1} parent=107 // pred_check
          _
        $region166: #{_lambda_.1} parent=107 // pred_check_branch
          %2889 = sbr.rel (%p2886) target = $region168
        $region167: #{_lambda_.1} parent=107 // pred_region
          %v2890 = vld [vmem:[#allocation2] sm:$0xff]
          %v2891 = vld [vmem:[#allocation2 + $0x8] sm:$0xff]
          %v2892 = vld [vmem:[%s18] sm:$0x1]
          %v2893 = vld [vmem:[#allocation19] sm:$0x1]
          %v2894 = vsel %vm1313, %v2890, 0.0
          %2895 = vadd.xlane.f32.xlu0 %v2894
          %v2896 = vpop.xlane.xlu0 %2895
          %v2897 = vsel %vm1313, %v2891, 0.0
          %2898 = vadd.xlane.f32.xlu0 %v2897
          %v2899 = vpop.xlane.xlu0 %2898
          %v2900 = vrcp.pop 32.0
          %v2901 = vmul.f32 %v2896, %v2900
          %v2902 = vmul.f32 %v2899, %v2900
          %v2903 = vsub.f32 %v2890, %v2901
          %v2904 = vsub.f32 %v2891, %v2902
          %v2905 = vmul.f32 %v2903, %v2903
          %v2906 = vmul.f32 %v2904, %v2904
          %v2907 = vsel %vm1313, %v2905, 0.0
          %2908 = vadd.xlane.f32.xlu0 %v2907
          %v2909 = vpop.xlane.xlu0 %2908
          %v2910 = vsel %vm1313, %v2906, 0.0
          %2911 = vadd.xlane.f32.xlu0 %v2910
          %v2912 = vpop.xlane.xlu0 %2911
          %v2913 = vmul.f32 %v2909, %v2900
          %v2914 = vmul.f32 %v2912, %v2900
          %v2915 = vadd.f32 %v2913, 1e-05
          %v2916 = vadd.f32 %v2914, 1e-05
          %v2917 = vrsqrt.pop %v2915
          %v2918 = vrsqrt.pop %v2916
          %v2919 = vmul.f32 %v2903, %v2917
          %v2920 = vmul.f32 %v2904, %v2918
          %v2922 = vlaneseq
          %v2923 = vshrl.u32 %v2922, 7
          %v2924 = vsub.s32 0, %v2923
          %v2925 = vrot.slane %v2892, %v2924
          %v2927 = vmul.f32 %v2919, %v2925
          %v2928 = vmul.f32 %v2920, %v2925
          %v2930 = vlaneseq
          %v2931 = vshrl.u32 %v2930, 7
          %v2932 = vsub.s32 0, %v2931
          %v2933 = vrot.slane %v2893, %v2932
          %v2935 = vadd.f32 %v2927, %v2933
          %v2936 = vadd.f32 %v2928, %v2933
          %v2937 = vld [vmem:[#allocation20] sm:$0xff]
          %v2938 = vld [vmem:[#allocation20 + $0x8] sm:$0xff]
          %v2939 = vld [vmem:[#allocation20 + $0x10] sm:$0xff]
          %v2940 = vld [vmem:[#allocation20 + $0x18] sm:$0xff]
          %v2941 = vld [vmem:[#allocation22] sm:$0x1]
          %v2943 = vlaneseq
          %v2944 = vshrl.u32 %v2943, 7
          %v2945 = vsub.s32 0, %v2944
          %v2946 = vrot.slane %v2941, %v2945
          %v2949 = vsel %vm1313, %v2935, 0
          %2951 = vmatprep.subr.mxu0 0.0
          %2952 = vmatpush1.msra.mxu0 %v2937
          %2953 = vmatprep.subr.mxu0 0.0
          %2954 = vmatpush1.msra.mxu0 %v2938
          %2955 = vmatprep.subr.mxu0 0.0
          %2956 = vmatpush1.msra.mxu0 %v2939
          %2957 = vmatprep.subr.mxu0 0.0
          %2958 = vmatpush1.msra.mxu0 %v2940
          %2959 = vmatprep.subr.mxu0 0.0
          %2960 = vmatpush1.msra.mxu0 0.0
          %2961 = vmatprep.subr.mxu0 0.0
          %2962 = vmatpush1.msra.mxu0 0.0
          %2963 = vmatprep.subr.mxu0 0.0
          %2964 = vmatpush1.msra.mxu0 0.0
          %2965 = vmatprep.subr.mxu0 0.0
          %2966 = vmatpush1.msra.mxu0 0.0
          %2967 = vmatprep.subr.mxu0 0.0
          %2968 = vmatpush1.msra.mxu0 0.0
          %2969 = vmatprep.subr.mxu0 0.0
          %2970 = vmatpush1.msra.mxu0 0.0
          %2971 = vmatprep.subr.mxu0 0.0
          %2972 = vmatpush1.msra.mxu0 0.0
          %2973 = vmatprep.subr.mxu0 0.0
          %2974 = vmatpush1.msra.mxu0 0.0
          %2975 = vmatprep.subr.mxu0 0.0
          %2976 = vmatpush1.msra.mxu0 0.0
          %2977 = vmatprep.subr.mxu0 0.0
          %2978 = vmatpush1.msra.mxu0 0.0
          %2979 = vmatprep.subr.mxu0 0.0
          %2980 = vmatpush1.msra.mxu0 0.0
          %2981 = vmatprep.subr.mxu0 0.0
          %2982 = vmatpush1.msra.mxu0 0.0
          %2983 = vmatprep.subr.mxu0 0.0
          %2984 = vmatpush1.msra.mxu0 0.0
          %2985 = vmatprep.subr.mxu0 0.0
          %2986 = vmatpush1.msra.mxu0 0.0
          %2987 = vmatprep.subr.mxu0 0.0
          %2988 = vmatpush1.msra.mxu0 0.0
          %2989 = vmatprep.subr.mxu0 0.0
          %2990 = vmatpush1.msra.mxu0 0.0
          %2991 = vmatprep.subr.mxu0 0.0
          %2992 = vmatpush1.msra.mxu0 0.0
          %2993 = vmatprep.subr.mxu0 0.0
          %2994 = vmatpush1.msra.mxu0 0.0
          %2995 = vmatprep.subr.mxu0 0.0
          %2996 = vmatpush1.msra.mxu0 0.0
          %2997 = vmatprep.subr.mxu0 0.0
          %2998 = vmatpush1.msra.mxu0 0.0
          %2999 = vmatprep.subr.mxu0 0.0
          %3000 = vmatpush1.msra.mxu0 0.0
          %3001 = vmatprep.subr.mxu0 0.0
          %3002 = vmatpush1.msra.mxu0 0.0
          %3003 = vmatprep.subr.mxu0 0.0
          %3004 = vmatpush1.msra.mxu0 0.0
          %3005 = vmatprep.subr.mxu0 0.0
          %3006 = vmatpush1.msra.mxu0 0.0
          %3007 = vmatprep.subr.mxu0 0.0
          %3008 = vmatpush1.msra.mxu0 0.0
          %3009 = vmatprep.subr.mxu0 0.0
          %3010 = vmatpush1.msra.mxu0 0.0
          %3011 = vmatprep.subr.mxu0 0.0
          %3012 = vmatpush1.msra.mxu0 0.0
          %3013 = vmatprep.subr.mxu0 0.0
          %3014 = vmatpush1.msra.mxu0 0.0
          %3015 = vmatprep.mubr.f32.mxu0 0.0
          %3016 = vmatmul.mubr.f32.gmra.mrb[0].mxu0 %v2949
          %v3017 = vpop.f32.mrb[0].mxu0
          %v3018 = vadd.f32 %v2946, %v3017
          %v3019 = vpop.f32.mrb[0].mxu0
          %3020 = vdwg.mxu0
          %v3022 = vsel %vm1313, %v2936, 0
          %3024 = vmatprep.subr.mxu0 0.0
          %3025 = vmatpush1.msra.mxu0 %v2937
          %3026 = vmatprep.subr.mxu0 0.0
          %3027 = vmatpush1.msra.mxu0 %v2938
          %3028 = vmatprep.subr.mxu0 0.0
          %3029 = vmatpush1.msra.mxu0 %v2939
          %3030 = vmatprep.subr.mxu0 0.0
          %3031 = vmatpush1.msra.mxu0 %v2940
          %3032 = vmatprep.subr.mxu0 0.0
          %3033 = vmatpush1.msra.mxu0 0.0
          %3034 = vmatprep.subr.mxu0 0.0
          %3035 = vmatpush1.msra.mxu0 0.0
          %3036 = vmatprep.subr.mxu0 0.0
          %3037 = vmatpush1.msra.mxu0 0.0
          %3038 = vmatprep.subr.mxu0 0.0
          %3039 = vmatpush1.msra.mxu0 0.0
          %3040 = vmatprep.subr.mxu0 0.0
          %3041 = vmatpush1.msra.mxu0 0.0
          %3042 = vmatprep.subr.mxu0 0.0
          %3043 = vmatpush1.msra.mxu0 0.0
          %3044 = vmatprep.subr.mxu0 0.0
          %3045 = vmatpush1.msra.mxu0 0.0
          %3046 = vmatprep.subr.mxu0 0.0
          %3047 = vmatpush1.msra.mxu0 0.0
          %3048 = vmatprep.subr.mxu0 0.0
          %3049 = vmatpush1.msra.mxu0 0.0
          %3050 = vmatprep.subr.mxu0 0.0
          %3051 = vmatpush1.msra.mxu0 0.0
          %3052 = vmatprep.subr.mxu0 0.0
          %3053 = vmatpush1.msra.mxu0 0.0
          %3054 = vmatprep.subr.mxu0 0.0
          %3055 = vmatpush1.msra.mxu0 0.0
          %3056 = vmatprep.subr.mxu0 0.0
          %3057 = vmatpush1.msra.mxu0 0.0
          %3058 = vmatprep.subr.mxu0 0.0
          %3059 = vmatpush1.msra.mxu0 0.0
          %3060 = vmatprep.subr.mxu0 0.0
          %3061 = vmatpush1.msra.mxu0 0.0
          %3062 = vmatprep.subr.mxu0 0.0
          %3063 = vmatpush1.msra.mxu0 0.0
          %3064 = vmatprep.subr.mxu0 0.0
          %3065 = vmatpush1.msra.mxu0 0.0
          %3066 = vmatprep.subr.mxu0 0.0
          %3067 = vmatpush1.msra.mxu0 0.0
          %3068 = vmatprep.subr.mxu0 0.0
          %3069 = vmatpush1.msra.mxu0 0.0
          %3070 = vmatprep.subr.mxu0 0.0
          %3071 = vmatpush1.msra.mxu0 0.0
          %3072 = vmatprep.subr.mxu0 0.0
          %3073 = vmatpush1.msra.mxu0 0.0
          %3074 = vmatprep.subr.mxu0 0.0
          %3075 = vmatpush1.msra.mxu0 0.0
          %3076 = vmatprep.subr.mxu0 0.0
          %3077 = vmatpush1.msra.mxu0 0.0
          %3078 = vmatprep.subr.mxu0 0.0
          %3079 = vmatpush1.msra.mxu0 0.0
          %3080 = vmatprep.subr.mxu0 0.0
          %3081 = vmatpush1.msra.mxu0 0.0
          %3082 = vmatprep.subr.mxu0 0.0
          %3083 = vmatpush1.msra.mxu0 0.0
          %3084 = vmatprep.subr.mxu0 0.0
          %3085 = vmatpush1.msra.mxu0 0.0
          %3086 = vmatprep.subr.mxu0 0.0
          %3087 = vmatpush1.msra.mxu0 0.0
          %3088 = vmatprep.mubr.f32.mxu0 0.0
          %3089 = vmatmul.mubr.f32.gmra.mrb[0].mxu0 %v3022
          %v3090 = vpop.f32.mrb[0].mxu0
          %v3091 = vadd.f32 %v2946, %v3090
          %v3092 = vpop.f32.mrb[0].mxu0
          %3093 = vdwg.mxu0
          %3094 = vst [vmem:[#allocation23] sm:$0xff] %v3018
          %3095 = vst [vmem:[#allocation23 + $0x8] sm:$0xff] %v3091
        $region168: #{_lambda_.1} parent=107 // pred_fallthru
          _
        // Predicated region
        $region169: #{_lambda_.1} parent=107 // pred_check
          %p3096 = pneg %p638
        $region170: #{_lambda_.1} parent=107 // pred_check_branch
          %3098 = sbr.rel (%p3096) target = $region172
        $region171: #{_lambda_.1} parent=107 // pred_region
          %s3100 = ssub.s32 256, 256
          %3101 = vsyncadd [#allocation7], %s3100
          %s3102 = sshll.u32 [#allocation23], 4
          %s3103 = int_to_ptr.vmem [resolvable:$true] %s3102
          %3108 = dma.vmem_to_hbm [thread:$0]  %s3103, 256, %s22, [#allocation7], 128, 128, 8
        $region172: #{_lambda_.1} parent=107 // pred_fallthru
          _
        // Predicated region
        $region173: #{_lambda_.1} parent=107 // pred_check
          %p3109 = pneg %p638
        $region174: #{_lambda_.1} parent=107 // pred_check_branch
          %3111 = sbr.rel (%p3109) target = $region176
        $region175: #{_lambda_.1} parent=107 // pred_region
          %3112 = dma.done [#allocation7], 256
        $region176: #{_lambda_.1} parent=107 // pred_fallthru
          _
      $region108: #{_lambda_.1} parent=5 // pred_fallthru
        _
      %p3113 = scmp.le.s32.totalorder 2, %s45
      // Predicated region
      $region177: #{_lambda_.1} parent=5 // pred_check
        %p3114 = pneg %p3113
      $region178: #{_lambda_.1} parent=5 // pred_check_branch
        %3116 = sbr.rel (%p3114) target = $region180
      $region179: #{_lambda_.1} parent=5 // pred_region
        %s3117 = ssub.s32 %s45, 2
      $region180: #{_lambda_.1} parent=5 // pred_fallthru
        _
    $region6: #{_lambda_.1} parent=1 // loop_footer
      %s49 = sadd.s32 1, %s45
    $region7: #{_lambda_.1} parent=1 // loop_footer_branch
      %44 = sbr.rel target = $region3
    $region8: #{_lambda_.1} parent=1 // loop_exit
      _
    %3118 = vsyncpa [#allocation6], 1
    %s3119 = scalar_lea.sflag [#allocation6], 1
    %3120 = vsyncpa %s3119, 1
    %3121 = vsyncpa [#allocation9], 1
    %s3122 = scalar_lea.sflag [#allocation9], 1
    %3123 = vsyncpa %s3122, 1
    %3124 = vsyncpa [#allocation12], 1
    %s3125 = scalar_lea.sflag [#allocation12], 1
    %3126 = vsyncpa %s3125, 1
    %3127 = vsyncpa [#allocation15], 1
    %s3128 = scalar_lea.sflag [#allocation15], 1
    %3129 = vsyncpa %s3128, 1
    %3130 = vsyncpa [#allocation18], 1
    %s3131 = scalar_lea.sflag [#allocation18], 1
    %3132 = vsyncpa %s3131, 1
    %3133 = vsyncpa [#allocation21], 1
    %3134 = vsyncpa [#allocation7], 1
    %s3135 = scalar_lea.sflag [#allocation7], 1
    %3136 = vsyncpa %s3135, 1

</llo_original>
